<compile_context>
chip_gen: v6e
topology: v6e:2x2x1
jax: 0.10.0
libtpu: 0.0.40
codegen_flags: <defaults>
</compile_context>

<pallas_src>
import functools

import jax
import jax.numpy as jnp
from jax.experimental import pallas as pl
from jax.experimental.pallas import tpu as pltpu


# ---------------------------------------------------------------------------
# Pallas kernel: whole multi-layer RNN forward in one invocation.
#   inputs : x (B, T, I), h0 (L, B, H), packed params
#   outputs: out (B, T, O), h_n (L, B, H)
# ---------------------------------------------------------------------------
def _rnn_kernel(x_ref, h0_ref, *args):
    n_layers = h0_ref.shape[0]
    n_rest = n_layers - 1
    n_param = 3 + 3 * n_rest + 2
    param_refs = args[:n_param]
    out_ref, hn_ref = args[n_param:]

    # Hoisted (loop-invariant) weight loads.
    w_ih0 = param_refs[0][...]                                     # (I, H)  pre-transposed
    w_hh0 = param_refs[1][...]                                     # (H, H)  pre-transposed
    b0 = param_refs[2][...]                                        # (1, H)  = b_ih0 + b_hh0
    w_ih_r = [param_refs[3 + 3 * l][...] for l in range(n_rest)]   # (H, H)
    w_hh_r = [param_refs[4 + 3 * l][...] for l in range(n_rest)]   # (H, H)
    b_r = [param_refs[5 + 3 * l][...] for l in range(n_rest)]      # (1, H)
    fc_w = param_refs[3 + 3 * n_rest][...]                         # (H, O)
    fc_b = param_refs[4 + 3 * n_rest][...]                         # (1, O)

    x_all = x_ref[...]                                             # (B, T, I)
    B, T, I = x_all.shape
    H = w_hh0.shape[0]

    # ---- prologue: hoisted layer-0 input projection (one batched matmul) ----
    # Kept as a value (no VMEM scratch round trip); sliced per step below.
    x_proj = (jnp.dot(x_all.reshape(B * T, I), w_ih0,
                      preferred_element_type=jnp.float32) + b0).reshape(B, T, H)

    # Hoist loop-invariant bias broadcasts out of the recurrence.
    b_r_b = [jnp.broadcast_to(b, (B, H)) for b in b_r]

    hs = [h0_ref[l] for l in range(n_layers)]                      # each (B, H)
    outs = []

    # Fully-unrolled serial recurrence (T is small); per-step top-layer
    # outputs stay in vregs.
    for t in range(T):
        # layer 0: only the recurrent half remains on the serial path.
        h_new = jnp.tanh(
            x_proj[:, t, :]
            + jnp.dot(hs[0], w_hh0, preferred_element_type=jnp.float32))
        hs[0] = h_new
        inp = h_new
        # layers >= 1: two back-to-back MXU dots (no lane concat) + VPU add.
        for l in range(n_rest):
            h_new = jnp.tanh(
                jnp.dot(inp, w_ih_r[l], preferred_element_type=jnp.float32)
                + jnp.dot(hs[l + 1], w_hh_r[l], preferred_element_type=jnp.float32)
                + b_r_b[l])
            hs[l + 1] = h_new
            inp = h_new
        outs.append(inp)

    # ---- epilogue: fc head applied once over all time steps ----
    seq = jnp.stack(outs, axis=1)                                  # (B, T, H)
    y = jnp.dot(seq.reshape(B * T, H), fc_w,
                preferred_element_type=jnp.float32) + fc_b
    out_ref[...] = y.reshape(B, T, -1)                             # (B, T, O)

    for l in range(n_layers):
        hn_ref[l] = hs[l]


# ---------------------------------------------------------------------------
# One-time parameter packing (call-invariant; do NOT run per forward call).
# ---------------------------------------------------------------------------
def pack_params(params, dtype=jnp.float32):
    n_layers = len(params["w_ih"])
    H = params["w_hh"][0].shape[0]
    O = params["fc_w"].shape[0]
    packed = [
        jnp.asarray(params["w_ih"][0], dtype).T,                   # (I, H)
        jnp.asarray(params["w_hh"][0], dtype).T,                   # (H, H)
        (jnp.asarray(params["b_ih"][0], dtype)
         + jnp.asarray(params["b_hh"][0], dtype)).reshape(1, H),   # (1, H)
    ]
    for l in range(1, n_layers):
        packed.append(jnp.asarray(params["w_ih"][l], dtype).T)     # (H, H)
        packed.append(jnp.asarray(params["w_hh"][l], dtype).T)     # (H, H)
        packed.append(
            (jnp.asarray(params["b_ih"][l], dtype)
             + jnp.asarray(params["b_hh"][l], dtype)).reshape(1, H))
    packed.append(jnp.asarray(params["fc_w"], dtype).T)            # (H, O)
    packed.append(jnp.asarray(params["fc_b"], dtype).reshape(1, O))
    return tuple(jax.device_put(p) for p in packed)


# ---------------------------------------------------------------------------
# Forward: a single jitted pallas_call, no wrapper transposes / packing.
# ---------------------------------------------------------------------------
@functools.partial(jax.jit, static_argnames=("interpret",))
def rnn_forward(x, h0, packed, interpret=False):
    """Pallas implementation of RNN.forward (state_mode=None path).

    x:      (B, T, input_size)  float32, batch_first (PyTorch layout)
    h0:     (n_layers, B, hidden_size) float32
    packed: output of pack_params()
    returns (out (B, T, O), h_n (n_layers, B, H))
    """
    B, T, _ = x.shape
    n_layers, _, H = h0.shape
    O = packed[-1].shape[-1]
    dt = jnp.float32

    vmem = pl.BlockSpec(memory_space=pltpu.MemorySpace.VMEM)
    inputs = (x.astype(dt), h0.astype(dt)) + tuple(packed)

    out, h_n = pl.pallas_call(
        _rnn_kernel,
        out_shape=(
            jax.ShapeDtypeStruct((B, T, O), dt),
            jax.ShapeDtypeStruct((n_layers, B, H), dt),
        ),
        in_specs=[vmem] * len(inputs),
        out_specs=(vmem, vmem),
        interpret=interpret,
    )(*inputs)
    return out, h_n


# ---------------------------------------------------------------------------
# Pure-JAX reference (mirrors torch nn.RNN + nn.Linear semantics exactly)
# ---------------------------------------------------------------------------
def rnn_reference(x_bti, h0, params):
    B, T, _ = x_bti.shape
    n_layers, _, H = h0.shape
    h = [h0[l] for l in range(n_layers)]
    outs = []
    for t in range(T):
        inp = x_bti[:, t, :]
        for l in range(n_layers):
            h_new = jnp.tanh(
                inp @ params["w_ih"][l].T + params["b_ih"][l]
                + h[l] @ params["w_hh"][l].T + params["b_hh"][l]
            )
            h[l] = h_new
            inp = h_new
        outs.append(inp)
    seq = jnp.stack(outs, axis=1)                       # (B, T, H)
    out = seq @ params["fc_w"].T + params["fc_b"]       # (B, T, O)
    h_n = jnp.stack(h, axis=0)
    return out, h_n


# ---------------------------------------------------------------------------
# Deterministic parameter construction (PyTorch-style uniform init)
# ---------------------------------------------------------------------------
def make_params(key, input_size, hidden_size, output_size, n_layers):
    bound = 1.0 / jnp.sqrt(hidden_size)
    params = {"w_ih": [], "w_hh": [], "b_ih": [], "b_hh": []}
    for l in range(n_layers):
        in_dim = input_size if l == 0 else hidden_size
        key, k1, k2, k3, k4 = jax.random.split(key, 5)
        params["w_ih"].append(jax.random.uniform(k1, (hidden_size, in_dim), jnp.float32, -bound, bound))
        params["w_hh"].append(jax.random.uniform(k2, (hidden_size, hidden_size), jnp.float32, -bound, bound))
        params["b_ih"].append(jax.random.uniform(k3, (hidden_size,), jnp.float32, -bound, bound))
        params["b_hh"].append(jax.random.uniform(k4, (hidden_size,), jnp.float32, -bound, bound))
    key, k1, k2 = jax.random.split(key, 3)
    fc_bound = 1.0 / jnp.sqrt(hidden_size)
    params["fc_w"] = jax.random.uniform(k1, (output_size, hidden_size), jnp.float32, -fc_bound, fc_bound)
    params["fc_b"] = jax.random.uniform(k2, (output_size,), jnp.float32, -fc_bound, fc_bound)
    return params


if __name__ == "__main__":
    # Small shapes consistent with the module's forward (batch_first sequences).
    B, T = 8, 8
    input_size, hidden_size, output_size, n_layers = 16, 32, 8, 2

    key = jax.random.PRNGKey(0)
    key, kx = jax.random.split(key)
    x = jax.random.normal(kx, (B, T, input_size), jnp.float32)
    h0 = jnp.zeros((n_layers, B, hidden_size), jnp.float32)  # get_starting_states
    params = make_params(key, input_size, hidden_size, output_size, n_layers)

    packed = pack_params(params)     # one-time, call-invariant packing

    out, h_n = rnn_forward(x, h0, packed)
    out = jax.block_until_ready(out)
    h_n = jax.block_until_ready(h_n)

    out_ref, h_n_ref = rnn_reference(x, h0, params)
    assert out.shape == (B, T, output_size) and h_n.shape == (n_layers, B, hidden_size)
    assert jnp.allclose(out, out_ref, rtol=1e-3, atol=1e-3)
    assert jnp.allclose(h_n, h_n_ref, rtol=1e-3, atol=1e-3)

    print("KERNEL_OK")
</pallas_src>

<mosaic_0001>
module attributes {stable_mosaic.version = 11 : i64} {
  func.func @_rnn_kernel(%arg0: memref<8x8x16xf32, #tpu.memory_space<vmem>>, %arg1: memref<2x8x32xf32, #tpu.memory_space<vmem>>, %arg2: memref<16x32xf32, #tpu.memory_space<vmem>>, %arg3: memref<32x32xf32, #tpu.memory_space<vmem>>, %arg4: memref<1x32xf32, #tpu.memory_space<vmem>>, %arg5: memref<32x32xf32, #tpu.memory_space<vmem>>, %arg6: memref<32x32xf32, #tpu.memory_space<vmem>>, %arg7: memref<1x32xf32, #tpu.memory_space<vmem>>, %arg8: memref<32x8xf32, #tpu.memory_space<vmem>>, %arg9: memref<1x8xf32, #tpu.memory_space<vmem>>, %arg10: memref<8x8x8xf32, #tpu.memory_space<vmem>>, %arg11: memref<2x8x32xf32, #tpu.memory_space<vmem>>) attributes {dimension_semantics = [], scalar_prefetch = 0 : i64, scratch_operands = 0 : i64, tpu.core_type = #tpu.core_type<tc>} {
    %c0 = arith.constant 0 : index
    %c0_0 = arith.constant 0 : index
    %0 = vector.load %arg2[%c0, %c0_0] : memref<16x32xf32, #tpu.memory_space<vmem>>, vector<16x32xf32>
    %c0_1 = arith.constant 0 : index
    %c0_2 = arith.constant 0 : index
    %1 = vector.load %arg3[%c0_1, %c0_2] : memref<32x32xf32, #tpu.memory_space<vmem>>, vector<32x32xf32>
    %c0_3 = arith.constant 0 : index
    %c0_4 = arith.constant 0 : index
    %2 = vector.load %arg4[%c0_3, %c0_4] : memref<1x32xf32, #tpu.memory_space<vmem>>, vector<1x32xf32>
    %c0_5 = arith.constant 0 : index
    %c0_6 = arith.constant 0 : index
    %3 = vector.load %arg5[%c0_5, %c0_6] : memref<32x32xf32, #tpu.memory_space<vmem>>, vector<32x32xf32>
    %c0_7 = arith.constant 0 : index
    %c0_8 = arith.constant 0 : index
    %4 = vector.load %arg6[%c0_7, %c0_8] : memref<32x32xf32, #tpu.memory_space<vmem>>, vector<32x32xf32>
    %c0_9 = arith.constant 0 : index
    %c0_10 = arith.constant 0 : index
    %5 = vector.load %arg7[%c0_9, %c0_10] : memref<1x32xf32, #tpu.memory_space<vmem>>, vector<1x32xf32>
    %c0_11 = arith.constant 0 : index
    %c0_12 = arith.constant 0 : index
    %6 = vector.load %arg8[%c0_11, %c0_12] : memref<32x8xf32, #tpu.memory_space<vmem>>, vector<32x8xf32>
    %c0_13 = arith.constant 0 : index
    %c0_14 = arith.constant 0 : index
    %7 = vector.load %arg9[%c0_13, %c0_14] : memref<1x8xf32, #tpu.memory_space<vmem>>, vector<1x8xf32>
    %c0_15 = arith.constant 0 : index
    %c0_16 = arith.constant 0 : index
    %c0_17 = arith.constant 0 : index
    %8 = vector.load %arg0[%c0_15, %c0_16, %c0_17] : memref<8x8x16xf32, #tpu.memory_space<vmem>>, vector<8x8x16xf32>
    %9 = vector.shape_cast %8 : vector<8x8x16xf32> to vector<64x16xf32>
    %cst = arith.constant dense<0.000000e+00> : vector<64x32xf32>
    %10 = tpu.matmul %9, %0, %cst {dimension_numbers = #tpu.dot_dimension_numbers<[1], [0], [0], [1], [0, 0, 1, 1], [], []>} : vector<64x16xf32>, vector<16x32xf32>, vector<64x32xf32> -> vector<64x32xf32>
    %11 = vector.broadcast %2 : vector<1x32xf32> to vector<64x32xf32>
    %12 = arith.addf %10, %11 : vector<64x32xf32>
    %13 = vector.shape_cast %12 : vector<64x32xf32> to vector<8x8x32xf32>
    %14 = vector.shape_cast %5 : vector<1x32xf32> to vector<1x32xf32>
    %15 = vector.broadcast %14 : vector<1x32xf32> to vector<8x32xf32>
    %c0_18 = arith.constant 0 : index
    %c0_19 = arith.constant 0 : index
    %c0_20 = arith.constant 0 : index
    %16 = vector.load %arg1[%c0_18, %c0_19, %c0_20] : memref<2x8x32xf32, #tpu.memory_space<vmem>>, vector<1x8x32xf32>
    %17 = vector.shape_cast %16 : vector<1x8x32xf32> to vector<8x32xf32>
    %c1 = arith.constant 1 : index
    %c0_21 = arith.constant 0 : index
    %c0_22 = arith.constant 0 : index
    %18 = vector.load %arg1[%c1, %c0_21, %c0_22] : memref<2x8x32xf32, #tpu.memory_space<vmem>>, vector<1x8x32xf32>
    %19 = vector.shape_cast %18 : vector<1x8x32xf32> to vector<8x32xf32>
    %20 = vector.extract_strided_slice %13 {offsets = [0, 0, 0], sizes = [8, 1, 32], strides = [1, 1, 1]} : vector<8x8x32xf32> to vector<8x1x32xf32>
    %21 = vector.shape_cast %20 : vector<8x1x32xf32> to vector<8x32xf32>
    %cst_23 = arith.constant dense<0.000000e+00> : vector<8x32xf32>
    %22 = tpu.matmul %17, %1, %cst_23 {dimension_numbers = #tpu.dot_dimension_numbers<[1], [0], [0], [1], [0, 0, 1, 1], [], []>} : vector<8x32xf32>, vector<32x32xf32>, vector<8x32xf32> -> vector<8x32xf32>
    %23 = arith.addf %21, %22 : vector<8x32xf32>
    %24 = math.tanh %23 : vector<8x32xf32>
    %cst_24 = arith.constant dense<0.000000e+00> : vector<8x32xf32>
    %25 = tpu.matmul %24, %3, %cst_24 {dimension_numbers = #tpu.dot_dimension_numbers<[1], [0], [0], [1], [0, 0, 1, 1], [], []>} : vector<8x32xf32>, vector<32x32xf32>, vector<8x32xf32> -> vector<8x32xf32>
    %cst_25 = arith.constant dense<0.000000e+00> : vector<8x32xf32>
    %26 = tpu.matmul %19, %4, %cst_25 {dimension_numbers = #tpu.dot_dimension_numbers<[1], [0], [0], [1], [0, 0, 1, 1], [], []>} : vector<8x32xf32>, vector<32x32xf32>, vector<8x32xf32> -> vector<8x32xf32>
    %27 = arith.addf %25, %26 : vector<8x32xf32>
    %28 = arith.addf %27, %15 : vector<8x32xf32>
    %29 = math.tanh %28 : vector<8x32xf32>
    %30 = vector.extract_strided_slice %13 {offsets = [0, 1, 0], sizes = [8, 1, 32], strides = [1, 1, 1]} : vector<8x8x32xf32> to vector<8x1x32xf32>
    %31 = vector.shape_cast %30 : vector<8x1x32xf32> to vector<8x32xf32>
    %cst_26 = arith.constant dense<0.000000e+00> : vector<8x32xf32>
    %32 = tpu.matmul %24, %1, %cst_26 {dimension_numbers = #tpu.dot_dimension_numbers<[1], [0], [0], [1], [0, 0, 1, 1], [], []>} : vector<8x32xf32>, vector<32x32xf32>, vector<8x32xf32> -> vector<8x32xf32>
    %33 = arith.addf %31, %32 : vector<8x32xf32>
    %34 = math.tanh %33 : vector<8x32xf32>
    %cst_27 = arith.constant dense<0.000000e+00> : vector<8x32xf32>
    %35 = tpu.matmul %34, %3, %cst_27 {dimension_numbers = #tpu.dot_dimension_numbers<[1], [0], [0], [1], [0, 0, 1, 1], [], []>} : vector<8x32xf32>, vector<32x32xf32>, vector<8x32xf32> -> vector<8x32xf32>
    %cst_28 = arith.constant dense<0.000000e+00> : vector<8x32xf32>
    %36 = tpu.matmul %29, %4, %cst_28 {dimension_numbers = #tpu.dot_dimension_numbers<[1], [0], [0], [1], [0, 0, 1, 1], [], []>} : vector<8x32xf32>, vector<32x32xf32>, vector<8x32xf32> -> vector<8x32xf32>
    %37 = arith.addf %35, %36 : vector<8x32xf32>
    %38 = arith.addf %37, %15 : vector<8x32xf32>
    %39 = math.tanh %38 : vector<8x32xf32>
    %40 = vector.extract_strided_slice %13 {offsets = [0, 2, 0], sizes = [8, 1, 32], strides = [1, 1, 1]} : vector<8x8x32xf32> to vector<8x1x32xf32>
    %41 = vector.shape_cast %40 : vector<8x1x32xf32> to vector<8x32xf32>
    %cst_29 = arith.constant dense<0.000000e+00> : vector<8x32xf32>
    %42 = tpu.matmul %34, %1, %cst_29 {dimension_numbers = #tpu.dot_dimension_numbers<[1], [0], [0], [1], [0, 0, 1, 1], [], []>} : vector<8x32xf32>, vector<32x32xf32>, vector<8x32xf32> -> vector<8x32xf32>
    %43 = arith.addf %41, %42 : vector<8x32xf32>
    %44 = math.tanh %43 : vector<8x32xf32>
    %cst_30 = arith.constant dense<0.000000e+00> : vector<8x32xf32>
    %45 = tpu.matmul %44, %3, %cst_30 {dimension_numbers = #tpu.dot_dimension_numbers<[1], [0], [0], [1], [0, 0, 1, 1], [], []>} : vector<8x32xf32>, vector<32x32xf32>, vector<8x32xf32> -> vector<8x32xf32>
    %cst_31 = arith.constant dense<0.000000e+00> : vector<8x32xf32>
    %46 = tpu.matmul %39, %4, %cst_31 {dimension_numbers = #tpu.dot_dimension_numbers<[1], [0], [0], [1], [0, 0, 1, 1], [], []>} : vector<8x32xf32>, vector<32x32xf32>, vector<8x32xf32> -> vector<8x32xf32>
    %47 = arith.addf %45, %46 : vector<8x32xf32>
    %48 = arith.addf %47, %15 : vector<8x32xf32>
    %49 = math.tanh %48 : vector<8x32xf32>
    %50 = vector.extract_strided_slice %13 {offsets = [0, 3, 0], sizes = [8, 1, 32], strides = [1, 1, 1]} : vector<8x8x32xf32> to vector<8x1x32xf32>
    %51 = vector.shape_cast %50 : vector<8x1x32xf32> to vector<8x32xf32>
    %cst_32 = arith.constant dense<0.000000e+00> : vector<8x32xf32>
    %52 = tpu.matmul %44, %1, %cst_32 {dimension_numbers = #tpu.dot_dimension_numbers<[1], [0], [0], [1], [0, 0, 1, 1], [], []>} : vector<8x32xf32>, vector<32x32xf32>, vector<8x32xf32> -> vector<8x32xf32>
    %53 = arith.addf %51, %52 : vector<8x32xf32>
    %54 = math.tanh %53 : vector<8x32xf32>
    %cst_33 = arith.constant dense<0.000000e+00> : vector<8x32xf32>
    %55 = tpu.matmul %54, %3, %cst_33 {dimension_numbers = #tpu.dot_dimension_numbers<[1], [0], [0], [1], [0, 0, 1, 1], [], []>} : vector<8x32xf32>, vector<32x32xf32>, vector<8x32xf32> -> vector<8x32xf32>
    %cst_34 = arith.constant dense<0.000000e+00> : vector<8x32xf32>
    %56 = tpu.matmul %49, %4, %cst_34 {dimension_numbers = #tpu.dot_dimension_numbers<[1], [0], [0], [1], [0, 0, 1, 1], [], []>} : vector<8x32xf32>, vector<32x32xf32>, vector<8x32xf32> -> vector<8x32xf32>
    %57 = arith.addf %55, %56 : vector<8x32xf32>
    %58 = arith.addf %57, %15 : vector<8x32xf32>
    %59 = math.tanh %58 : vector<8x32xf32>
    %60 = vector.extract_strided_slice %13 {offsets = [0, 4, 0], sizes = [8, 1, 32], strides = [1, 1, 1]} : vector<8x8x32xf32> to vector<8x1x32xf32>
    %61 = vector.shape_cast %60 : vector<8x1x32xf32> to vector<8x32xf32>
    %cst_35 = arith.constant dense<0.000000e+00> : vector<8x32xf32>
    %62 = tpu.matmul %54, %1, %cst_35 {dimension_numbers = #tpu.dot_dimension_numbers<[1], [0], [0], [1], [0, 0, 1, 1], [], []>} : vector<8x32xf32>, vector<32x32xf32>, vector<8x32xf32> -> vector<8x32xf32>
    %63 = arith.addf %61, %62 : vector<8x32xf32>
    %64 = math.tanh %63 : vector<8x32xf32>
    %cst_36 = arith.constant dense<0.000000e+00> : vector<8x32xf32>
    %65 = tpu.matmul %64, %3, %cst_36 {dimension_numbers = #tpu.dot_dimension_numbers<[1], [0], [0], [1], [0, 0, 1, 1], [], []>} : vector<8x32xf32>, vector<32x32xf32>, vector<8x32xf32> -> vector<8x32xf32>
    %cst_37 = arith.constant dense<0.000000e+00> : vector<8x32xf32>
    %66 = tpu.matmul %59, %4, %cst_37 {dimension_numbers = #tpu.dot_dimension_numbers<[1], [0], [0], [1], [0, 0, 1, 1], [], []>} : vector<8x32xf32>, vector<32x32xf32>, vector<8x32xf32> -> vector<8x32xf32>
    %67 = arith.addf %65, %66 : vector<8x32xf32>
    %68 = arith.addf %67, %15 : vector<8x32xf32>
    %69 = math.tanh %68 : vector<8x32xf32>
    %70 = vector.extract_strided_slice %13 {offsets = [0, 5, 0], sizes = [8, 1, 32], strides = [1, 1, 1]} : vector<8x8x32xf32> to vector<8x1x32xf32>
    %71 = vector.shape_cast %70 : vector<8x1x32xf32> to vector<8x32xf32>
    %cst_38 = arith.constant dense<0.000000e+00> : vector<8x32xf32>
    %72 = tpu.matmul %64, %1, %cst_38 {dimension_numbers = #tpu.dot_dimension_numbers<[1], [0], [0], [1], [0, 0, 1, 1], [], []>} : vector<8x32xf32>, vector<32x32xf32>, vector<8x32xf32> -> vector<8x32xf32>
    %73 = arith.addf %71, %72 : vector<8x32xf32>
    %74 = math.tanh %73 : vector<8x32xf32>
    %cst_39 = arith.constant dense<0.000000e+00> : vector<8x32xf32>
    %75 = tpu.matmul %74, %3, %cst_39 {dimension_numbers = #tpu.dot_dimension_numbers<[1], [0], [0], [1], [0, 0, 1, 1], [], []>} : vector<8x32xf32>, vector<32x32xf32>, vector<8x32xf32> -> vector<8x32xf32>
    %cst_40 = arith.constant dense<0.000000e+00> : vector<8x32xf32>
    %76 = tpu.matmul %69, %4, %cst_40 {dimension_numbers = #tpu.dot_dimension_numbers<[1], [0], [0], [1], [0, 0, 1, 1], [], []>} : vector<8x32xf32>, vector<32x32xf32>, vector<8x32xf32> -> vector<8x32xf32>
    %77 = arith.addf %75, %76 : vector<8x32xf32>
    %78 = arith.addf %77, %15 : vector<8x32xf32>
    %79 = math.tanh %78 : vector<8x32xf32>
    %80 = vector.extract_strided_slice %13 {offsets = [0, 6, 0], sizes = [8, 1, 32], strides = [1, 1, 1]} : vector<8x8x32xf32> to vector<8x1x32xf32>
    %81 = vector.shape_cast %80 : vector<8x1x32xf32> to vector<8x32xf32>
    %cst_41 = arith.constant dense<0.000000e+00> : vector<8x32xf32>
    %82 = tpu.matmul %74, %1, %cst_41 {dimension_numbers = #tpu.dot_dimension_numbers<[1], [0], [0], [1], [0, 0, 1, 1], [], []>} : vector<8x32xf32>, vector<32x32xf32>, vector<8x32xf32> -> vector<8x32xf32>
    %83 = arith.addf %81, %82 : vector<8x32xf32>
    %84 = math.tanh %83 : vector<8x32xf32>
    %cst_42 = arith.constant dense<0.000000e+00> : vector<8x32xf32>
    %85 = tpu.matmul %84, %3, %cst_42 {dimension_numbers = #tpu.dot_dimension_numbers<[1], [0], [0], [1], [0, 0, 1, 1], [], []>} : vector<8x32xf32>, vector<32x32xf32>, vector<8x32xf32> -> vector<8x32xf32>
    %cst_43 = arith.constant dense<0.000000e+00> : vector<8x32xf32>
    %86 = tpu.matmul %79, %4, %cst_43 {dimension_numbers = #tpu.dot_dimension_numbers<[1], [0], [0], [1], [0, 0, 1, 1], [], []>} : vector<8x32xf32>, vector<32x32xf32>, vector<8x32xf32> -> vector<8x32xf32>
    %87 = arith.addf %85, %86 : vector<8x32xf32>
    %88 = arith.addf %87, %15 : vector<8x32xf32>
    %89 = math.tanh %88 : vector<8x32xf32>
    %90 = vector.extract_strided_slice %13 {offsets = [0, 7, 0], sizes = [8, 1, 32], strides = [1, 1, 1]} : vector<8x8x32xf32> to vector<8x1x32xf32>
    %91 = vector.shape_cast %90 : vector<8x1x32xf32> to vector<8x32xf32>
    %cst_44 = arith.constant dense<0.000000e+00> : vector<8x32xf32>
    %92 = tpu.matmul %84, %1, %cst_44 {dimension_numbers = #tpu.dot_dimension_numbers<[1], [0], [0], [1], [0, 0, 1, 1], [], []>} : vector<8x32xf32>, vector<32x32xf32>, vector<8x32xf32> -> vector<8x32xf32>
    %93 = arith.addf %91, %92 : vector<8x32xf32>
    %94 = math.tanh %93 : vector<8x32xf32>
    %cst_45 = arith.constant dense<0.000000e+00> : vector<8x32xf32>
    %95 = tpu.matmul %94, %3, %cst_45 {dimension_numbers = #tpu.dot_dimension_numbers<[1], [0], [0], [1], [0, 0, 1, 1], [], []>} : vector<8x32xf32>, vector<32x32xf32>, vector<8x32xf32> -> vector<8x32xf32>
    %cst_46 = arith.constant dense<0.000000e+00> : vector<8x32xf32>
    %96 = tpu.matmul %89, %4, %cst_46 {dimension_numbers = #tpu.dot_dimension_numbers<[1], [0], [0], [1], [0, 0, 1, 1], [], []>} : vector<8x32xf32>, vector<32x32xf32>, vector<8x32xf32> -> vector<8x32xf32>
    %97 = arith.addf %95, %96 : vector<8x32xf32>
    %98 = arith.addf %97, %15 : vector<8x32xf32>
    %99 = math.tanh %98 : vector<8x32xf32>
    %100 = vector.shape_cast %29 : vector<8x32xf32> to vector<8x1x32xf32>
    %101 = vector.shape_cast %39 : vector<8x32xf32> to vector<8x1x32xf32>
    %102 = vector.shape_cast %49 : vector<8x32xf32> to vector<8x1x32xf32>
    %103 = vector.shape_cast %59 : vector<8x32xf32> to vector<8x1x32xf32>
    %104 = vector.shape_cast %69 : vector<8x32xf32> to vector<8x1x32xf32>
    %105 = vector.shape_cast %79 : vector<8x32xf32> to vector<8x1x32xf32>
    %106 = vector.shape_cast %89 : vector<8x32xf32> to vector<8x1x32xf32>
    %107 = vector.shape_cast %99 : vector<8x32xf32> to vector<8x1x32xf32>
    %108 = tpu.concatenate %100, %101, %102, %103, %104, %105, %106, %107 in 1 : vector<8x1x32xf32>, vector<8x1x32xf32>, vector<8x1x32xf32>, vector<8x1x32xf32>, vector<8x1x32xf32>, vector<8x1x32xf32>, vector<8x1x32xf32>, vector<8x1x32xf32> -> vector<8x8x32xf32>
    %109 = vector.shape_cast %108 : vector<8x8x32xf32> to vector<64x32xf32>
    %cst_47 = arith.constant dense<0.000000e+00> : vector<64x8xf32>
    %110 = tpu.matmul %109, %6, %cst_47 {dimension_numbers = #tpu.dot_dimension_numbers<[1], [0], [0], [1], [0, 0, 1, 1], [], []>} : vector<64x32xf32>, vector<32x8xf32>, vector<64x8xf32> -> vector<64x8xf32>
    %111 = vector.broadcast %7 : vector<1x8xf32> to vector<64x8xf32>
    %112 = arith.addf %110, %111 : vector<64x8xf32>
    %113 = vector.shape_cast %112 : vector<64x8xf32> to vector<8x8x8xf32>
    %c0_48 = arith.constant 0 : index
    %c0_49 = arith.constant 0 : index
    %c0_50 = arith.constant 0 : index
    %114 = vector.load %arg10[%c0_48, %c0_49, %c0_50] : memref<8x8x8xf32, #tpu.memory_space<vmem>>, vector<8x8x8xf32>
    tpu.vector_store %arg10[%c0_48, %c0_49, %c0_50], %113 {strides = array<i32>} : memref<8x8x8xf32, #tpu.memory_space<vmem>>, vector<8x8x8xf32>,
    %c0_51 = arith.constant 0 : index
    %c0_52 = arith.constant 0 : index
    %c0_53 = arith.constant 0 : index
    %115 = vector.load %arg11[%c0_51, %c0_52, %c0_53] : memref<2x8x32xf32, #tpu.memory_space<vmem>>, vector<1x8x32xf32>
    %116 = vector.shape_cast %115 : vector<1x8x32xf32> to vector<8x32xf32>
    %117 = vector.shape_cast %94 : vector<8x32xf32> to vector<1x8x32xf32>
    tpu.vector_store %arg11[%c0_51, %c0_52, %c0_53], %117 {strides = array<i32>} : memref<2x8x32xf32, #tpu.memory_space<vmem>>, vector<1x8x32xf32>,
    %c1_54 = arith.constant 1 : index
    %c0_55 = arith.constant 0 : index
    %c0_56 = arith.constant 0 : index
    %118 = vector.load %arg11[%c1_54, %c0_55, %c0_56] : memref<2x8x32xf32, #tpu.memory_space<vmem>>, vector<1x8x32xf32>
    %119 = vector.shape_cast %118 : vector<1x8x32xf32> to vector<8x32xf32>
    %120 = vector.shape_cast %99 : vector<8x32xf32> to vector<1x8x32xf32>
    tpu.vector_store %arg11[%c1_54, %c0_55, %c0_56], %120 {strides = array<i32>} : memref<2x8x32xf32, #tpu.memory_space<vmem>>, vector<1x8x32xf32>,
    return
  }
}

</mosaic_0001>

<llo_original>
// kernel: rnn_forward.1
$region0: #{rnn_forward.1}
  #allocation0 [shape = 'u32[]', space=smem, size = 0x4, offset = 0x4, fixed_abs, tag = 'smem constant byte address 0x4 - core index']
  #allocation1 [shape = 'u32[144,128]{1,0:T(1,128)}', space=vmem, size = 0x12000, scoped, tag = 'internal scratch']
  %s0 = inlined_call_operand.hbm [shape: f32[8,8,16], index: 0, kind: input, shape index: {}]
  %s1 = inlined_call_operand.hbm [shape: f32[2,8,32], index: 1, kind: input, shape index: {}]
  %s2 = inlined_call_operand.hbm [shape: f32[16,32], index: 2, kind: input, shape index: {}]
  %s3 = inlined_call_operand.vmem [shape: f32[32,32], index: 3, kind: input, shape index: {}]
  %s4 = inlined_call_operand.vmem [shape: f32[1,32], index: 4, kind: input, shape index: {}]
  %s5 = inlined_call_operand.hbm [shape: f32[32,32], index: 5, kind: input, shape index: {}]
  %s6 = inlined_call_operand.hbm [shape: f32[32,32], index: 6, kind: input, shape index: {}]
  %s7 = inlined_call_operand.vmem [shape: f32[1,32], index: 7, kind: input, shape index: {}]
  %s8 = inlined_call_operand.vmem [shape: f32[32,8], index: 8, kind: input, shape index: {}]
  %s9 = inlined_call_operand.vmem [shape: f32[1,8], index: 9, kind: input, shape index: {}]
  %s10 = inlined_call_operand.hbm [shape: f32[8,8,8], index: 10, kind: output, shape index: {0}]
  %s11 = inlined_call_operand.hbm [shape: f32[2,8,32], index: 11, kind: output, shape index: {1}]
  %12 = xla_tuple %s10, %s11
  %s13 = sld [smem:[#allocation0]]
  $region78: #{rnn_forward.1} parent=0
    _
  %s15 = ssub.s32 1, %s13
  %s16 = scalar_select 0, %s15, %s13
  $region1: #{rnn_forward.1} parent=0
    #allocation2 [shape = 'u8[32768]{0}', space=vmem, size = 0x8000, scoped, tag = 'input window, operand 0, single buffered']
    #allocation3 [shape = 's32[1]{0}', space=sflag, size = 0x4, scoped, tag = 'scoped memory for rnn_forward.1']
    #allocation4 [shape = 's32[1]{0}', space=sflag, size = 0x4, scoped, tag = 'scoped memory for rnn_forward.1']
    #allocation5 [shape = 'u8[8192]{0}', space=vmem, size = 0x2000, scoped, tag = 'input window, operand 1, single buffered']
    #allocation6 [shape = 's32[1]{0}', space=sflag, size = 0x4, scoped, tag = 'scoped memory for rnn_forward.1']
    #allocation7 [shape = 'u8[8192]{0}', space=vmem, size = 0x2000, scoped, tag = 'input window, operand 2, single buffered']
    #allocation8 [shape = 'u8[16384]{0}', space=vmem, size = 0x4000, scoped, tag = 'input window, operand 5, single buffered']
    #allocation9 [shape = 's32[1]{0}', space=sflag, size = 0x4, scoped, tag = 'scoped memory for rnn_forward.1']
    #allocation10 [shape = 'u8[16384]{0}', space=vmem, size = 0x4000, scoped, tag = 'input window, operand 6, single buffered']
    #allocation11 [shape = 'u8[32768]{0}', space=vmem, size = 0x8000, scoped, tag = 'output window, operand 0, single buffered']
    #allocation12 [shape = 'u8[8192]{0}', space=vmem, size = 0x2000, scoped, tag = 'output window, operand 1, single buffered']
    #allocation13 [shape = 's32[1]{0}', space=sflag, size = 0x4, scoped, tag = 'scoped memory for rnn_forward.1']
    %17 = vsyncpa [#allocation3], 0
    %18 = vsyncpa [#allocation6], 0
    %19 = vsyncpa [#allocation9], 0
    %20 = vsyncpa [#allocation4], 0
    %21 = vsyncpa [#allocation13], 0
    // Predicated region
    $region2: #{rnn_forward.1} parent=1 // pred_check
      _
    $region3: #{rnn_forward.1} parent=1 // pred_check_branch
      %23 = sbr.rel (0) target = $region5
    $region4: #{rnn_forward.1} parent=1 // pred_region
      %s25 = ssub.s32 1024, 1024
      %26 = vsyncadd [#allocation3], %s25
      %s27 = sshll.u32 [#allocation2], 4
      %s28 = int_to_ptr.vmem [resolvable:$true] %s27
      %33 = dma.hbm_to_vmem [thread:$0]  %s0, 1024, %s28, [#allocation3], 128, 128, 8
    $region5: #{rnn_forward.1} parent=1 // pred_fallthru
      _
    // Predicated region
    $region6: #{rnn_forward.1} parent=1 // pred_check
      _
    $region7: #{rnn_forward.1} parent=1 // pred_check_branch
      %35 = sbr.rel (0) target = $region9
    $region8: #{rnn_forward.1} parent=1 // pred_region
      %s37 = ssub.s32 256, 256
      %38 = vsyncadd [#allocation6], %s37
      %s39 = sshll.u32 [#allocation5], 4
      %s40 = int_to_ptr.vmem [resolvable:$true] %s39
      %45 = dma.hbm_to_vmem [thread:$0]  %s1, 256, %s40, [#allocation6], 128, 128, 8
    $region9: #{rnn_forward.1} parent=1 // pred_fallthru
      _
    // Predicated region
    $region10: #{rnn_forward.1} parent=1 // pred_check
      _
    $region11: #{rnn_forward.1} parent=1 // pred_check_branch
      %47 = sbr.rel (0) target = $region13
    $region12: #{rnn_forward.1} parent=1 // pred_region
      %s49 = ssub.s32 256, 256
      %50 = vsyncadd [#allocation6], %s49
      %s51 = sshll.u32 [#allocation7], 4
      %s52 = int_to_ptr.vmem [resolvable:$true] %s51
      %57 = dma.hbm_to_vmem [thread:$0]  %s2, 256, %s52, [#allocation6], 128, 128, 8
    $region13: #{rnn_forward.1} parent=1 // pred_fallthru
      _
    // Predicated region
    $region14: #{rnn_forward.1} parent=1 // pred_check
      _
    $region15: #{rnn_forward.1} parent=1 // pred_check_branch
      %59 = sbr.rel (0) target = $region17
    $region16: #{rnn_forward.1} parent=1 // pred_region
      _
    $region17: #{rnn_forward.1} parent=1 // pred_fallthru
      _
    // Predicated region
    $region18: #{rnn_forward.1} parent=1 // pred_check
      _
    $region19: #{rnn_forward.1} parent=1 // pred_check_branch
      %61 = sbr.rel (0) target = $region21
    $region20: #{rnn_forward.1} parent=1 // pred_region
      _
    $region21: #{rnn_forward.1} parent=1 // pred_fallthru
      _
    // Predicated region
    $region22: #{rnn_forward.1} parent=1 // pred_check
      _
    $region23: #{rnn_forward.1} parent=1 // pred_check_branch
      %63 = sbr.rel (0) target = $region25
    $region24: #{rnn_forward.1} parent=1 // pred_region
      %s65 = ssub.s32 512, 512
      %66 = vsyncadd [#allocation9], %s65
      %s67 = sshll.u32 [#allocation8], 4
      %s68 = int_to_ptr.vmem [resolvable:$true] %s67
      %73 = dma.hbm_to_vmem [thread:$0]  %s5, 512, %s68, [#allocation9], 128, 128, 8
    $region25: #{rnn_forward.1} parent=1 // pred_fallthru
      _
    // Predicated region
    $region26: #{rnn_forward.1} parent=1 // pred_check
      _
    $region27: #{rnn_forward.1} parent=1 // pred_check_branch
      %75 = sbr.rel (0) target = $region29
    $region28: #{rnn_forward.1} parent=1 // pred_region
      %s77 = ssub.s32 512, 512
      %78 = vsyncadd [#allocation9], %s77
      %s79 = sshll.u32 [#allocation10], 4
      %s80 = int_to_ptr.vmem [resolvable:$true] %s79
      %85 = dma.hbm_to_vmem [thread:$0]  %s6, 512, %s80, [#allocation9], 128, 128, 8
    $region29: #{rnn_forward.1} parent=1 // pred_fallthru
      _
    // Predicated region
    $region30: #{rnn_forward.1} parent=1 // pred_check
      _
    $region31: #{rnn_forward.1} parent=1 // pred_check_branch
      %87 = sbr.rel (0) target = $region33
    $region32: #{rnn_forward.1} parent=1 // pred_region
      _
    $region33: #{rnn_forward.1} parent=1 // pred_fallthru
      _
    // Predicated region
    $region34: #{rnn_forward.1} parent=1 // pred_check
      _
    $region35: #{rnn_forward.1} parent=1 // pred_check_branch
      %89 = sbr.rel (0) target = $region37
    $region36: #{rnn_forward.1} parent=1 // pred_region
      _
    $region37: #{rnn_forward.1} parent=1 // pred_fallthru
      _
    // Predicated region
    $region38: #{rnn_forward.1} parent=1 // pred_check
      _
    $region39: #{rnn_forward.1} parent=1 // pred_check_branch
      %91 = sbr.rel (0) target = $region41
    $region40: #{rnn_forward.1} parent=1 // pred_region
      _
    $region41: #{rnn_forward.1} parent=1 // pred_fallthru
      _
    // Predicated region
    $region42: #{rnn_forward.1} parent=1 // pred_check
      _
    $region43: #{rnn_forward.1} parent=1 // pred_check_branch
      %93 = sbr.rel (0) target = $region45
    $region44: #{rnn_forward.1} parent=1 // pred_region
      %94 = dma.done [#allocation3], 1024
    $region45: #{rnn_forward.1} parent=1 // pred_fallthru
      _
    // Predicated region
    $region46: #{rnn_forward.1} parent=1 // pred_check
      _
    $region47: #{rnn_forward.1} parent=1 // pred_check_branch
      %96 = sbr.rel (0) target = $region49
    $region48: #{rnn_forward.1} parent=1 // pred_region
      %97 = dma.done [#allocation6], 256
    $region49: #{rnn_forward.1} parent=1 // pred_fallthru
      _
    // Predicated region
    $region50: #{rnn_forward.1} parent=1 // pred_check
      _
    $region51: #{rnn_forward.1} parent=1 // pred_check_branch
      %99 = sbr.rel (0) target = $region53
    $region52: #{rnn_forward.1} parent=1 // pred_region
      %100 = dma.done [#allocation6], 256
    $region53: #{rnn_forward.1} parent=1 // pred_fallthru
      _
    // Predicated region
    $region54: #{rnn_forward.1} parent=1 // pred_check
      _
    $region55: #{rnn_forward.1} parent=1 // pred_check_branch
      %102 = sbr.rel (0) target = $region57
    $region56: #{rnn_forward.1} parent=1 // pred_region
      %103 = dma.done [#allocation9], 512
    $region57: #{rnn_forward.1} parent=1 // pred_fallthru
      _
    // Predicated region
    $region58: #{rnn_forward.1} parent=1 // pred_check
      _
    $region59: #{rnn_forward.1} parent=1 // pred_check_branch
      %105 = sbr.rel (0) target = $region61
    $region60: #{rnn_forward.1} parent=1 // pred_region
      %106 = dma.done [#allocation9], 512
    $region61: #{rnn_forward.1} parent=1 // pred_fallthru
      _
    %v107 = vld [vmem:[#allocation7] sm:$0xff]
    %v108 = vld [vmem:[#allocation7 + $0x8] sm:$0xff]
    %v109 = vld [vmem:[%s3] sm:$0xff]
    %v110 = vld [vmem:[%s3 + $0x8] sm:$0xff]
    %v111 = vld [vmem:[%s3 + $0x10] sm:$0xff]
    %v112 = vld [vmem:[%s3 + $0x18] sm:$0xff]
    %v113 = vld [vmem:[%s4] sm:$0x1]
    %v114 = vld [vmem:[#allocation8] sm:$0xff]
    %v115 = vld [vmem:[#allocation8 + $0x8] sm:$0xff]
    %v116 = vld [vmem:[#allocation8 + $0x10] sm:$0xff]
    %v117 = vld [vmem:[#allocation8 + $0x18] sm:$0xff]
    %v118 = vld [vmem:[#allocation10] sm:$0xff]
    %v119 = vld [vmem:[#allocation10 + $0x8] sm:$0xff]
    %v120 = vld [vmem:[#allocation10 + $0x10] sm:$0xff]
    %v121 = vld [vmem:[#allocation10 + $0x18] sm:$0xff]
    %v122 = vld [vmem:[%s7] sm:$0x1]
    %v123 = vld [vmem:[%s8] sm:$0xff]
    %v124 = vld [vmem:[%s8 + $0x8] sm:$0xff]
    %v125 = vld [vmem:[%s8 + $0x10] sm:$0xff]
    %v126 = vld [vmem:[%s8 + $0x18] sm:$0xff]
    %v127 = vld [vmem:[%s9] sm:$0x1]
    %v128 = vld [vmem:[#allocation2] sm:$0xff]
    %v129 = vld [vmem:[#allocation2 + $0x8] sm:$0xff]
    %v130 = vld [vmem:[#allocation2 + $0x10] sm:$0xff]
    %v131 = vld [vmem:[#allocation2 + $0x18] sm:$0xff]
    %v132 = vld [vmem:[#allocation2 + $0x20] sm:$0xff]
    %v133 = vld [vmem:[#allocation2 + $0x28] sm:$0xff]
    %v134 = vld [vmem:[#allocation2 + $0x30] sm:$0xff]
    %v135 = vld [vmem:[#allocation2 + $0x38] sm:$0xff]
    %v137 = vlaneseq
    %v138 = vshrl.u32 %v137, 7
    %v139 = vsub.s32 0, %v138
    %v140 = vrot.slane %v113, %v139
    %vm142 = vcmask 130048
    %v144 = vsel %vm142, %v128, 0
    %v147 = vsel %vm142, %v129, 0
    %v150 = vsel %vm142, %v130, 0
    %v153 = vsel %vm142, %v131, 0
    %v156 = vsel %vm142, %v132, 0
    %v159 = vsel %vm142, %v133, 0
    %v162 = vsel %vm142, %v134, 0
    %v165 = vsel %vm142, %v135, 0
    %167 = vmatprep.subr.mxu0 0.0
    %168 = vmatpush1.msra.mxu0 0.0
    %169 = vmatprep.subr.mxu0 0.0
    %170 = vmatpush1.msra.mxu0 0.0
    %171 = vmatprep.subr.mxu0 0.0
    %172 = vmatpush1.msra.mxu0 0.0
    %173 = vmatprep.subr.mxu0 0.0
    %174 = vmatpush1.msra.mxu0 0.0
    %175 = vmatprep.subr.mxu0 0.0
    %176 = vmatpush1.msra.mxu0 0.0
    %177 = vmatprep.subr.mxu0 0.0
    %178 = vmatpush1.msra.mxu0 0.0
    %179 = vmatprep.subr.mxu0 0.0
    %180 = vmatpush1.msra.mxu0 0.0
    %181 = vmatprep.subr.mxu0 0.0
    %182 = vmatpush1.msra.mxu0 0.0
    %183 = vmatprep.subr.mxu0 0.0
    %184 = vmatpush1.msra.mxu0 0.0
    %185 = vmatprep.subr.mxu0 0.0
    %186 = vmatpush1.msra.mxu0 0.0
    %187 = vmatprep.subr.mxu0 0.0
    %188 = vmatpush1.msra.mxu0 0.0
    %189 = vmatprep.subr.mxu0 0.0
    %190 = vmatpush1.msra.mxu0 0.0
    %191 = vmatprep.subr.mxu0 0.0
    %192 = vmatpush1.msra.mxu0 0.0
    %193 = vmatprep.subr.mxu0 0.0
    %194 = vmatpush1.msra.mxu0 0.0
    %195 = vmatprep.subr.mxu0 0.0
    %196 = vmatpush1.msra.mxu0 %v108
    %197 = vmatprep.subr.mxu0 0.0
    %198 = vmatpush1.msra.mxu0 %v107
    %199 = vmatprep.subr.mxu0 0.0
    %200 = vmatpush2.msra.mxu0 0.0
    %201 = vmatprep.subr.mxu0 0.0
    %202 = vmatpush2.msra.mxu0 0.0
    %203 = vmatprep.subr.mxu0 0.0
    %204 = vmatpush2.msra.mxu0 0.0
    %205 = vmatprep.subr.mxu0 0.0
    %206 = vmatpush2.msra.mxu0 0.0
    %207 = vmatprep.subr.mxu0 0.0
    %208 = vmatpush2.msra.mxu0 0.0
    %209 = vmatprep.subr.mxu0 0.0
    %210 = vmatpush2.msra.mxu0 0.0
    %211 = vmatprep.subr.mxu0 0.0
    %212 = vmatpush2.msra.mxu0 0.0
    %213 = vmatprep.subr.mxu0 0.0
    %214 = vmatpush2.msra.mxu0 0.0
    %215 = vmatprep.subr.mxu0 0.0
    %216 = vmatpush2.msra.mxu0 0.0
    %217 = vmatprep.subr.mxu0 0.0
    %218 = vmatpush2.msra.mxu0 0.0
    %219 = vmatprep.subr.mxu0 0.0
    %220 = vmatpush2.msra.mxu0 0.0
    %221 = vmatprep.subr.mxu0 0.0
    %222 = vmatpush2.msra.mxu0 0.0
    %223 = vmatprep.subr.mxu0 0.0
    %224 = vmatpush2.msra.mxu0 0.0
    %225 = vmatprep.subr.mxu0 0.0
    %226 = vmatpush2.msra.mxu0 0.0
    %227 = vmatprep.subr.mxu0 0.0
    %228 = vmatpush2.msra.mxu0 0.0
    %229 = vmatprep.subr.mxu0 0.0
    %230 = vmatpush2.msra.mxu0 0.0
    %231 = vmatprep.mubr.f32.mxu0 0.0
    %232 = vmatmul.mubr.f32.gmra.mxu0 %v144
    %v233 = vpop.f32.mrf.mxu0
    %v234 = vadd.f32 %v140, %v233
    %v235 = vpop.f32.mrf.mxu0
    %236 = vmatprep.mubr.f32.mxu0 0.0
    %237 = vmatmul.mubr.f32.gmra.mxu0 %v147
    %v238 = vpop.f32.mrf.mxu0
    %v239 = vadd.f32 %v140, %v238
    %v240 = vpop.f32.mrf.mxu0
    %241 = vmatprep.mubr.f32.mxu0 0.0
    %242 = vmatmul.mubr.f32.gmra.mxu0 %v150
    %v243 = vpop.f32.mrf.mxu0
    %v244 = vadd.f32 %v140, %v243
    %v245 = vpop.f32.mrf.mxu0
    %246 = vmatprep.mubr.f32.mxu0 0.0
    %247 = vmatmul.mubr.f32.gmra.mxu0 %v153
    %v248 = vpop.f32.mrf.mxu0
    %v249 = vadd.f32 %v140, %v248
    %v250 = vpop.f32.mrf.mxu0
    %251 = vmatprep.mubr.f32.mxu0 0.0
    %252 = vmatmul.mubr.f32.gmra.mxu0 %v156
    %v253 = vpop.f32.mrf.mxu0
    %v254 = vadd.f32 %v140, %v253
    %v255 = vpop.f32.mrf.mxu0
    %256 = vmatprep.mubr.f32.mxu0 0.0
    %257 = vmatmul.mubr.f32.gmra.mxu0 %v159
    %v258 = vpop.f32.mrf.mxu0
    %v259 = vadd.f32 %v140, %v258
    %v260 = vpop.f32.mrf.mxu0
    %261 = vmatprep.mubr.f32.mxu0 0.0
    %262 = vmatmul.mubr.f32.gmra.mxu0 %v162
    %v263 = vpop.f32.mrf.mxu0
    %v264 = vadd.f32 %v140, %v263
    %v265 = vpop.f32.mrf.mxu0
    %266 = vmatprep.mubr.f32.mxu0 0.0
    %267 = vmatmul.mubr.f32.gmra.mxu0 %v165
    %v268 = vpop.f32.mrf.mxu0
    %v269 = vadd.f32 %v140, %v268
    %v270 = vpop.f32.mrf.mxu0
    %271 = vdwg.mxu0
    %v273 = vlaneseq
    %v274 = vshrl.u32 %v273, 7
    %v275 = vsub.s32 0, %v274
    %v276 = vrot.slane %v122, %v275
    %v278 = vld [vmem:[#allocation5] sm:$0xff]
    %s279 = scalar_lea.vmem [#allocation5], 8
    %v280 = vld [vmem:[%s279] sm:$0xff]
    %vm281 = vcmask 261120
    %v283 = vsel %vm281, %v278, 0
    %285 = vmatprep.subr.mxu0 0.0
    %286 = vmatpush1.msra.mxu0 0.0
    %287 = vmatprep.subr.mxu0 0.0
    %288 = vmatpush1.msra.mxu0 0.0
    %289 = vmatprep.subr.mxu0 0.0
    %290 = vmatpush1.msra.mxu0 0.0
    %291 = vmatprep.subr.mxu0 0.0
    %292 = vmatpush1.msra.mxu0 0.0
    %293 = vmatprep.subr.mxu0 0.0
    %294 = vmatpush1.msra.mxu0 0.0
    %295 = vmatprep.subr.mxu0 0.0
    %296 = vmatpush1.msra.mxu0 0.0
    %297 = vmatprep.subr.mxu0 0.0
    %298 = vmatpush1.msra.mxu0 0.0
    %299 = vmatprep.subr.mxu0 0.0
    %300 = vmatpush1.msra.mxu0 0.0
    %301 = vmatprep.subr.mxu0 0.0
    %302 = vmatpush1.msra.mxu0 0.0
    %303 = vmatprep.subr.mxu0 0.0
    %304 = vmatpush1.msra.mxu0 0.0
    %305 = vmatprep.subr.mxu0 0.0
    %306 = vmatpush1.msra.mxu0 0.0
    %307 = vmatprep.subr.mxu0 0.0
    %308 = vmatpush1.msra.mxu0 0.0
    %309 = vmatprep.subr.mxu0 0.0
    %310 = vmatpush1.msra.mxu0 %v112
    %311 = vmatprep.subr.mxu0 0.0
    %312 = vmatpush1.msra.mxu0 %v111
    %313 = vmatprep.subr.mxu0 0.0
    %314 = vmatpush1.msra.mxu0 %v110
    %315 = vmatprep.subr.mxu0 0.0
    %316 = vmatpush1.msra.mxu0 %v109
    %317 = vmatprep.subr.mxu0 0.0
    %318 = vmatpush2.msra.mxu0 0.0
    %319 = vmatprep.subr.mxu0 0.0
    %320 = vmatpush2.msra.mxu0 0.0
    %321 = vmatprep.subr.mxu0 0.0
    %322 = vmatpush2.msra.mxu0 0.0
    %323 = vmatprep.subr.mxu0 0.0
    %324 = vmatpush2.msra.mxu0 0.0
    %325 = vmatprep.subr.mxu0 0.0
    %326 = vmatpush2.msra.mxu0 0.0
    %327 = vmatprep.subr.mxu0 0.0
    %328 = vmatpush2.msra.mxu0 0.0
    %329 = vmatprep.subr.mxu0 0.0
    %330 = vmatpush2.msra.mxu0 0.0
    %331 = vmatprep.subr.mxu0 0.0
    %332 = vmatpush2.msra.mxu0 0.0
    %333 = vmatprep.subr.mxu0 0.0
    %334 = vmatpush2.msra.mxu0 0.0
    %335 = vmatprep.subr.mxu0 0.0
    %336 = vmatpush2.msra.mxu0 0.0
    %337 = vmatprep.subr.mxu0 0.0
    %338 = vmatpush2.msra.mxu0 0.0
    %339 = vmatprep.subr.mxu0 0.0
    %340 = vmatpush2.msra.mxu0 0.0
    %341 = vmatprep.subr.mxu0 0.0
    %342 = vmatpush2.msra.mxu0 0.0
    %343 = vmatprep.subr.mxu0 0.0
    %344 = vmatpush2.msra.mxu0 0.0
    %345 = vmatprep.subr.mxu0 0.0
    %346 = vmatpush2.msra.mxu0 0.0
    %347 = vmatprep.subr.mxu0 0.0
    %348 = vmatpush2.msra.mxu0 0.0
    %349 = vmatprep.mubr.f32.mxu0 0.0
    %350 = vmatmul.mubr.f32.gmra.mxu0 %v283
    %v351 = vpop.f32.mrf.mxu0
    %v352 = vadd.f32 0.0, %v351
    %v353 = vpop.f32.mrf.mxu0
    %354 = vdwg.mxu0
    %v356 = vrot.slane %v352, 1
    %v357 = vrot.slane %v352, 2
    %v358 = vrot.slane %v352, 3
    %v359 = vrot.slane %v352, 4
    %v360 = vrot.slane %v352, 5
    %v361 = vrot.slane %v352, 6
    %v362 = vrot.slane %v352, 7
    %v371 = vadd.f32 %v234, %v352
    %v372 = vadd.f32 %v239, %v356
    %v373 = vadd.f32 %v244, %v357
    %v374 = vadd.f32 %v249, %v358
    %v375 = vadd.f32 %v254, %v359
    %v376 = vadd.f32 %v259, %v360
    %v377 = vadd.f32 %v264, %v361
    %v378 = vadd.f32 %v269, %v362
    %v379 = vtanh.pop %v371
    %v380 = vtanh.pop %v372
    %v381 = vtanh.pop %v373
    %v382 = vtanh.pop %v374
    %v383 = vtanh.pop %v375
    %v384 = vtanh.pop %v376
    %v385 = vtanh.pop %v377
    %v386 = vtanh.pop %v378
    %v388 = vsel %vm281, %v280, 0
    %390 = vmatprep.subr.mxu0 0.0
    %391 = vmatpush1.msra.mxu0 0.0
    %392 = vmatprep.subr.mxu0 0.0
    %393 = vmatpush1.msra.mxu0 0.0
    %394 = vmatprep.subr.mxu0 0.0
    %395 = vmatpush1.msra.mxu0 0.0
    %396 = vmatprep.subr.mxu0 0.0
    %397 = vmatpush1.msra.mxu0 0.0
    %398 = vmatprep.subr.mxu0 0.0
    %399 = vmatpush1.msra.mxu0 0.0
    %400 = vmatprep.subr.mxu0 0.0
    %401 = vmatpush1.msra.mxu0 0.0
    %402 = vmatprep.subr.mxu0 0.0
    %403 = vmatpush1.msra.mxu0 0.0
    %404 = vmatprep.subr.mxu0 0.0
    %405 = vmatpush1.msra.mxu0 0.0
    %406 = vmatprep.subr.mxu0 0.0
    %407 = vmatpush1.msra.mxu0 0.0
    %408 = vmatprep.subr.mxu0 0.0
    %409 = vmatpush1.msra.mxu0 0.0
    %410 = vmatprep.subr.mxu0 0.0
    %411 = vmatpush1.msra.mxu0 0.0
    %412 = vmatprep.subr.mxu0 0.0
    %413 = vmatpush1.msra.mxu0 0.0
    %414 = vmatprep.subr.mxu0 0.0
    %415 = vmatpush1.msra.mxu0 %v121
    %416 = vmatprep.subr.mxu0 0.0
    %417 = vmatpush1.msra.mxu0 %v120
    %418 = vmatprep.subr.mxu0 0.0
    %419 = vmatpush1.msra.mxu0 %v119
    %420 = vmatprep.subr.mxu0 0.0
    %421 = vmatpush1.msra.mxu0 %v118
    %422 = vmatprep.subr.mxu0 0.0
    %423 = vmatpush2.msra.mxu0 0.0
    %424 = vmatprep.subr.mxu0 0.0
    %425 = vmatpush2.msra.mxu0 0.0
    %426 = vmatprep.subr.mxu0 0.0
    %427 = vmatpush2.msra.mxu0 0.0
    %428 = vmatprep.subr.mxu0 0.0
    %429 = vmatpush2.msra.mxu0 0.0
    %430 = vmatprep.subr.mxu0 0.0
    %431 = vmatpush2.msra.mxu0 0.0
    %432 = vmatprep.subr.mxu0 0.0
    %433 = vmatpush2.msra.mxu0 0.0
    %434 = vmatprep.subr.mxu0 0.0
    %435 = vmatpush2.msra.mxu0 0.0
    %436 = vmatprep.subr.mxu0 0.0
    %437 = vmatpush2.msra.mxu0 0.0
    %438 = vmatprep.subr.mxu0 0.0
    %439 = vmatpush2.msra.mxu0 0.0
    %440 = vmatprep.subr.mxu0 0.0
    %441 = vmatpush2.msra.mxu0 0.0
    %442 = vmatprep.subr.mxu0 0.0
    %443 = vmatpush2.msra.mxu0 0.0
    %444 = vmatprep.subr.mxu0 0.0
    %445 = vmatpush2.msra.mxu0 0.0
    %446 = vmatprep.subr.mxu0 0.0
    %447 = vmatpush2.msra.mxu0 0.0
    %448 = vmatprep.subr.mxu0 0.0
    %449 = vmatpush2.msra.mxu0 0.0
    %450 = vmatprep.subr.mxu0 0.0
    %451 = vmatpush2.msra.mxu0 0.0
    %452 = vmatprep.subr.mxu0 0.0
    %453 = vmatpush2.msra.mxu0 0.0
    %454 = vmatprep.mubr.f32.mxu0 0.0
    %455 = vmatmul.mubr.f32.gmra.mxu0 %v388
    %v456 = vpop.f32.mrf.mxu0
    %v457 = vadd.f32 0.0, %v456
    %v458 = vpop.f32.mrf.mxu0
    %459 = vdwg.mxu0
    %v468 = vrot.slane %v380, 7
    %vm469 = vcmask 1041409
    %v470 = vsel %vm469, %v468, %v379
    %v471 = vrot.slane %v381, 6
    %vm472 = vcmask 1042434
    %v473 = vsel %vm472, %v471, %v470
    %v474 = vrot.slane %v382, 5
    %vm475 = vcmask 1043459
    %v476 = vsel %vm475, %v474, %v473
    %v477 = vrot.slane %v383, 4
    %vm478 = vcmask 1044484
    %v479 = vsel %vm478, %v477, %v476
    %v480 = vrot.slane %v384, 3
    %vm481 = vcmask 1045509
    %v482 = vsel %vm481, %v480, %v479
    %v483 = vrot.slane %v385, 2
    %vm484 = vcmask 1046534
    %v485 = vsel %vm484, %v483, %v482
    %v486 = vrot.slane %v386, 1
    %vm487 = vcmask 1047559
    %v488 = vsel %vm487, %v486, %v485
    %v489 = vsel %vm281, %v488, 0
    %491 = vmatprep.subr.mxu0 0.0
    %492 = vmatpush1.msra.mxu0 0.0
    %493 = vmatprep.subr.mxu0 0.0
    %494 = vmatpush1.msra.mxu0 0.0
    %495 = vmatprep.subr.mxu0 0.0
    %496 = vmatpush1.msra.mxu0 0.0
    %497 = vmatprep.subr.mxu0 0.0
    %498 = vmatpush1.msra.mxu0 0.0
    %499 = vmatprep.subr.mxu0 0.0
    %500 = vmatpush1.msra.mxu0 0.0
    %501 = vmatprep.subr.mxu0 0.0
    %502 = vmatpush1.msra.mxu0 0.0
    %503 = vmatprep.subr.mxu0 0.0
    %504 = vmatpush1.msra.mxu0 0.0
    %505 = vmatprep.subr.mxu0 0.0
    %506 = vmatpush1.msra.mxu0 0.0
    %507 = vmatprep.subr.mxu0 0.0
    %508 = vmatpush1.msra.mxu0 0.0
    %509 = vmatprep.subr.mxu0 0.0
    %510 = vmatpush1.msra.mxu0 0.0
    %511 = vmatprep.subr.mxu0 0.0
    %512 = vmatpush1.msra.mxu0 0.0
    %513 = vmatprep.subr.mxu0 0.0
    %514 = vmatpush1.msra.mxu0 0.0
    %515 = vmatprep.subr.mxu0 0.0
    %516 = vmatpush1.msra.mxu0 %v117
    %517 = vmatprep.subr.mxu0 0.0
    %518 = vmatpush1.msra.mxu0 %v116
    %519 = vmatprep.subr.mxu0 0.0
    %520 = vmatpush1.msra.mxu0 %v115
    %521 = vmatprep.subr.mxu0 0.0
    %522 = vmatpush1.msra.mxu0 %v114
    %523 = vmatprep.subr.mxu0 0.0
    %524 = vmatpush2.msra.mxu0 0.0
    %525 = vmatprep.subr.mxu0 0.0
    %526 = vmatpush2.msra.mxu0 0.0
    %527 = vmatprep.subr.mxu0 0.0
    %528 = vmatpush2.msra.mxu0 0.0
    %529 = vmatprep.subr.mxu0 0.0
    %530 = vmatpush2.msra.mxu0 0.0
    %531 = vmatprep.subr.mxu0 0.0
    %532 = vmatpush2.msra.mxu0 0.0
    %533 = vmatprep.subr.mxu0 0.0
    %534 = vmatpush2.msra.mxu0 0.0
    %535 = vmatprep.subr.mxu0 0.0
    %536 = vmatpush2.msra.mxu0 0.0
    %537 = vmatprep.subr.mxu0 0.0
    %538 = vmatpush2.msra.mxu0 0.0
    %539 = vmatprep.subr.mxu0 0.0
    %540 = vmatpush2.msra.mxu0 0.0
    %541 = vmatprep.subr.mxu0 0.0
    %542 = vmatpush2.msra.mxu0 0.0
    %543 = vmatprep.subr.mxu0 0.0
    %544 = vmatpush2.msra.mxu0 0.0
    %545 = vmatprep.subr.mxu0 0.0
    %546 = vmatpush2.msra.mxu0 0.0
    %547 = vmatprep.subr.mxu0 0.0
    %548 = vmatpush2.msra.mxu0 0.0
    %549 = vmatprep.subr.mxu0 0.0
    %550 = vmatpush2.msra.mxu0 0.0
    %551 = vmatprep.subr.mxu0 0.0
    %552 = vmatpush2.msra.mxu0 0.0
    %553 = vmatprep.subr.mxu0 0.0
    %554 = vmatpush2.msra.mxu0 0.0
    %555 = vmatprep.mubr.f32.mxu0 0.0
    %556 = vmatmul.mubr.f32.gmra.mxu0 %v489
    %v557 = vpop.f32.mrf.mxu0
    %v558 = vadd.f32 %v457, %v557
    %v559 = vpop.f32.mrf.mxu0
    %560 = vdwg.mxu0
    %v561 = vadd.f32 %v558, %v276
    %v562 = vtanh.pop %v561
    %563 = vmatprep.subr.mxu0 0.0
    %564 = vmatpush1.msra.mxu0 0.0
    %565 = vmatprep.subr.mxu0 0.0
    %566 = vmatpush1.msra.mxu0 0.0
    %567 = vmatprep.subr.mxu0 0.0
    %568 = vmatpush1.msra.mxu0 0.0
    %569 = vmatprep.subr.mxu0 0.0
    %570 = vmatpush1.msra.mxu0 0.0
    %571 = vmatprep.subr.mxu0 0.0
    %572 = vmatpush1.msra.mxu0 0.0
    %573 = vmatprep.subr.mxu0 0.0
    %574 = vmatpush1.msra.mxu0 0.0
    %575 = vmatprep.subr.mxu0 0.0
    %576 = vmatpush1.msra.mxu0 0.0
    %577 = vmatprep.subr.mxu0 0.0
    %578 = vmatpush1.msra.mxu0 0.0
    %579 = vmatprep.subr.mxu0 0.0
    %580 = vmatpush1.msra.mxu0 0.0
    %581 = vmatprep.subr.mxu0 0.0
    %582 = vmatpush1.msra.mxu0 0.0
    %583 = vmatprep.subr.mxu0 0.0
    %584 = vmatpush1.msra.mxu0 0.0
    %585 = vmatprep.subr.mxu0 0.0
    %586 = vmatpush1.msra.mxu0 0.0
    %587 = vmatprep.subr.mxu0 0.0
    %588 = vmatpush1.msra.mxu0 %v112
    %589 = vmatprep.subr.mxu0 0.0
    %590 = vmatpush1.msra.mxu0 %v111
    %591 = vmatprep.subr.mxu0 0.0
    %592 = vmatpush1.msra.mxu0 %v110
    %593 = vmatprep.subr.mxu0 0.0
    %594 = vmatpush1.msra.mxu0 %v109
    %595 = vmatprep.subr.mxu0 0.0
    %596 = vmatpush2.msra.mxu0 0.0
    %597 = vmatprep.subr.mxu0 0.0
    %598 = vmatpush2.msra.mxu0 0.0
    %599 = vmatprep.subr.mxu0 0.0
    %600 = vmatpush2.msra.mxu0 0.0
    %601 = vmatprep.subr.mxu0 0.0
    %602 = vmatpush2.msra.mxu0 0.0
    %603 = vmatprep.subr.mxu0 0.0
    %604 = vmatpush2.msra.mxu0 0.0
    %605 = vmatprep.subr.mxu0 0.0
    %606 = vmatpush2.msra.mxu0 0.0
    %607 = vmatprep.subr.mxu0 0.0
    %608 = vmatpush2.msra.mxu0 0.0
    %609 = vmatprep.subr.mxu0 0.0
    %610 = vmatpush2.msra.mxu0 0.0
    %611 = vmatprep.subr.mxu0 0.0
    %612 = vmatpush2.msra.mxu0 0.0
    %613 = vmatprep.subr.mxu0 0.0
    %614 = vmatpush2.msra.mxu0 0.0
    %615 = vmatprep.subr.mxu0 0.0
    %616 = vmatpush2.msra.mxu0 0.0
    %617 = vmatprep.subr.mxu0 0.0
    %618 = vmatpush2.msra.mxu0 0.0
    %619 = vmatprep.subr.mxu0 0.0
    %620 = vmatpush2.msra.mxu0 0.0
    %621 = vmatprep.subr.mxu0 0.0
    %622 = vmatpush2.msra.mxu0 0.0
    %623 = vmatprep.subr.mxu0 0.0
    %624 = vmatpush2.msra.mxu0 0.0
    %625 = vmatprep.subr.mxu0 0.0
    %626 = vmatpush2.msra.mxu0 0.0
    %627 = vmatprep.mubr.f32.mxu0 0.0
    %628 = vmatmul.mubr.f32.gmra.mxu0 %v489
    %v629 = vpop.f32.mrf.mxu0
    %v630 = vadd.f32 0.0, %v629
    %v631 = vpop.f32.mrf.mxu0
    %632 = vdwg.mxu0
    %v634 = vrot.slane %v630, 7
    %v635 = vrot.slane %v630, 1
    %v636 = vrot.slane %v630, 2
    %v637 = vrot.slane %v630, 3
    %v638 = vrot.slane %v630, 4
    %v639 = vrot.slane %v630, 5
    %v640 = vrot.slane %v630, 6
    %v649 = vadd.f32 %v234, %v634
    %v650 = vadd.f32 %v239, %v630
    %v651 = vadd.f32 %v244, %v635
    %v652 = vadd.f32 %v249, %v636
    %v653 = vadd.f32 %v254, %v637
    %v654 = vadd.f32 %v259, %v638
    %v655 = vadd.f32 %v264, %v639
    %v656 = vadd.f32 %v269, %v640
    %v657 = vtanh.pop %v649
    %v658 = vtanh.pop %v650
    %v659 = vtanh.pop %v651
    %v660 = vtanh.pop %v652
    %v661 = vtanh.pop %v653
    %v662 = vtanh.pop %v654
    %v663 = vtanh.pop %v655
    %v664 = vtanh.pop %v656
    %v666 = vsel %vm281, %v562, 0
    %668 = vmatprep.subr.mxu0 0.0
    %669 = vmatpush1.msra.mxu0 0.0
    %670 = vmatprep.subr.mxu0 0.0
    %671 = vmatpush1.msra.mxu0 0.0
    %672 = vmatprep.subr.mxu0 0.0
    %673 = vmatpush1.msra.mxu0 0.0
    %674 = vmatprep.subr.mxu0 0.0
    %675 = vmatpush1.msra.mxu0 0.0
    %676 = vmatprep.subr.mxu0 0.0
    %677 = vmatpush1.msra.mxu0 0.0
    %678 = vmatprep.subr.mxu0 0.0
    %679 = vmatpush1.msra.mxu0 0.0
    %680 = vmatprep.subr.mxu0 0.0
    %681 = vmatpush1.msra.mxu0 0.0
    %682 = vmatprep.subr.mxu0 0.0
    %683 = vmatpush1.msra.mxu0 0.0
    %684 = vmatprep.subr.mxu0 0.0
    %685 = vmatpush1.msra.mxu0 0.0
    %686 = vmatprep.subr.mxu0 0.0
    %687 = vmatpush1.msra.mxu0 0.0
    %688 = vmatprep.subr.mxu0 0.0
    %689 = vmatpush1.msra.mxu0 0.0
    %690 = vmatprep.subr.mxu0 0.0
    %691 = vmatpush1.msra.mxu0 0.0
    %692 = vmatprep.subr.mxu0 0.0
    %693 = vmatpush1.msra.mxu0 %v121
    %694 = vmatprep.subr.mxu0 0.0
    %695 = vmatpush1.msra.mxu0 %v120
    %696 = vmatprep.subr.mxu0 0.0
    %697 = vmatpush1.msra.mxu0 %v119
    %698 = vmatprep.subr.mxu0 0.0
    %699 = vmatpush1.msra.mxu0 %v118
    %700 = vmatprep.subr.mxu0 0.0
    %701 = vmatpush2.msra.mxu0 0.0
    %702 = vmatprep.subr.mxu0 0.0
    %703 = vmatpush2.msra.mxu0 0.0
    %704 = vmatprep.subr.mxu0 0.0
    %705 = vmatpush2.msra.mxu0 0.0
    %706 = vmatprep.subr.mxu0 0.0
    %707 = vmatpush2.msra.mxu0 0.0
    %708 = vmatprep.subr.mxu0 0.0
    %709 = vmatpush2.msra.mxu0 0.0
    %710 = vmatprep.subr.mxu0 0.0
    %711 = vmatpush2.msra.mxu0 0.0
    %712 = vmatprep.subr.mxu0 0.0
    %713 = vmatpush2.msra.mxu0 0.0
    %714 = vmatprep.subr.mxu0 0.0
    %715 = vmatpush2.msra.mxu0 0.0
    %716 = vmatprep.subr.mxu0 0.0
    %717 = vmatpush2.msra.mxu0 0.0
    %718 = vmatprep.subr.mxu0 0.0
    %719 = vmatpush2.msra.mxu0 0.0
    %720 = vmatprep.subr.mxu0 0.0
    %721 = vmatpush2.msra.mxu0 0.0
    %722 = vmatprep.subr.mxu0 0.0
    %723 = vmatpush2.msra.mxu0 0.0
    %724 = vmatprep.subr.mxu0 0.0
    %725 = vmatpush2.msra.mxu0 0.0
    %726 = vmatprep.subr.mxu0 0.0
    %727 = vmatpush2.msra.mxu0 0.0
    %728 = vmatprep.subr.mxu0 0.0
    %729 = vmatpush2.msra.mxu0 0.0
    %730 = vmatprep.subr.mxu0 0.0
    %731 = vmatpush2.msra.mxu0 0.0
    %732 = vmatprep.mubr.f32.mxu0 0.0
    %733 = vmatmul.mubr.f32.gmra.mxu0 %v666
    %v734 = vpop.f32.mrf.mxu0
    %v735 = vadd.f32 0.0, %v734
    %v736 = vpop.f32.mrf.mxu0
    %737 = vdwg.mxu0
    %v746 = vrot.slane %v657, 1
    %v747 = vsel %vm469, %v658, %v746
    %v748 = vrot.slane %v659, 7
    %v749 = vsel %vm472, %v748, %v747
    %v750 = vrot.slane %v660, 6
    %v751 = vsel %vm475, %v750, %v749
    %v752 = vrot.slane %v661, 5
    %v753 = vsel %vm478, %v752, %v751
    %v754 = vrot.slane %v662, 4
    %v755 = vsel %vm481, %v754, %v753
    %v756 = vrot.slane %v663, 3
    %v757 = vsel %vm484, %v756, %v755
    %v758 = vrot.slane %v664, 2
    %v759 = vsel %vm487, %v758, %v757
    %v760 = vsel %vm281, %v759, 0
    %762 = vmatprep.subr.mxu0 0.0
    %763 = vmatpush1.msra.mxu0 0.0
    %764 = vmatprep.subr.mxu0 0.0
    %765 = vmatpush1.msra.mxu0 0.0
    %766 = vmatprep.subr.mxu0 0.0
    %767 = vmatpush1.msra.mxu0 0.0
    %768 = vmatprep.subr.mxu0 0.0
    %769 = vmatpush1.msra.mxu0 0.0
    %770 = vmatprep.subr.mxu0 0.0
    %771 = vmatpush1.msra.mxu0 0.0
    %772 = vmatprep.subr.mxu0 0.0
    %773 = vmatpush1.msra.mxu0 0.0
    %774 = vmatprep.subr.mxu0 0.0
    %775 = vmatpush1.msra.mxu0 0.0
    %776 = vmatprep.subr.mxu0 0.0
    %777 = vmatpush1.msra.mxu0 0.0
    %778 = vmatprep.subr.mxu0 0.0
    %779 = vmatpush1.msra.mxu0 0.0
    %780 = vmatprep.subr.mxu0 0.0
    %781 = vmatpush1.msra.mxu0 0.0
    %782 = vmatprep.subr.mxu0 0.0
    %783 = vmatpush1.msra.mxu0 0.0
    %784 = vmatprep.subr.mxu0 0.0
    %785 = vmatpush1.msra.mxu0 0.0
    %786 = vmatprep.subr.mxu0 0.0
    %787 = vmatpush1.msra.mxu0 %v117
    %788 = vmatprep.subr.mxu0 0.0
    %789 = vmatpush1.msra.mxu0 %v116
    %790 = vmatprep.subr.mxu0 0.0
    %791 = vmatpush1.msra.mxu0 %v115
    %792 = vmatprep.subr.mxu0 0.0
    %793 = vmatpush1.msra.mxu0 %v114
    %794 = vmatprep.subr.mxu0 0.0
    %795 = vmatpush2.msra.mxu0 0.0
    %796 = vmatprep.subr.mxu0 0.0
    %797 = vmatpush2.msra.mxu0 0.0
    %798 = vmatprep.subr.mxu0 0.0
    %799 = vmatpush2.msra.mxu0 0.0
    %800 = vmatprep.subr.mxu0 0.0
    %801 = vmatpush2.msra.mxu0 0.0
    %802 = vmatprep.subr.mxu0 0.0
    %803 = vmatpush2.msra.mxu0 0.0
    %804 = vmatprep.subr.mxu0 0.0
    %805 = vmatpush2.msra.mxu0 0.0
    %806 = vmatprep.subr.mxu0 0.0
    %807 = vmatpush2.msra.mxu0 0.0
    %808 = vmatprep.subr.mxu0 0.0
    %809 = vmatpush2.msra.mxu0 0.0
    %810 = vmatprep.subr.mxu0 0.0
    %811 = vmatpush2.msra.mxu0 0.0
    %812 = vmatprep.subr.mxu0 0.0
    %813 = vmatpush2.msra.mxu0 0.0
    %814 = vmatprep.subr.mxu0 0.0
    %815 = vmatpush2.msra.mxu0 0.0
    %816 = vmatprep.subr.mxu0 0.0
    %817 = vmatpush2.msra.mxu0 0.0
    %818 = vmatprep.subr.mxu0 0.0
    %819 = vmatpush2.msra.mxu0 0.0
    %820 = vmatprep.subr.mxu0 0.0
    %821 = vmatpush2.msra.mxu0 0.0
    %822 = vmatprep.subr.mxu0 0.0
    %823 = vmatpush2.msra.mxu0 0.0
    %824 = vmatprep.subr.mxu0 0.0
    %825 = vmatpush2.msra.mxu0 0.0
    %826 = vmatprep.mubr.f32.mxu0 0.0
    %827 = vmatmul.mubr.f32.gmra.mxu0 %v760
    %v828 = vpop.f32.mrf.mxu0
    %v829 = vadd.f32 %v735, %v828
    %v830 = vpop.f32.mrf.mxu0
    %831 = vdwg.mxu0
    %v832 = vadd.f32 %v829, %v276
    %v833 = vtanh.pop %v832
    %834 = vmatprep.subr.mxu0 0.0
    %835 = vmatpush1.msra.mxu0 0.0
    %836 = vmatprep.subr.mxu0 0.0
    %837 = vmatpush1.msra.mxu0 0.0
    %838 = vmatprep.subr.mxu0 0.0
    %839 = vmatpush1.msra.mxu0 0.0
    %840 = vmatprep.subr.mxu0 0.0
    %841 = vmatpush1.msra.mxu0 0.0
    %842 = vmatprep.subr.mxu0 0.0
    %843 = vmatpush1.msra.mxu0 0.0
    %844 = vmatprep.subr.mxu0 0.0
    %845 = vmatpush1.msra.mxu0 0.0
    %846 = vmatprep.subr.mxu0 0.0
    %847 = vmatpush1.msra.mxu0 0.0
    %848 = vmatprep.subr.mxu0 0.0
    %849 = vmatpush1.msra.mxu0 0.0
    %850 = vmatprep.subr.mxu0 0.0
    %851 = vmatpush1.msra.mxu0 0.0
    %852 = vmatprep.subr.mxu0 0.0
    %853 = vmatpush1.msra.mxu0 0.0
    %854 = vmatprep.subr.mxu0 0.0
    %855 = vmatpush1.msra.mxu0 0.0
    %856 = vmatprep.subr.mxu0 0.0
    %857 = vmatpush1.msra.mxu0 0.0
    %858 = vmatprep.subr.mxu0 0.0
    %859 = vmatpush1.msra.mxu0 %v112
    %860 = vmatprep.subr.mxu0 0.0
    %861 = vmatpush1.msra.mxu0 %v111
    %862 = vmatprep.subr.mxu0 0.0
    %863 = vmatpush1.msra.mxu0 %v110
    %864 = vmatprep.subr.mxu0 0.0
    %865 = vmatpush1.msra.mxu0 %v109
    %866 = vmatprep.subr.mxu0 0.0
    %867 = vmatpush2.msra.mxu0 0.0
    %868 = vmatprep.subr.mxu0 0.0
    %869 = vmatpush2.msra.mxu0 0.0
    %870 = vmatprep.subr.mxu0 0.0
    %871 = vmatpush2.msra.mxu0 0.0
    %872 = vmatprep.subr.mxu0 0.0
    %873 = vmatpush2.msra.mxu0 0.0
    %874 = vmatprep.subr.mxu0 0.0
    %875 = vmatpush2.msra.mxu0 0.0
    %876 = vmatprep.subr.mxu0 0.0
    %877 = vmatpush2.msra.mxu0 0.0
    %878 = vmatprep.subr.mxu0 0.0
    %879 = vmatpush2.msra.mxu0 0.0
    %880 = vmatprep.subr.mxu0 0.0
    %881 = vmatpush2.msra.mxu0 0.0
    %882 = vmatprep.subr.mxu0 0.0
    %883 = vmatpush2.msra.mxu0 0.0
    %884 = vmatprep.subr.mxu0 0.0
    %885 = vmatpush2.msra.mxu0 0.0
    %886 = vmatprep.subr.mxu0 0.0
    %887 = vmatpush2.msra.mxu0 0.0
    %888 = vmatprep.subr.mxu0 0.0
    %889 = vmatpush2.msra.mxu0 0.0
    %890 = vmatprep.subr.mxu0 0.0
    %891 = vmatpush2.msra.mxu0 0.0
    %892 = vmatprep.subr.mxu0 0.0
    %893 = vmatpush2.msra.mxu0 0.0
    %894 = vmatprep.subr.mxu0 0.0
    %895 = vmatpush2.msra.mxu0 0.0
    %896 = vmatprep.subr.mxu0 0.0
    %897 = vmatpush2.msra.mxu0 0.0
    %898 = vmatprep.mubr.f32.mxu0 0.0
    %899 = vmatmul.mubr.f32.gmra.mxu0 %v760
    %v900 = vpop.f32.mrf.mxu0
    %v901 = vadd.f32 0.0, %v900
    %v902 = vpop.f32.mrf.mxu0
    %903 = vdwg.mxu0
    %v905 = vrot.slane %v901, 6
    %v906 = vrot.slane %v901, 7
    %v907 = vrot.slane %v901, 1
    %v908 = vrot.slane %v901, 2
    %v909 = vrot.slane %v901, 3
    %v910 = vrot.slane %v901, 4
    %v911 = vrot.slane %v901, 5
    %v920 = vadd.f32 %v234, %v905
    %v921 = vadd.f32 %v239, %v906
    %v922 = vadd.f32 %v244, %v901
    %v923 = vadd.f32 %v249, %v907
    %v924 = vadd.f32 %v254, %v908
    %v925 = vadd.f32 %v259, %v909
    %v926 = vadd.f32 %v264, %v910
    %v927 = vadd.f32 %v269, %v911
    %v928 = vtanh.pop %v920
    %v929 = vtanh.pop %v921
    %v930 = vtanh.pop %v922
    %v931 = vtanh.pop %v923
    %v932 = vtanh.pop %v924
    %v933 = vtanh.pop %v925
    %v934 = vtanh.pop %v926
    %v935 = vtanh.pop %v927
    %v937 = vsel %vm281, %v833, 0
    %939 = vmatprep.subr.mxu0 0.0
    %940 = vmatpush1.msra.mxu0 0.0
    %941 = vmatprep.subr.mxu0 0.0
    %942 = vmatpush1.msra.mxu0 0.0
    %943 = vmatprep.subr.mxu0 0.0
    %944 = vmatpush1.msra.mxu0 0.0
    %945 = vmatprep.subr.mxu0 0.0
    %946 = vmatpush1.msra.mxu0 0.0
    %947 = vmatprep.subr.mxu0 0.0
    %948 = vmatpush1.msra.mxu0 0.0
    %949 = vmatprep.subr.mxu0 0.0
    %950 = vmatpush1.msra.mxu0 0.0
    %951 = vmatprep.subr.mxu0 0.0
    %952 = vmatpush1.msra.mxu0 0.0
    %953 = vmatprep.subr.mxu0 0.0
    %954 = vmatpush1.msra.mxu0 0.0
    %955 = vmatprep.subr.mxu0 0.0
    %956 = vmatpush1.msra.mxu0 0.0
    %957 = vmatprep.subr.mxu0 0.0
    %958 = vmatpush1.msra.mxu0 0.0
    %959 = vmatprep.subr.mxu0 0.0
    %960 = vmatpush1.msra.mxu0 0.0
    %961 = vmatprep.subr.mxu0 0.0
    %962 = vmatpush1.msra.mxu0 0.0
    %963 = vmatprep.subr.mxu0 0.0
    %964 = vmatpush1.msra.mxu0 %v121
    %965 = vmatprep.subr.mxu0 0.0
    %966 = vmatpush1.msra.mxu0 %v120
    %967 = vmatprep.subr.mxu0 0.0
    %968 = vmatpush1.msra.mxu0 %v119
    %969 = vmatprep.subr.mxu0 0.0
    %970 = vmatpush1.msra.mxu0 %v118
    %971 = vmatprep.subr.mxu0 0.0
    %972 = vmatpush2.msra.mxu0 0.0
    %973 = vmatprep.subr.mxu0 0.0
    %974 = vmatpush2.msra.mxu0 0.0
    %975 = vmatprep.subr.mxu0 0.0
    %976 = vmatpush2.msra.mxu0 0.0
    %977 = vmatprep.subr.mxu0 0.0
    %978 = vmatpush2.msra.mxu0 0.0
    %979 = vmatprep.subr.mxu0 0.0
    %980 = vmatpush2.msra.mxu0 0.0
    %981 = vmatprep.subr.mxu0 0.0
    %982 = vmatpush2.msra.mxu0 0.0
    %983 = vmatprep.subr.mxu0 0.0
    %984 = vmatpush2.msra.mxu0 0.0
    %985 = vmatprep.subr.mxu0 0.0
    %986 = vmatpush2.msra.mxu0 0.0
    %987 = vmatprep.subr.mxu0 0.0
    %988 = vmatpush2.msra.mxu0 0.0
    %989 = vmatprep.subr.mxu0 0.0
    %990 = vmatpush2.msra.mxu0 0.0
    %991 = vmatprep.subr.mxu0 0.0
    %992 = vmatpush2.msra.mxu0 0.0
    %993 = vmatprep.subr.mxu0 0.0
    %994 = vmatpush2.msra.mxu0 0.0
    %995 = vmatprep.subr.mxu0 0.0
    %996 = vmatpush2.msra.mxu0 0.0
    %997 = vmatprep.subr.mxu0 0.0
    %998 = vmatpush2.msra.mxu0 0.0
    %999 = vmatprep.subr.mxu0 0.0
    %1000 = vmatpush2.msra.mxu0 0.0
    %1001 = vmatprep.subr.mxu0 0.0
    %1002 = vmatpush2.msra.mxu0 0.0
    %1003 = vmatprep.mubr.f32.mxu0 0.0
    %1004 = vmatmul.mubr.f32.gmra.mxu0 %v937
    %v1005 = vpop.f32.mrf.mxu0
    %v1006 = vadd.f32 0.0, %v1005
    %v1007 = vpop.f32.mrf.mxu0
    %1008 = vdwg.mxu0
    %v1017 = vrot.slane %v928, 2
    %v1018 = vrot.slane %v929, 1
    %v1019 = vsel %vm469, %v1018, %v1017
    %v1020 = vsel %vm472, %v930, %v1019
    %v1021 = vrot.slane %v931, 7
    %v1022 = vsel %vm475, %v1021, %v1020
    %v1023 = vrot.slane %v932, 6
    %v1024 = vsel %vm478, %v1023, %v1022
    %v1025 = vrot.slane %v933, 5
    %v1026 = vsel %vm481, %v1025, %v1024
    %v1027 = vrot.slane %v934, 4
    %v1028 = vsel %vm484, %v1027, %v1026
    %v1029 = vrot.slane %v935, 3
    %v1030 = vsel %vm487, %v1029, %v1028
    %v1031 = vsel %vm281, %v1030, 0
    %1033 = vmatprep.subr.mxu0 0.0
    %1034 = vmatpush1.msra.mxu0 0.0
    %1035 = vmatprep.subr.mxu0 0.0
    %1036 = vmatpush1.msra.mxu0 0.0
    %1037 = vmatprep.subr.mxu0 0.0
    %1038 = vmatpush1.msra.mxu0 0.0
    %1039 = vmatprep.subr.mxu0 0.0
    %1040 = vmatpush1.msra.mxu0 0.0
    %1041 = vmatprep.subr.mxu0 0.0
    %1042 = vmatpush1.msra.mxu0 0.0
    %1043 = vmatprep.subr.mxu0 0.0
    %1044 = vmatpush1.msra.mxu0 0.0
    %1045 = vmatprep.subr.mxu0 0.0
    %1046 = vmatpush1.msra.mxu0 0.0
    %1047 = vmatprep.subr.mxu0 0.0
    %1048 = vmatpush1.msra.mxu0 0.0
    %1049 = vmatprep.subr.mxu0 0.0
    %1050 = vmatpush1.msra.mxu0 0.0
    %1051 = vmatprep.subr.mxu0 0.0
    %1052 = vmatpush1.msra.mxu0 0.0
    %1053 = vmatprep.subr.mxu0 0.0
    %1054 = vmatpush1.msra.mxu0 0.0
    %1055 = vmatprep.subr.mxu0 0.0
    %1056 = vmatpush1.msra.mxu0 0.0
    %1057 = vmatprep.subr.mxu0 0.0
    %1058 = vmatpush1.msra.mxu0 %v117
    %1059 = vmatprep.subr.mxu0 0.0
    %1060 = vmatpush1.msra.mxu0 %v116
    %1061 = vmatprep.subr.mxu0 0.0
    %1062 = vmatpush1.msra.mxu0 %v115
    %1063 = vmatprep.subr.mxu0 0.0
    %1064 = vmatpush1.msra.mxu0 %v114
    %1065 = vmatprep.subr.mxu0 0.0
    %1066 = vmatpush2.msra.mxu0 0.0
    %1067 = vmatprep.subr.mxu0 0.0
    %1068 = vmatpush2.msra.mxu0 0.0
    %1069 = vmatprep.subr.mxu0 0.0
    %1070 = vmatpush2.msra.mxu0 0.0
    %1071 = vmatprep.subr.mxu0 0.0
    %1072 = vmatpush2.msra.mxu0 0.0
    %1073 = vmatprep.subr.mxu0 0.0
    %1074 = vmatpush2.msra.mxu0 0.0
    %1075 = vmatprep.subr.mxu0 0.0
    %1076 = vmatpush2.msra.mxu0 0.0
    %1077 = vmatprep.subr.mxu0 0.0
    %1078 = vmatpush2.msra.mxu0 0.0
    %1079 = vmatprep.subr.mxu0 0.0
    %1080 = vmatpush2.msra.mxu0 0.0
    %1081 = vmatprep.subr.mxu0 0.0
    %1082 = vmatpush2.msra.mxu0 0.0
    %1083 = vmatprep.subr.mxu0 0.0
    %1084 = vmatpush2.msra.mxu0 0.0
    %1085 = vmatprep.subr.mxu0 0.0
    %1086 = vmatpush2.msra.mxu0 0.0
    %1087 = vmatprep.subr.mxu0 0.0
    %1088 = vmatpush2.msra.mxu0 0.0
    %1089 = vmatprep.subr.mxu0 0.0
    %1090 = vmatpush2.msra.mxu0 0.0
    %1091 = vmatprep.subr.mxu0 0.0
    %1092 = vmatpush2.msra.mxu0 0.0
    %1093 = vmatprep.subr.mxu0 0.0
    %1094 = vmatpush2.msra.mxu0 0.0
    %1095 = vmatprep.subr.mxu0 0.0
    %1096 = vmatpush2.msra.mxu0 0.0
    %1097 = vmatprep.mubr.f32.mxu0 0.0
    %1098 = vmatmul.mubr.f32.gmra.mxu0 %v1031
    %v1099 = vpop.f32.mrf.mxu0
    %v1100 = vadd.f32 %v1006, %v1099
    %v1101 = vpop.f32.mrf.mxu0
    %1102 = vdwg.mxu0
    %v1103 = vadd.f32 %v1100, %v276
    %v1104 = vtanh.pop %v1103
    %1105 = vmatprep.subr.mxu0 0.0
    %1106 = vmatpush1.msra.mxu0 0.0
    %1107 = vmatprep.subr.mxu0 0.0
    %1108 = vmatpush1.msra.mxu0 0.0
    %1109 = vmatprep.subr.mxu0 0.0
    %1110 = vmatpush1.msra.mxu0 0.0
    %1111 = vmatprep.subr.mxu0 0.0
    %1112 = vmatpush1.msra.mxu0 0.0
    %1113 = vmatprep.subr.mxu0 0.0
    %1114 = vmatpush1.msra.mxu0 0.0
    %1115 = vmatprep.subr.mxu0 0.0
    %1116 = vmatpush1.msra.mxu0 0.0
    %1117 = vmatprep.subr.mxu0 0.0
    %1118 = vmatpush1.msra.mxu0 0.0
    %1119 = vmatprep.subr.mxu0 0.0
    %1120 = vmatpush1.msra.mxu0 0.0
    %1121 = vmatprep.subr.mxu0 0.0
    %1122 = vmatpush1.msra.mxu0 0.0
    %1123 = vmatprep.subr.mxu0 0.0
    %1124 = vmatpush1.msra.mxu0 0.0
    %1125 = vmatprep.subr.mxu0 0.0
    %1126 = vmatpush1.msra.mxu0 0.0
    %1127 = vmatprep.subr.mxu0 0.0
    %1128 = vmatpush1.msra.mxu0 0.0
    %1129 = vmatprep.subr.mxu0 0.0
    %1130 = vmatpush1.msra.mxu0 %v112
    %1131 = vmatprep.subr.mxu0 0.0
    %1132 = vmatpush1.msra.mxu0 %v111
    %1133 = vmatprep.subr.mxu0 0.0
    %1134 = vmatpush1.msra.mxu0 %v110
    %1135 = vmatprep.subr.mxu0 0.0
    %1136 = vmatpush1.msra.mxu0 %v109
    %1137 = vmatprep.subr.mxu0 0.0
    %1138 = vmatpush2.msra.mxu0 0.0
    %1139 = vmatprep.subr.mxu0 0.0
    %1140 = vmatpush2.msra.mxu0 0.0
    %1141 = vmatprep.subr.mxu0 0.0
    %1142 = vmatpush2.msra.mxu0 0.0
    %1143 = vmatprep.subr.mxu0 0.0
    %1144 = vmatpush2.msra.mxu0 0.0
    %1145 = vmatprep.subr.mxu0 0.0
    %1146 = vmatpush2.msra.mxu0 0.0
    %1147 = vmatprep.subr.mxu0 0.0
    %1148 = vmatpush2.msra.mxu0 0.0
    %1149 = vmatprep.subr.mxu0 0.0
    %1150 = vmatpush2.msra.mxu0 0.0
    %1151 = vmatprep.subr.mxu0 0.0
    %1152 = vmatpush2.msra.mxu0 0.0
    %1153 = vmatprep.subr.mxu0 0.0
    %1154 = vmatpush2.msra.mxu0 0.0
    %1155 = vmatprep.subr.mxu0 0.0
    %1156 = vmatpush2.msra.mxu0 0.0
    %1157 = vmatprep.subr.mxu0 0.0
    %1158 = vmatpush2.msra.mxu0 0.0
    %1159 = vmatprep.subr.mxu0 0.0
    %1160 = vmatpush2.msra.mxu0 0.0
    %1161 = vmatprep.subr.mxu0 0.0
    %1162 = vmatpush2.msra.mxu0 0.0
    %1163 = vmatprep.subr.mxu0 0.0
    %1164 = vmatpush2.msra.mxu0 0.0
    %1165 = vmatprep.subr.mxu0 0.0
    %1166 = vmatpush2.msra.mxu0 0.0
    %1167 = vmatprep.subr.mxu0 0.0
    %1168 = vmatpush2.msra.mxu0 0.0
    %1169 = vmatprep.mubr.f32.mxu0 0.0
    %1170 = vmatmul.mubr.f32.gmra.mxu0 %v1031
    %v1171 = vpop.f32.mrf.mxu0
    %v1172 = vadd.f32 0.0, %v1171
    %v1173 = vpop.f32.mrf.mxu0
    %1174 = vdwg.mxu0
    %v1176 = vrot.slane %v1172, 5
    %v1177 = vrot.slane %v1172, 6
    %v1178 = vrot.slane %v1172, 7
    %v1179 = vrot.slane %v1172, 1
    %v1180 = vrot.slane %v1172, 2
    %v1181 = vrot.slane %v1172, 3
    %v1182 = vrot.slane %v1172, 4
    %v1191 = vadd.f32 %v234, %v1176
    %v1192 = vadd.f32 %v239, %v1177
    %v1193 = vadd.f32 %v244, %v1178
    %v1194 = vadd.f32 %v249, %v1172
    %v1195 = vadd.f32 %v254, %v1179
    %v1196 = vadd.f32 %v259, %v1180
    %v1197 = vadd.f32 %v264, %v1181
    %v1198 = vadd.f32 %v269, %v1182
    %v1199 = vtanh.pop %v1191
    %v1200 = vtanh.pop %v1192
    %v1201 = vtanh.pop %v1193
    %v1202 = vtanh.pop %v1194
    %v1203 = vtanh.pop %v1195
    %v1204 = vtanh.pop %v1196
    %v1205 = vtanh.pop %v1197
    %v1206 = vtanh.pop %v1198
    %v1208 = vsel %vm281, %v1104, 0
    %1210 = vmatprep.subr.mxu0 0.0
    %1211 = vmatpush1.msra.mxu0 0.0
    %1212 = vmatprep.subr.mxu0 0.0
    %1213 = vmatpush1.msra.mxu0 0.0
    %1214 = vmatprep.subr.mxu0 0.0
    %1215 = vmatpush1.msra.mxu0 0.0
    %1216 = vmatprep.subr.mxu0 0.0
    %1217 = vmatpush1.msra.mxu0 0.0
    %1218 = vmatprep.subr.mxu0 0.0
    %1219 = vmatpush1.msra.mxu0 0.0
    %1220 = vmatprep.subr.mxu0 0.0
    %1221 = vmatpush1.msra.mxu0 0.0
    %1222 = vmatprep.subr.mxu0 0.0
    %1223 = vmatpush1.msra.mxu0 0.0
    %1224 = vmatprep.subr.mxu0 0.0
    %1225 = vmatpush1.msra.mxu0 0.0
    %1226 = vmatprep.subr.mxu0 0.0
    %1227 = vmatpush1.msra.mxu0 0.0
    %1228 = vmatprep.subr.mxu0 0.0
    %1229 = vmatpush1.msra.mxu0 0.0
    %1230 = vmatprep.subr.mxu0 0.0
    %1231 = vmatpush1.msra.mxu0 0.0
    %1232 = vmatprep.subr.mxu0 0.0
    %1233 = vmatpush1.msra.mxu0 0.0
    %1234 = vmatprep.subr.mxu0 0.0
    %1235 = vmatpush1.msra.mxu0 %v121
    %1236 = vmatprep.subr.mxu0 0.0
    %1237 = vmatpush1.msra.mxu0 %v120
    %1238 = vmatprep.subr.mxu0 0.0
    %1239 = vmatpush1.msra.mxu0 %v119
    %1240 = vmatprep.subr.mxu0 0.0
    %1241 = vmatpush1.msra.mxu0 %v118
    %1242 = vmatprep.subr.mxu0 0.0
    %1243 = vmatpush2.msra.mxu0 0.0
    %1244 = vmatprep.subr.mxu0 0.0
    %1245 = vmatpush2.msra.mxu0 0.0
    %1246 = vmatprep.subr.mxu0 0.0
    %1247 = vmatpush2.msra.mxu0 0.0
    %1248 = vmatprep.subr.mxu0 0.0
    %1249 = vmatpush2.msra.mxu0 0.0
    %1250 = vmatprep.subr.mxu0 0.0
    %1251 = vmatpush2.msra.mxu0 0.0
    %1252 = vmatprep.subr.mxu0 0.0
    %1253 = vmatpush2.msra.mxu0 0.0
    %1254 = vmatprep.subr.mxu0 0.0
    %1255 = vmatpush2.msra.mxu0 0.0
    %1256 = vmatprep.subr.mxu0 0.0
    %1257 = vmatpush2.msra.mxu0 0.0
    %1258 = vmatprep.subr.mxu0 0.0
    %1259 = vmatpush2.msra.mxu0 0.0
    %1260 = vmatprep.subr.mxu0 0.0
    %1261 = vmatpush2.msra.mxu0 0.0
    %1262 = vmatprep.subr.mxu0 0.0
    %1263 = vmatpush2.msra.mxu0 0.0
    %1264 = vmatprep.subr.mxu0 0.0
    %1265 = vmatpush2.msra.mxu0 0.0
    %1266 = vmatprep.subr.mxu0 0.0
    %1267 = vmatpush2.msra.mxu0 0.0
    %1268 = vmatprep.subr.mxu0 0.0
    %1269 = vmatpush2.msra.mxu0 0.0
    %1270 = vmatprep.subr.mxu0 0.0
    %1271 = vmatpush2.msra.mxu0 0.0
    %1272 = vmatprep.subr.mxu0 0.0
    %1273 = vmatpush2.msra.mxu0 0.0
    %1274 = vmatprep.mubr.f32.mxu0 0.0
    %1275 = vmatmul.mubr.f32.gmra.mxu0 %v1208
    %v1276 = vpop.f32.mrf.mxu0
    %v1277 = vadd.f32 0.0, %v1276
    %v1278 = vpop.f32.mrf.mxu0
    %1279 = vdwg.mxu0
    %v1288 = vrot.slane %v1199, 3
    %v1289 = vrot.slane %v1200, 2
    %v1290 = vsel %vm469, %v1289, %v1288
    %v1291 = vrot.slane %v1201, 1
    %v1292 = vsel %vm472, %v1291, %v1290
    %v1293 = vsel %vm475, %v1202, %v1292
    %v1294 = vrot.slane %v1203, 7
    %v1295 = vsel %vm478, %v1294, %v1293
    %v1296 = vrot.slane %v1204, 6
    %v1297 = vsel %vm481, %v1296, %v1295
    %v1298 = vrot.slane %v1205, 5
    %v1299 = vsel %vm484, %v1298, %v1297
    %v1300 = vrot.slane %v1206, 4
    %v1301 = vsel %vm487, %v1300, %v1299
    %v1302 = vsel %vm281, %v1301, 0
    %1304 = vmatprep.subr.mxu0 0.0
    %1305 = vmatpush1.msra.mxu0 0.0
    %1306 = vmatprep.subr.mxu0 0.0
    %1307 = vmatpush1.msra.mxu0 0.0
    %1308 = vmatprep.subr.mxu0 0.0
    %1309 = vmatpush1.msra.mxu0 0.0
    %1310 = vmatprep.subr.mxu0 0.0
    %1311 = vmatpush1.msra.mxu0 0.0
    %1312 = vmatprep.subr.mxu0 0.0
    %1313 = vmatpush1.msra.mxu0 0.0
    %1314 = vmatprep.subr.mxu0 0.0
    %1315 = vmatpush1.msra.mxu0 0.0
    %1316 = vmatprep.subr.mxu0 0.0
    %1317 = vmatpush1.msra.mxu0 0.0
    %1318 = vmatprep.subr.mxu0 0.0
    %1319 = vmatpush1.msra.mxu0 0.0
    %1320 = vmatprep.subr.mxu0 0.0
    %1321 = vmatpush1.msra.mxu0 0.0
    %1322 = vmatprep.subr.mxu0 0.0
    %1323 = vmatpush1.msra.mxu0 0.0
    %1324 = vmatprep.subr.mxu0 0.0
    %1325 = vmatpush1.msra.mxu0 0.0
    %1326 = vmatprep.subr.mxu0 0.0
    %1327 = vmatpush1.msra.mxu0 0.0
    %1328 = vmatprep.subr.mxu0 0.0
    %1329 = vmatpush1.msra.mxu0 %v117
    %1330 = vmatprep.subr.mxu0 0.0
    %1331 = vmatpush1.msra.mxu0 %v116
    %1332 = vmatprep.subr.mxu0 0.0
    %1333 = vmatpush1.msra.mxu0 %v115
    %1334 = vmatprep.subr.mxu0 0.0
    %1335 = vmatpush1.msra.mxu0 %v114
    %1336 = vmatprep.subr.mxu0 0.0
    %1337 = vmatpush2.msra.mxu0 0.0
    %1338 = vmatprep.subr.mxu0 0.0
    %1339 = vmatpush2.msra.mxu0 0.0
    %1340 = vmatprep.subr.mxu0 0.0
    %1341 = vmatpush2.msra.mxu0 0.0
    %1342 = vmatprep.subr.mxu0 0.0
    %1343 = vmatpush2.msra.mxu0 0.0
    %1344 = vmatprep.subr.mxu0 0.0
    %1345 = vmatpush2.msra.mxu0 0.0
    %1346 = vmatprep.subr.mxu0 0.0
    %1347 = vmatpush2.msra.mxu0 0.0
    %1348 = vmatprep.subr.mxu0 0.0
    %1349 = vmatpush2.msra.mxu0 0.0
    %1350 = vmatprep.subr.mxu0 0.0
    %1351 = vmatpush2.msra.mxu0 0.0
    %1352 = vmatprep.subr.mxu0 0.0
    %1353 = vmatpush2.msra.mxu0 0.0
    %1354 = vmatprep.subr.mxu0 0.0
    %1355 = vmatpush2.msra.mxu0 0.0
    %1356 = vmatprep.subr.mxu0 0.0
    %1357 = vmatpush2.msra.mxu0 0.0
    %1358 = vmatprep.subr.mxu0 0.0
    %1359 = vmatpush2.msra.mxu0 0.0
    %1360 = vmatprep.subr.mxu0 0.0
    %1361 = vmatpush2.msra.mxu0 0.0
    %1362 = vmatprep.subr.mxu0 0.0
    %1363 = vmatpush2.msra.mxu0 0.0
    %1364 = vmatprep.subr.mxu0 0.0
    %1365 = vmatpush2.msra.mxu0 0.0
    %1366 = vmatprep.subr.mxu0 0.0
    %1367 = vmatpush2.msra.mxu0 0.0
    %1368 = vmatprep.mubr.f32.mxu0 0.0
    %1369 = vmatmul.mubr.f32.gmra.mxu0 %v1302
    %v1370 = vpop.f32.mrf.mxu0
    %v1371 = vadd.f32 %v1277, %v1370
    %v1372 = vpop.f32.mrf.mxu0
    %1373 = vdwg.mxu0
    %v1374 = vadd.f32 %v1371, %v276
    %v1375 = vtanh.pop %v1374
    %1376 = vmatprep.subr.mxu0 0.0
    %1377 = vmatpush1.msra.mxu0 0.0
    %1378 = vmatprep.subr.mxu0 0.0
    %1379 = vmatpush1.msra.mxu0 0.0
    %1380 = vmatprep.subr.mxu0 0.0
    %1381 = vmatpush1.msra.mxu0 0.0
    %1382 = vmatprep.subr.mxu0 0.0
    %1383 = vmatpush1.msra.mxu0 0.0
    %1384 = vmatprep.subr.mxu0 0.0
    %1385 = vmatpush1.msra.mxu0 0.0
    %1386 = vmatprep.subr.mxu0 0.0
    %1387 = vmatpush1.msra.mxu0 0.0
    %1388 = vmatprep.subr.mxu0 0.0
    %1389 = vmatpush1.msra.mxu0 0.0
    %1390 = vmatprep.subr.mxu0 0.0
    %1391 = vmatpush1.msra.mxu0 0.0
    %1392 = vmatprep.subr.mxu0 0.0
    %1393 = vmatpush1.msra.mxu0 0.0
    %1394 = vmatprep.subr.mxu0 0.0
    %1395 = vmatpush1.msra.mxu0 0.0
    %1396 = vmatprep.subr.mxu0 0.0
    %1397 = vmatpush1.msra.mxu0 0.0
    %1398 = vmatprep.subr.mxu0 0.0
    %1399 = vmatpush1.msra.mxu0 0.0
    %1400 = vmatprep.subr.mxu0 0.0
    %1401 = vmatpush1.msra.mxu0 %v112
    %1402 = vmatprep.subr.mxu0 0.0
    %1403 = vmatpush1.msra.mxu0 %v111
    %1404 = vmatprep.subr.mxu0 0.0
    %1405 = vmatpush1.msra.mxu0 %v110
    %1406 = vmatprep.subr.mxu0 0.0
    %1407 = vmatpush1.msra.mxu0 %v109
    %1408 = vmatprep.subr.mxu0 0.0
    %1409 = vmatpush2.msra.mxu0 0.0
    %1410 = vmatprep.subr.mxu0 0.0
    %1411 = vmatpush2.msra.mxu0 0.0
    %1412 = vmatprep.subr.mxu0 0.0
    %1413 = vmatpush2.msra.mxu0 0.0
    %1414 = vmatprep.subr.mxu0 0.0
    %1415 = vmatpush2.msra.mxu0 0.0
    %1416 = vmatprep.subr.mxu0 0.0
    %1417 = vmatpush2.msra.mxu0 0.0
    %1418 = vmatprep.subr.mxu0 0.0
    %1419 = vmatpush2.msra.mxu0 0.0
    %1420 = vmatprep.subr.mxu0 0.0
    %1421 = vmatpush2.msra.mxu0 0.0
    %1422 = vmatprep.subr.mxu0 0.0
    %1423 = vmatpush2.msra.mxu0 0.0
    %1424 = vmatprep.subr.mxu0 0.0
    %1425 = vmatpush2.msra.mxu0 0.0
    %1426 = vmatprep.subr.mxu0 0.0
    %1427 = vmatpush2.msra.mxu0 0.0
    %1428 = vmatprep.subr.mxu0 0.0
    %1429 = vmatpush2.msra.mxu0 0.0
    %1430 = vmatprep.subr.mxu0 0.0
    %1431 = vmatpush2.msra.mxu0 0.0
    %1432 = vmatprep.subr.mxu0 0.0
    %1433 = vmatpush2.msra.mxu0 0.0
    %1434 = vmatprep.subr.mxu0 0.0
    %1435 = vmatpush2.msra.mxu0 0.0
    %1436 = vmatprep.subr.mxu0 0.0
    %1437 = vmatpush2.msra.mxu0 0.0
    %1438 = vmatprep.subr.mxu0 0.0
    %1439 = vmatpush2.msra.mxu0 0.0
    %1440 = vmatprep.mubr.f32.mxu0 0.0
    %1441 = vmatmul.mubr.f32.gmra.mxu0 %v1302
    %v1442 = vpop.f32.mrf.mxu0
    %v1443 = vadd.f32 0.0, %v1442
    %v1444 = vpop.f32.mrf.mxu0
    %1445 = vdwg.mxu0
    %v1447 = vrot.slane %v1443, 4
    %v1448 = vrot.slane %v1443, 5
    %v1449 = vrot.slane %v1443, 6
    %v1450 = vrot.slane %v1443, 7
    %v1451 = vrot.slane %v1443, 1
    %v1452 = vrot.slane %v1443, 2
    %v1453 = vrot.slane %v1443, 3
    %v1462 = vadd.f32 %v234, %v1447
    %v1463 = vadd.f32 %v239, %v1448
    %v1464 = vadd.f32 %v244, %v1449
    %v1465 = vadd.f32 %v249, %v1450
    %v1466 = vadd.f32 %v254, %v1443
    %v1467 = vadd.f32 %v259, %v1451
    %v1468 = vadd.f32 %v264, %v1452
    %v1469 = vadd.f32 %v269, %v1453
    %v1470 = vtanh.pop %v1462
    %v1471 = vtanh.pop %v1463
    %v1472 = vtanh.pop %v1464
    %v1473 = vtanh.pop %v1465
    %v1474 = vtanh.pop %v1466
    %v1475 = vtanh.pop %v1467
    %v1476 = vtanh.pop %v1468
    %v1477 = vtanh.pop %v1469
    %v1479 = vsel %vm281, %v1375, 0
    %1481 = vmatprep.subr.mxu0 0.0
    %1482 = vmatpush1.msra.mxu0 0.0
    %1483 = vmatprep.subr.mxu0 0.0
    %1484 = vmatpush1.msra.mxu0 0.0
    %1485 = vmatprep.subr.mxu0 0.0
    %1486 = vmatpush1.msra.mxu0 0.0
    %1487 = vmatprep.subr.mxu0 0.0
    %1488 = vmatpush1.msra.mxu0 0.0
    %1489 = vmatprep.subr.mxu0 0.0
    %1490 = vmatpush1.msra.mxu0 0.0
    %1491 = vmatprep.subr.mxu0 0.0
    %1492 = vmatpush1.msra.mxu0 0.0
    %1493 = vmatprep.subr.mxu0 0.0
    %1494 = vmatpush1.msra.mxu0 0.0
    %1495 = vmatprep.subr.mxu0 0.0
    %1496 = vmatpush1.msra.mxu0 0.0
    %1497 = vmatprep.subr.mxu0 0.0
    %1498 = vmatpush1.msra.mxu0 0.0
    %1499 = vmatprep.subr.mxu0 0.0
    %1500 = vmatpush1.msra.mxu0 0.0
    %1501 = vmatprep.subr.mxu0 0.0
    %1502 = vmatpush1.msra.mxu0 0.0
    %1503 = vmatprep.subr.mxu0 0.0
    %1504 = vmatpush1.msra.mxu0 0.0
    %1505 = vmatprep.subr.mxu0 0.0
    %1506 = vmatpush1.msra.mxu0 %v121
    %1507 = vmatprep.subr.mxu0 0.0
    %1508 = vmatpush1.msra.mxu0 %v120
    %1509 = vmatprep.subr.mxu0 0.0
    %1510 = vmatpush1.msra.mxu0 %v119
    %1511 = vmatprep.subr.mxu0 0.0
    %1512 = vmatpush1.msra.mxu0 %v118
    %1513 = vmatprep.subr.mxu0 0.0
    %1514 = vmatpush2.msra.mxu0 0.0
    %1515 = vmatprep.subr.mxu0 0.0
    %1516 = vmatpush2.msra.mxu0 0.0
    %1517 = vmatprep.subr.mxu0 0.0
    %1518 = vmatpush2.msra.mxu0 0.0
    %1519 = vmatprep.subr.mxu0 0.0
    %1520 = vmatpush2.msra.mxu0 0.0
    %1521 = vmatprep.subr.mxu0 0.0
    %1522 = vmatpush2.msra.mxu0 0.0
    %1523 = vmatprep.subr.mxu0 0.0
    %1524 = vmatpush2.msra.mxu0 0.0
    %1525 = vmatprep.subr.mxu0 0.0
    %1526 = vmatpush2.msra.mxu0 0.0
    %1527 = vmatprep.subr.mxu0 0.0
    %1528 = vmatpush2.msra.mxu0 0.0
    %1529 = vmatprep.subr.mxu0 0.0
    %1530 = vmatpush2.msra.mxu0 0.0
    %1531 = vmatprep.subr.mxu0 0.0
    %1532 = vmatpush2.msra.mxu0 0.0
    %1533 = vmatprep.subr.mxu0 0.0
    %1534 = vmatpush2.msra.mxu0 0.0
    %1535 = vmatprep.subr.mxu0 0.0
    %1536 = vmatpush2.msra.mxu0 0.0
    %1537 = vmatprep.subr.mxu0 0.0
    %1538 = vmatpush2.msra.mxu0 0.0
    %1539 = vmatprep.subr.mxu0 0.0
    %1540 = vmatpush2.msra.mxu0 0.0
    %1541 = vmatprep.subr.mxu0 0.0
    %1542 = vmatpush2.msra.mxu0 0.0
    %1543 = vmatprep.subr.mxu0 0.0
    %1544 = vmatpush2.msra.mxu0 0.0
    %1545 = vmatprep.mubr.f32.mxu0 0.0
    %1546 = vmatmul.mubr.f32.gmra.mxu0 %v1479
    %v1547 = vpop.f32.mrf.mxu0
    %v1548 = vadd.f32 0.0, %v1547
    %v1549 = vpop.f32.mrf.mxu0
    %1550 = vdwg.mxu0
    %v1559 = vrot.slane %v1470, 4
    %v1560 = vrot.slane %v1471, 3
    %v1561 = vsel %vm469, %v1560, %v1559
    %v1562 = vrot.slane %v1472, 2
    %v1563 = vsel %vm472, %v1562, %v1561
    %v1564 = vrot.slane %v1473, 1
    %v1565 = vsel %vm475, %v1564, %v1563
    %v1566 = vsel %vm478, %v1474, %v1565
    %v1567 = vrot.slane %v1475, 7
    %v1568 = vsel %vm481, %v1567, %v1566
    %v1569 = vrot.slane %v1476, 6
    %v1570 = vsel %vm484, %v1569, %v1568
    %v1571 = vrot.slane %v1477, 5
    %v1572 = vsel %vm487, %v1571, %v1570
    %v1573 = vsel %vm281, %v1572, 0
    %1575 = vmatprep.subr.mxu0 0.0
    %1576 = vmatpush1.msra.mxu0 0.0
    %1577 = vmatprep.subr.mxu0 0.0
    %1578 = vmatpush1.msra.mxu0 0.0
    %1579 = vmatprep.subr.mxu0 0.0
    %1580 = vmatpush1.msra.mxu0 0.0
    %1581 = vmatprep.subr.mxu0 0.0
    %1582 = vmatpush1.msra.mxu0 0.0
    %1583 = vmatprep.subr.mxu0 0.0
    %1584 = vmatpush1.msra.mxu0 0.0
    %1585 = vmatprep.subr.mxu0 0.0
    %1586 = vmatpush1.msra.mxu0 0.0
    %1587 = vmatprep.subr.mxu0 0.0
    %1588 = vmatpush1.msra.mxu0 0.0
    %1589 = vmatprep.subr.mxu0 0.0
    %1590 = vmatpush1.msra.mxu0 0.0
    %1591 = vmatprep.subr.mxu0 0.0
    %1592 = vmatpush1.msra.mxu0 0.0
    %1593 = vmatprep.subr.mxu0 0.0
    %1594 = vmatpush1.msra.mxu0 0.0
    %1595 = vmatprep.subr.mxu0 0.0
    %1596 = vmatpush1.msra.mxu0 0.0
    %1597 = vmatprep.subr.mxu0 0.0
    %1598 = vmatpush1.msra.mxu0 0.0
    %1599 = vmatprep.subr.mxu0 0.0
    %1600 = vmatpush1.msra.mxu0 %v117
    %1601 = vmatprep.subr.mxu0 0.0
    %1602 = vmatpush1.msra.mxu0 %v116
    %1603 = vmatprep.subr.mxu0 0.0
    %1604 = vmatpush1.msra.mxu0 %v115
    %1605 = vmatprep.subr.mxu0 0.0
    %1606 = vmatpush1.msra.mxu0 %v114
    %1607 = vmatprep.subr.mxu0 0.0
    %1608 = vmatpush2.msra.mxu0 0.0
    %1609 = vmatprep.subr.mxu0 0.0
    %1610 = vmatpush2.msra.mxu0 0.0
    %1611 = vmatprep.subr.mxu0 0.0
    %1612 = vmatpush2.msra.mxu0 0.0
    %1613 = vmatprep.subr.mxu0 0.0
    %1614 = vmatpush2.msra.mxu0 0.0
    %1615 = vmatprep.subr.mxu0 0.0
    %1616 = vmatpush2.msra.mxu0 0.0
    %1617 = vmatprep.subr.mxu0 0.0
    %1618 = vmatpush2.msra.mxu0 0.0
    %1619 = vmatprep.subr.mxu0 0.0
    %1620 = vmatpush2.msra.mxu0 0.0
    %1621 = vmatprep.subr.mxu0 0.0
    %1622 = vmatpush2.msra.mxu0 0.0
    %1623 = vmatprep.subr.mxu0 0.0
    %1624 = vmatpush2.msra.mxu0 0.0
    %1625 = vmatprep.subr.mxu0 0.0
    %1626 = vmatpush2.msra.mxu0 0.0
    %1627 = vmatprep.subr.mxu0 0.0
    %1628 = vmatpush2.msra.mxu0 0.0
    %1629 = vmatprep.subr.mxu0 0.0
    %1630 = vmatpush2.msra.mxu0 0.0
    %1631 = vmatprep.subr.mxu0 0.0
    %1632 = vmatpush2.msra.mxu0 0.0
    %1633 = vmatprep.subr.mxu0 0.0
    %1634 = vmatpush2.msra.mxu0 0.0
    %1635 = vmatprep.subr.mxu0 0.0
    %1636 = vmatpush2.msra.mxu0 0.0
    %1637 = vmatprep.subr.mxu0 0.0
    %1638 = vmatpush2.msra.mxu0 0.0
    %1639 = vmatprep.mubr.f32.mxu0 0.0
    %1640 = vmatmul.mubr.f32.gmra.mxu0 %v1573
    %v1641 = vpop.f32.mrf.mxu0
    %v1642 = vadd.f32 %v1548, %v1641
    %v1643 = vpop.f32.mrf.mxu0
    %1644 = vdwg.mxu0
    %v1645 = vadd.f32 %v1642, %v276
    %v1646 = vtanh.pop %v1645
    %1647 = vmatprep.subr.mxu0 0.0
    %1648 = vmatpush1.msra.mxu0 0.0
    %1649 = vmatprep.subr.mxu0 0.0
    %1650 = vmatpush1.msra.mxu0 0.0
    %1651 = vmatprep.subr.mxu0 0.0
    %1652 = vmatpush1.msra.mxu0 0.0
    %1653 = vmatprep.subr.mxu0 0.0
    %1654 = vmatpush1.msra.mxu0 0.0
    %1655 = vmatprep.subr.mxu0 0.0
    %1656 = vmatpush1.msra.mxu0 0.0
    %1657 = vmatprep.subr.mxu0 0.0
    %1658 = vmatpush1.msra.mxu0 0.0
    %1659 = vmatprep.subr.mxu0 0.0
    %1660 = vmatpush1.msra.mxu0 0.0
    %1661 = vmatprep.subr.mxu0 0.0
    %1662 = vmatpush1.msra.mxu0 0.0
    %1663 = vmatprep.subr.mxu0 0.0
    %1664 = vmatpush1.msra.mxu0 0.0
    %1665 = vmatprep.subr.mxu0 0.0
    %1666 = vmatpush1.msra.mxu0 0.0
    %1667 = vmatprep.subr.mxu0 0.0
    %1668 = vmatpush1.msra.mxu0 0.0
    %1669 = vmatprep.subr.mxu0 0.0
    %1670 = vmatpush1.msra.mxu0 0.0
    %1671 = vmatprep.subr.mxu0 0.0
    %1672 = vmatpush1.msra.mxu0 %v112
    %1673 = vmatprep.subr.mxu0 0.0
    %1674 = vmatpush1.msra.mxu0 %v111
    %1675 = vmatprep.subr.mxu0 0.0
    %1676 = vmatpush1.msra.mxu0 %v110
    %1677 = vmatprep.subr.mxu0 0.0
    %1678 = vmatpush1.msra.mxu0 %v109
    %1679 = vmatprep.subr.mxu0 0.0
    %1680 = vmatpush2.msra.mxu0 0.0
    %1681 = vmatprep.subr.mxu0 0.0
    %1682 = vmatpush2.msra.mxu0 0.0
    %1683 = vmatprep.subr.mxu0 0.0
    %1684 = vmatpush2.msra.mxu0 0.0
    %1685 = vmatprep.subr.mxu0 0.0
    %1686 = vmatpush2.msra.mxu0 0.0
    %1687 = vmatprep.subr.mxu0 0.0
    %1688 = vmatpush2.msra.mxu0 0.0
    %1689 = vmatprep.subr.mxu0 0.0
    %1690 = vmatpush2.msra.mxu0 0.0
    %1691 = vmatprep.subr.mxu0 0.0
    %1692 = vmatpush2.msra.mxu0 0.0
    %1693 = vmatprep.subr.mxu0 0.0
    %1694 = vmatpush2.msra.mxu0 0.0
    %1695 = vmatprep.subr.mxu0 0.0
    %1696 = vmatpush2.msra.mxu0 0.0
    %1697 = vmatprep.subr.mxu0 0.0
    %1698 = vmatpush2.msra.mxu0 0.0
    %1699 = vmatprep.subr.mxu0 0.0
    %1700 = vmatpush2.msra.mxu0 0.0
    %1701 = vmatprep.subr.mxu0 0.0
    %1702 = vmatpush2.msra.mxu0 0.0
    %1703 = vmatprep.subr.mxu0 0.0
    %1704 = vmatpush2.msra.mxu0 0.0
    %1705 = vmatprep.subr.mxu0 0.0
    %1706 = vmatpush2.msra.mxu0 0.0
    %1707 = vmatprep.subr.mxu0 0.0
    %1708 = vmatpush2.msra.mxu0 0.0
    %1709 = vmatprep.subr.mxu0 0.0
    %1710 = vmatpush2.msra.mxu0 0.0
    %1711 = vmatprep.mubr.f32.mxu0 0.0
    %1712 = vmatmul.mubr.f32.gmra.mxu0 %v1573
    %v1713 = vpop.f32.mrf.mxu0
    %v1714 = vadd.f32 0.0, %v1713
    %v1715 = vpop.f32.mrf.mxu0
    %1716 = vdwg.mxu0
    %v1718 = vrot.slane %v1714, 3
    %v1719 = vrot.slane %v1714, 4
    %v1720 = vrot.slane %v1714, 5
    %v1721 = vrot.slane %v1714, 6
    %v1722 = vrot.slane %v1714, 7
    %v1723 = vrot.slane %v1714, 1
    %v1724 = vrot.slane %v1714, 2
    %v1733 = vadd.f32 %v234, %v1718
    %v1734 = vadd.f32 %v239, %v1719
    %v1735 = vadd.f32 %v244, %v1720
    %v1736 = vadd.f32 %v249, %v1721
    %v1737 = vadd.f32 %v254, %v1722
    %v1738 = vadd.f32 %v259, %v1714
    %v1739 = vadd.f32 %v264, %v1723
    %v1740 = vadd.f32 %v269, %v1724
    %v1741 = vtanh.pop %v1733
    %v1742 = vtanh.pop %v1734
    %v1743 = vtanh.pop %v1735
    %v1744 = vtanh.pop %v1736
    %v1745 = vtanh.pop %v1737
    %v1746 = vtanh.pop %v1738
    %v1747 = vtanh.pop %v1739
    %v1748 = vtanh.pop %v1740
    %v1750 = vsel %vm281, %v1646, 0
    %1752 = vmatprep.subr.mxu0 0.0
    %1753 = vmatpush1.msra.mxu0 0.0
    %1754 = vmatprep.subr.mxu0 0.0
    %1755 = vmatpush1.msra.mxu0 0.0
    %1756 = vmatprep.subr.mxu0 0.0
    %1757 = vmatpush1.msra.mxu0 0.0
    %1758 = vmatprep.subr.mxu0 0.0
    %1759 = vmatpush1.msra.mxu0 0.0
    %1760 = vmatprep.subr.mxu0 0.0
    %1761 = vmatpush1.msra.mxu0 0.0
    %1762 = vmatprep.subr.mxu0 0.0
    %1763 = vmatpush1.msra.mxu0 0.0
    %1764 = vmatprep.subr.mxu0 0.0
    %1765 = vmatpush1.msra.mxu0 0.0
    %1766 = vmatprep.subr.mxu0 0.0
    %1767 = vmatpush1.msra.mxu0 0.0
    %1768 = vmatprep.subr.mxu0 0.0
    %1769 = vmatpush1.msra.mxu0 0.0
    %1770 = vmatprep.subr.mxu0 0.0
    %1771 = vmatpush1.msra.mxu0 0.0
    %1772 = vmatprep.subr.mxu0 0.0
    %1773 = vmatpush1.msra.mxu0 0.0
    %1774 = vmatprep.subr.mxu0 0.0
    %1775 = vmatpush1.msra.mxu0 0.0
    %1776 = vmatprep.subr.mxu0 0.0
    %1777 = vmatpush1.msra.mxu0 %v121
    %1778 = vmatprep.subr.mxu0 0.0
    %1779 = vmatpush1.msra.mxu0 %v120
    %1780 = vmatprep.subr.mxu0 0.0
    %1781 = vmatpush1.msra.mxu0 %v119
    %1782 = vmatprep.subr.mxu0 0.0
    %1783 = vmatpush1.msra.mxu0 %v118
    %1784 = vmatprep.subr.mxu0 0.0
    %1785 = vmatpush2.msra.mxu0 0.0
    %1786 = vmatprep.subr.mxu0 0.0
    %1787 = vmatpush2.msra.mxu0 0.0
    %1788 = vmatprep.subr.mxu0 0.0
    %1789 = vmatpush2.msra.mxu0 0.0
    %1790 = vmatprep.subr.mxu0 0.0
    %1791 = vmatpush2.msra.mxu0 0.0
    %1792 = vmatprep.subr.mxu0 0.0
    %1793 = vmatpush2.msra.mxu0 0.0
    %1794 = vmatprep.subr.mxu0 0.0
    %1795 = vmatpush2.msra.mxu0 0.0
    %1796 = vmatprep.subr.mxu0 0.0
    %1797 = vmatpush2.msra.mxu0 0.0
    %1798 = vmatprep.subr.mxu0 0.0
    %1799 = vmatpush2.msra.mxu0 0.0
    %1800 = vmatprep.subr.mxu0 0.0
    %1801 = vmatpush2.msra.mxu0 0.0
    %1802 = vmatprep.subr.mxu0 0.0
    %1803 = vmatpush2.msra.mxu0 0.0
    %1804 = vmatprep.subr.mxu0 0.0
    %1805 = vmatpush2.msra.mxu0 0.0
    %1806 = vmatprep.subr.mxu0 0.0
    %1807 = vmatpush2.msra.mxu0 0.0
    %1808 = vmatprep.subr.mxu0 0.0
    %1809 = vmatpush2.msra.mxu0 0.0
    %1810 = vmatprep.subr.mxu0 0.0
    %1811 = vmatpush2.msra.mxu0 0.0
    %1812 = vmatprep.subr.mxu0 0.0
    %1813 = vmatpush2.msra.mxu0 0.0
    %1814 = vmatprep.subr.mxu0 0.0
    %1815 = vmatpush2.msra.mxu0 0.0
    %1816 = vmatprep.mubr.f32.mxu0 0.0
    %1817 = vmatmul.mubr.f32.gmra.mxu0 %v1750
    %v1818 = vpop.f32.mrf.mxu0
    %v1819 = vadd.f32 0.0, %v1818
    %v1820 = vpop.f32.mrf.mxu0
    %1821 = vdwg.mxu0
    %v1830 = vrot.slane %v1741, 5
    %v1831 = vrot.slane %v1742, 4
    %v1832 = vsel %vm469, %v1831, %v1830
    %v1833 = vrot.slane %v1743, 3
    %v1834 = vsel %vm472, %v1833, %v1832
    %v1835 = vrot.slane %v1744, 2
    %v1836 = vsel %vm475, %v1835, %v1834
    %v1837 = vrot.slane %v1745, 1
    %v1838 = vsel %vm478, %v1837, %v1836
    %v1839 = vsel %vm481, %v1746, %v1838
    %v1840 = vrot.slane %v1747, 7
    %v1841 = vsel %vm484, %v1840, %v1839
    %v1842 = vrot.slane %v1748, 6
    %v1843 = vsel %vm487, %v1842, %v1841
    %v1844 = vsel %vm281, %v1843, 0
    %1846 = vmatprep.subr.mxu0 0.0
    %1847 = vmatpush1.msra.mxu0 0.0
    %1848 = vmatprep.subr.mxu0 0.0
    %1849 = vmatpush1.msra.mxu0 0.0
    %1850 = vmatprep.subr.mxu0 0.0
    %1851 = vmatpush1.msra.mxu0 0.0
    %1852 = vmatprep.subr.mxu0 0.0
    %1853 = vmatpush1.msra.mxu0 0.0
    %1854 = vmatprep.subr.mxu0 0.0
    %1855 = vmatpush1.msra.mxu0 0.0
    %1856 = vmatprep.subr.mxu0 0.0
    %1857 = vmatpush1.msra.mxu0 0.0
    %1858 = vmatprep.subr.mxu0 0.0
    %1859 = vmatpush1.msra.mxu0 0.0
    %1860 = vmatprep.subr.mxu0 0.0
    %1861 = vmatpush1.msra.mxu0 0.0
    %1862 = vmatprep.subr.mxu0 0.0
    %1863 = vmatpush1.msra.mxu0 0.0
    %1864 = vmatprep.subr.mxu0 0.0
    %1865 = vmatpush1.msra.mxu0 0.0
    %1866 = vmatprep.subr.mxu0 0.0
    %1867 = vmatpush1.msra.mxu0 0.0
    %1868 = vmatprep.subr.mxu0 0.0
    %1869 = vmatpush1.msra.mxu0 0.0
    %1870 = vmatprep.subr.mxu0 0.0
    %1871 = vmatpush1.msra.mxu0 %v117
    %1872 = vmatprep.subr.mxu0 0.0
    %1873 = vmatpush1.msra.mxu0 %v116
    %1874 = vmatprep.subr.mxu0 0.0
    %1875 = vmatpush1.msra.mxu0 %v115
    %1876 = vmatprep.subr.mxu0 0.0
    %1877 = vmatpush1.msra.mxu0 %v114
    %1878 = vmatprep.subr.mxu0 0.0
    %1879 = vmatpush2.msra.mxu0 0.0
    %1880 = vmatprep.subr.mxu0 0.0
    %1881 = vmatpush2.msra.mxu0 0.0
    %1882 = vmatprep.subr.mxu0 0.0
    %1883 = vmatpush2.msra.mxu0 0.0
    %1884 = vmatprep.subr.mxu0 0.0
    %1885 = vmatpush2.msra.mxu0 0.0
    %1886 = vmatprep.subr.mxu0 0.0
    %1887 = vmatpush2.msra.mxu0 0.0
    %1888 = vmatprep.subr.mxu0 0.0
    %1889 = vmatpush2.msra.mxu0 0.0
    %1890 = vmatprep.subr.mxu0 0.0
    %1891 = vmatpush2.msra.mxu0 0.0
    %1892 = vmatprep.subr.mxu0 0.0
    %1893 = vmatpush2.msra.mxu0 0.0
    %1894 = vmatprep.subr.mxu0 0.0
    %1895 = vmatpush2.msra.mxu0 0.0
    %1896 = vmatprep.subr.mxu0 0.0
    %1897 = vmatpush2.msra.mxu0 0.0
    %1898 = vmatprep.subr.mxu0 0.0
    %1899 = vmatpush2.msra.mxu0 0.0
    %1900 = vmatprep.subr.mxu0 0.0
    %1901 = vmatpush2.msra.mxu0 0.0
    %1902 = vmatprep.subr.mxu0 0.0
    %1903 = vmatpush2.msra.mxu0 0.0
    %1904 = vmatprep.subr.mxu0 0.0
    %1905 = vmatpush2.msra.mxu0 0.0
    %1906 = vmatprep.subr.mxu0 0.0
    %1907 = vmatpush2.msra.mxu0 0.0
    %1908 = vmatprep.subr.mxu0 0.0
    %1909 = vmatpush2.msra.mxu0 0.0
    %1910 = vmatprep.mubr.f32.mxu0 0.0
    %1911 = vmatmul.mubr.f32.gmra.mxu0 %v1844
    %v1912 = vpop.f32.mrf.mxu0
    %v1913 = vadd.f32 %v1819, %v1912
    %v1914 = vpop.f32.mrf.mxu0
    %1915 = vdwg.mxu0
    %v1916 = vadd.f32 %v1913, %v276
    %v1917 = vtanh.pop %v1916
    %1918 = vmatprep.subr.mxu0 0.0
    %1919 = vmatpush1.msra.mxu0 0.0
    %1920 = vmatprep.subr.mxu0 0.0
    %1921 = vmatpush1.msra.mxu0 0.0
    %1922 = vmatprep.subr.mxu0 0.0
    %1923 = vmatpush1.msra.mxu0 0.0
    %1924 = vmatprep.subr.mxu0 0.0
    %1925 = vmatpush1.msra.mxu0 0.0
    %1926 = vmatprep.subr.mxu0 0.0
    %1927 = vmatpush1.msra.mxu0 0.0
    %1928 = vmatprep.subr.mxu0 0.0
    %1929 = vmatpush1.msra.mxu0 0.0
    %1930 = vmatprep.subr.mxu0 0.0
    %1931 = vmatpush1.msra.mxu0 0.0
    %1932 = vmatprep.subr.mxu0 0.0
    %1933 = vmatpush1.msra.mxu0 0.0
    %1934 = vmatprep.subr.mxu0 0.0
    %1935 = vmatpush1.msra.mxu0 0.0
    %1936 = vmatprep.subr.mxu0 0.0
    %1937 = vmatpush1.msra.mxu0 0.0
    %1938 = vmatprep.subr.mxu0 0.0
    %1939 = vmatpush1.msra.mxu0 0.0
    %1940 = vmatprep.subr.mxu0 0.0
    %1941 = vmatpush1.msra.mxu0 0.0
    %1942 = vmatprep.subr.mxu0 0.0
    %1943 = vmatpush1.msra.mxu0 %v112
    %1944 = vmatprep.subr.mxu0 0.0
    %1945 = vmatpush1.msra.mxu0 %v111
    %1946 = vmatprep.subr.mxu0 0.0
    %1947 = vmatpush1.msra.mxu0 %v110
    %1948 = vmatprep.subr.mxu0 0.0
    %1949 = vmatpush1.msra.mxu0 %v109
    %1950 = vmatprep.subr.mxu0 0.0
    %1951 = vmatpush2.msra.mxu0 0.0
    %1952 = vmatprep.subr.mxu0 0.0
    %1953 = vmatpush2.msra.mxu0 0.0
    %1954 = vmatprep.subr.mxu0 0.0
    %1955 = vmatpush2.msra.mxu0 0.0
    %1956 = vmatprep.subr.mxu0 0.0
    %1957 = vmatpush2.msra.mxu0 0.0
    %1958 = vmatprep.subr.mxu0 0.0
    %1959 = vmatpush2.msra.mxu0 0.0
    %1960 = vmatprep.subr.mxu0 0.0
    %1961 = vmatpush2.msra.mxu0 0.0
    %1962 = vmatprep.subr.mxu0 0.0
    %1963 = vmatpush2.msra.mxu0 0.0
    %1964 = vmatprep.subr.mxu0 0.0
    %1965 = vmatpush2.msra.mxu0 0.0
    %1966 = vmatprep.subr.mxu0 0.0
    %1967 = vmatpush2.msra.mxu0 0.0
    %1968 = vmatprep.subr.mxu0 0.0
    %1969 = vmatpush2.msra.mxu0 0.0
    %1970 = vmatprep.subr.mxu0 0.0
    %1971 = vmatpush2.msra.mxu0 0.0
    %1972 = vmatprep.subr.mxu0 0.0
    %1973 = vmatpush2.msra.mxu0 0.0
    %1974 = vmatprep.subr.mxu0 0.0
    %1975 = vmatpush2.msra.mxu0 0.0
    %1976 = vmatprep.subr.mxu0 0.0
    %1977 = vmatpush2.msra.mxu0 0.0
    %1978 = vmatprep.subr.mxu0 0.0
    %1979 = vmatpush2.msra.mxu0 0.0
    %1980 = vmatprep.subr.mxu0 0.0
    %1981 = vmatpush2.msra.mxu0 0.0
    %1982 = vmatprep.mubr.f32.mxu0 0.0
    %1983 = vmatmul.mubr.f32.gmra.mxu0 %v1844
    %v1984 = vpop.f32.mrf.mxu0
    %v1985 = vadd.f32 0.0, %v1984
    %v1986 = vpop.f32.mrf.mxu0
    %1987 = vdwg.mxu0
    %v1989 = vrot.slane %v1985, 2
    %v1990 = vrot.slane %v1985, 3
    %v1991 = vrot.slane %v1985, 4
    %v1992 = vrot.slane %v1985, 5
    %v1993 = vrot.slane %v1985, 6
    %v1994 = vrot.slane %v1985, 7
    %v1995 = vrot.slane %v1985, 1
    %v2004 = vadd.f32 %v234, %v1989
    %v2005 = vadd.f32 %v239, %v1990
    %v2006 = vadd.f32 %v244, %v1991
    %v2007 = vadd.f32 %v249, %v1992
    %v2008 = vadd.f32 %v254, %v1993
    %v2009 = vadd.f32 %v259, %v1994
    %v2010 = vadd.f32 %v264, %v1985
    %v2011 = vadd.f32 %v269, %v1995
    %v2012 = vtanh.pop %v2004
    %v2013 = vtanh.pop %v2005
    %v2014 = vtanh.pop %v2006
    %v2015 = vtanh.pop %v2007
    %v2016 = vtanh.pop %v2008
    %v2017 = vtanh.pop %v2009
    %v2018 = vtanh.pop %v2010
    %v2019 = vtanh.pop %v2011
    %v2021 = vsel %vm281, %v1917, 0
    %2023 = vmatprep.subr.mxu0 0.0
    %2024 = vmatpush1.msra.mxu0 0.0
    %2025 = vmatprep.subr.mxu0 0.0
    %2026 = vmatpush1.msra.mxu0 0.0
    %2027 = vmatprep.subr.mxu0 0.0
    %2028 = vmatpush1.msra.mxu0 0.0
    %2029 = vmatprep.subr.mxu0 0.0
    %2030 = vmatpush1.msra.mxu0 0.0
    %2031 = vmatprep.subr.mxu0 0.0
    %2032 = vmatpush1.msra.mxu0 0.0
    %2033 = vmatprep.subr.mxu0 0.0
    %2034 = vmatpush1.msra.mxu0 0.0
    %2035 = vmatprep.subr.mxu0 0.0
    %2036 = vmatpush1.msra.mxu0 0.0
    %2037 = vmatprep.subr.mxu0 0.0
    %2038 = vmatpush1.msra.mxu0 0.0
    %2039 = vmatprep.subr.mxu0 0.0
    %2040 = vmatpush1.msra.mxu0 0.0
    %2041 = vmatprep.subr.mxu0 0.0
    %2042 = vmatpush1.msra.mxu0 0.0
    %2043 = vmatprep.subr.mxu0 0.0
    %2044 = vmatpush1.msra.mxu0 0.0
    %2045 = vmatprep.subr.mxu0 0.0
    %2046 = vmatpush1.msra.mxu0 0.0
    %2047 = vmatprep.subr.mxu0 0.0
    %2048 = vmatpush1.msra.mxu0 %v121
    %2049 = vmatprep.subr.mxu0 0.0
    %2050 = vmatpush1.msra.mxu0 %v120
    %2051 = vmatprep.subr.mxu0 0.0
    %2052 = vmatpush1.msra.mxu0 %v119
    %2053 = vmatprep.subr.mxu0 0.0
    %2054 = vmatpush1.msra.mxu0 %v118
    %2055 = vmatprep.subr.mxu0 0.0
    %2056 = vmatpush2.msra.mxu0 0.0
    %2057 = vmatprep.subr.mxu0 0.0
    %2058 = vmatpush2.msra.mxu0 0.0
    %2059 = vmatprep.subr.mxu0 0.0
    %2060 = vmatpush2.msra.mxu0 0.0
    %2061 = vmatprep.subr.mxu0 0.0
    %2062 = vmatpush2.msra.mxu0 0.0
    %2063 = vmatprep.subr.mxu0 0.0
    %2064 = vmatpush2.msra.mxu0 0.0
    %2065 = vmatprep.subr.mxu0 0.0
    %2066 = vmatpush2.msra.mxu0 0.0
    %2067 = vmatprep.subr.mxu0 0.0
    %2068 = vmatpush2.msra.mxu0 0.0
    %2069 = vmatprep.subr.mxu0 0.0
    %2070 = vmatpush2.msra.mxu0 0.0
    %2071 = vmatprep.subr.mxu0 0.0
    %2072 = vmatpush2.msra.mxu0 0.0
    %2073 = vmatprep.subr.mxu0 0.0
    %2074 = vmatpush2.msra.mxu0 0.0
    %2075 = vmatprep.subr.mxu0 0.0
    %2076 = vmatpush2.msra.mxu0 0.0
    %2077 = vmatprep.subr.mxu0 0.0
    %2078 = vmatpush2.msra.mxu0 0.0
    %2079 = vmatprep.subr.mxu0 0.0
    %2080 = vmatpush2.msra.mxu0 0.0
    %2081 = vmatprep.subr.mxu0 0.0
    %2082 = vmatpush2.msra.mxu0 0.0
    %2083 = vmatprep.subr.mxu0 0.0
    %2084 = vmatpush2.msra.mxu0 0.0
    %2085 = vmatprep.subr.mxu0 0.0
    %2086 = vmatpush2.msra.mxu0 0.0
    %2087 = vmatprep.mubr.f32.mxu0 0.0
    %2088 = vmatmul.mubr.f32.gmra.mxu0 %v2021
    %v2089 = vpop.f32.mrf.mxu0
    %v2090 = vadd.f32 0.0, %v2089
    %v2091 = vpop.f32.mrf.mxu0
    %2092 = vdwg.mxu0
    %v2101 = vrot.slane %v2012, 6
    %v2102 = vrot.slane %v2013, 5
    %v2103 = vsel %vm469, %v2102, %v2101
    %v2104 = vrot.slane %v2014, 4
    %v2105 = vsel %vm472, %v2104, %v2103
    %v2106 = vrot.slane %v2015, 3
    %v2107 = vsel %vm475, %v2106, %v2105
    %v2108 = vrot.slane %v2016, 2
    %v2109 = vsel %vm478, %v2108, %v2107
    %v2110 = vrot.slane %v2017, 1
    %v2111 = vsel %vm481, %v2110, %v2109
    %v2112 = vsel %vm484, %v2018, %v2111
    %v2113 = vrot.slane %v2019, 7
    %v2114 = vsel %vm487, %v2113, %v2112
    %v2115 = vsel %vm281, %v2114, 0
    %2117 = vmatprep.subr.mxu0 0.0
    %2118 = vmatpush1.msra.mxu0 0.0
    %2119 = vmatprep.subr.mxu0 0.0
    %2120 = vmatpush1.msra.mxu0 0.0
    %2121 = vmatprep.subr.mxu0 0.0
    %2122 = vmatpush1.msra.mxu0 0.0
    %2123 = vmatprep.subr.mxu0 0.0
    %2124 = vmatpush1.msra.mxu0 0.0
    %2125 = vmatprep.subr.mxu0 0.0
    %2126 = vmatpush1.msra.mxu0 0.0
    %2127 = vmatprep.subr.mxu0 0.0
    %2128 = vmatpush1.msra.mxu0 0.0
    %2129 = vmatprep.subr.mxu0 0.0
    %2130 = vmatpush1.msra.mxu0 0.0
    %2131 = vmatprep.subr.mxu0 0.0
    %2132 = vmatpush1.msra.mxu0 0.0
    %2133 = vmatprep.subr.mxu0 0.0
    %2134 = vmatpush1.msra.mxu0 0.0
    %2135 = vmatprep.subr.mxu0 0.0
    %2136 = vmatpush1.msra.mxu0 0.0
    %2137 = vmatprep.subr.mxu0 0.0
    %2138 = vmatpush1.msra.mxu0 0.0
    %2139 = vmatprep.subr.mxu0 0.0
    %2140 = vmatpush1.msra.mxu0 0.0
    %2141 = vmatprep.subr.mxu0 0.0
    %2142 = vmatpush1.msra.mxu0 %v117
    %2143 = vmatprep.subr.mxu0 0.0
    %2144 = vmatpush1.msra.mxu0 %v116
    %2145 = vmatprep.subr.mxu0 0.0
    %2146 = vmatpush1.msra.mxu0 %v115
    %2147 = vmatprep.subr.mxu0 0.0
    %2148 = vmatpush1.msra.mxu0 %v114
    %2149 = vmatprep.subr.mxu0 0.0
    %2150 = vmatpush2.msra.mxu0 0.0
    %2151 = vmatprep.subr.mxu0 0.0
    %2152 = vmatpush2.msra.mxu0 0.0
    %2153 = vmatprep.subr.mxu0 0.0
    %2154 = vmatpush2.msra.mxu0 0.0
    %2155 = vmatprep.subr.mxu0 0.0
    %2156 = vmatpush2.msra.mxu0 0.0
    %2157 = vmatprep.subr.mxu0 0.0
    %2158 = vmatpush2.msra.mxu0 0.0
    %2159 = vmatprep.subr.mxu0 0.0
    %2160 = vmatpush2.msra.mxu0 0.0
    %2161 = vmatprep.subr.mxu0 0.0
    %2162 = vmatpush2.msra.mxu0 0.0
    %2163 = vmatprep.subr.mxu0 0.0
    %2164 = vmatpush2.msra.mxu0 0.0
    %2165 = vmatprep.subr.mxu0 0.0
    %2166 = vmatpush2.msra.mxu0 0.0
    %2167 = vmatprep.subr.mxu0 0.0
    %2168 = vmatpush2.msra.mxu0 0.0
    %2169 = vmatprep.subr.mxu0 0.0
    %2170 = vmatpush2.msra.mxu0 0.0
    %2171 = vmatprep.subr.mxu0 0.0
    %2172 = vmatpush2.msra.mxu0 0.0
    %2173 = vmatprep.subr.mxu0 0.0
    %2174 = vmatpush2.msra.mxu0 0.0
    %2175 = vmatprep.subr.mxu0 0.0
    %2176 = vmatpush2.msra.mxu0 0.0
    %2177 = vmatprep.subr.mxu0 0.0
    %2178 = vmatpush2.msra.mxu0 0.0
    %2179 = vmatprep.subr.mxu0 0.0
    %2180 = vmatpush2.msra.mxu0 0.0
    %2181 = vmatprep.mubr.f32.mxu0 0.0
    %2182 = vmatmul.mubr.f32.gmra.mxu0 %v2115
    %v2183 = vpop.f32.mrf.mxu0
    %v2184 = vadd.f32 %v2090, %v2183
    %v2185 = vpop.f32.mrf.mxu0
    %2186 = vdwg.mxu0
    %v2187 = vadd.f32 %v2184, %v276
    %v2188 = vtanh.pop %v2187
    %2189 = vmatprep.subr.mxu0 0.0
    %2190 = vmatpush1.msra.mxu0 0.0
    %2191 = vmatprep.subr.mxu0 0.0
    %2192 = vmatpush1.msra.mxu0 0.0
    %2193 = vmatprep.subr.mxu0 0.0
    %2194 = vmatpush1.msra.mxu0 0.0
    %2195 = vmatprep.subr.mxu0 0.0
    %2196 = vmatpush1.msra.mxu0 0.0
    %2197 = vmatprep.subr.mxu0 0.0
    %2198 = vmatpush1.msra.mxu0 0.0
    %2199 = vmatprep.subr.mxu0 0.0
    %2200 = vmatpush1.msra.mxu0 0.0
    %2201 = vmatprep.subr.mxu0 0.0
    %2202 = vmatpush1.msra.mxu0 0.0
    %2203 = vmatprep.subr.mxu0 0.0
    %2204 = vmatpush1.msra.mxu0 0.0
    %2205 = vmatprep.subr.mxu0 0.0
    %2206 = vmatpush1.msra.mxu0 0.0
    %2207 = vmatprep.subr.mxu0 0.0
    %2208 = vmatpush1.msra.mxu0 0.0
    %2209 = vmatprep.subr.mxu0 0.0
    %2210 = vmatpush1.msra.mxu0 0.0
    %2211 = vmatprep.subr.mxu0 0.0
    %2212 = vmatpush1.msra.mxu0 0.0
    %2213 = vmatprep.subr.mxu0 0.0
    %2214 = vmatpush1.msra.mxu0 %v112
    %2215 = vmatprep.subr.mxu0 0.0
    %2216 = vmatpush1.msra.mxu0 %v111
    %2217 = vmatprep.subr.mxu0 0.0
    %2218 = vmatpush1.msra.mxu0 %v110
    %2219 = vmatprep.subr.mxu0 0.0
    %2220 = vmatpush1.msra.mxu0 %v109
    %2221 = vmatprep.subr.mxu0 0.0
    %2222 = vmatpush2.msra.mxu0 0.0
    %2223 = vmatprep.subr.mxu0 0.0
    %2224 = vmatpush2.msra.mxu0 0.0
    %2225 = vmatprep.subr.mxu0 0.0
    %2226 = vmatpush2.msra.mxu0 0.0
    %2227 = vmatprep.subr.mxu0 0.0
    %2228 = vmatpush2.msra.mxu0 0.0
    %2229 = vmatprep.subr.mxu0 0.0
    %2230 = vmatpush2.msra.mxu0 0.0
    %2231 = vmatprep.subr.mxu0 0.0
    %2232 = vmatpush2.msra.mxu0 0.0
    %2233 = vmatprep.subr.mxu0 0.0
    %2234 = vmatpush2.msra.mxu0 0.0
    %2235 = vmatprep.subr.mxu0 0.0
    %2236 = vmatpush2.msra.mxu0 0.0
    %2237 = vmatprep.subr.mxu0 0.0
    %2238 = vmatpush2.msra.mxu0 0.0
    %2239 = vmatprep.subr.mxu0 0.0
    %2240 = vmatpush2.msra.mxu0 0.0
    %2241 = vmatprep.subr.mxu0 0.0
    %2242 = vmatpush2.msra.mxu0 0.0
    %2243 = vmatprep.subr.mxu0 0.0
    %2244 = vmatpush2.msra.mxu0 0.0
    %2245 = vmatprep.subr.mxu0 0.0
    %2246 = vmatpush2.msra.mxu0 0.0
    %2247 = vmatprep.subr.mxu0 0.0
    %2248 = vmatpush2.msra.mxu0 0.0
    %2249 = vmatprep.subr.mxu0 0.0
    %2250 = vmatpush2.msra.mxu0 0.0
    %2251 = vmatprep.subr.mxu0 0.0
    %2252 = vmatpush2.msra.mxu0 0.0
    %2253 = vmatprep.mubr.f32.mxu0 0.0
    %2254 = vmatmul.mubr.f32.gmra.mxu0 %v2115
    %v2255 = vpop.f32.mrf.mxu0
    %v2256 = vadd.f32 0.0, %v2255
    %v2257 = vpop.f32.mrf.mxu0
    %2258 = vdwg.mxu0
    %v2260 = vrot.slane %v2256, 1
    %v2261 = vrot.slane %v2256, 2
    %v2262 = vrot.slane %v2256, 3
    %v2263 = vrot.slane %v2256, 4
    %v2264 = vrot.slane %v2256, 5
    %v2265 = vrot.slane %v2256, 6
    %v2266 = vrot.slane %v2256, 7
    %v2275 = vadd.f32 %v234, %v2260
    %v2276 = vadd.f32 %v239, %v2261
    %v2277 = vadd.f32 %v244, %v2262
    %v2278 = vadd.f32 %v249, %v2263
    %v2279 = vadd.f32 %v254, %v2264
    %v2280 = vadd.f32 %v259, %v2265
    %v2281 = vadd.f32 %v264, %v2266
    %v2282 = vadd.f32 %v269, %v2256
    %v2283 = vtanh.pop %v2275
    %v2284 = vtanh.pop %v2276
    %v2285 = vtanh.pop %v2277
    %v2286 = vtanh.pop %v2278
    %v2287 = vtanh.pop %v2279
    %v2288 = vtanh.pop %v2280
    %v2289 = vtanh.pop %v2281
    %v2290 = vtanh.pop %v2282
    %v2292 = vsel %vm281, %v2188, 0
    %2294 = vmatprep.subr.mxu0 0.0
    %2295 = vmatpush1.msra.mxu0 0.0
    %2296 = vmatprep.subr.mxu0 0.0
    %2297 = vmatpush1.msra.mxu0 0.0
    %2298 = vmatprep.subr.mxu0 0.0
    %2299 = vmatpush1.msra.mxu0 0.0
    %2300 = vmatprep.subr.mxu0 0.0
    %2301 = vmatpush1.msra.mxu0 0.0
    %2302 = vmatprep.subr.mxu0 0.0
    %2303 = vmatpush1.msra.mxu0 0.0
    %2304 = vmatprep.subr.mxu0 0.0
    %2305 = vmatpush1.msra.mxu0 0.0
    %2306 = vmatprep.subr.mxu0 0.0
    %2307 = vmatpush1.msra.mxu0 0.0
    %2308 = vmatprep.subr.mxu0 0.0
    %2309 = vmatpush1.msra.mxu0 0.0
    %2310 = vmatprep.subr.mxu0 0.0
    %2311 = vmatpush1.msra.mxu0 0.0
    %2312 = vmatprep.subr.mxu0 0.0
    %2313 = vmatpush1.msra.mxu0 0.0
    %2314 = vmatprep.subr.mxu0 0.0
    %2315 = vmatpush1.msra.mxu0 0.0
    %2316 = vmatprep.subr.mxu0 0.0
    %2317 = vmatpush1.msra.mxu0 0.0
    %2318 = vmatprep.subr.mxu0 0.0
    %2319 = vmatpush1.msra.mxu0 %v121
    %2320 = vmatprep.subr.mxu0 0.0
    %2321 = vmatpush1.msra.mxu0 %v120
    %2322 = vmatprep.subr.mxu0 0.0
    %2323 = vmatpush1.msra.mxu0 %v119
    %2324 = vmatprep.subr.mxu0 0.0
    %2325 = vmatpush1.msra.mxu0 %v118
    %2326 = vmatprep.subr.mxu0 0.0
    %2327 = vmatpush2.msra.mxu0 0.0
    %2328 = vmatprep.subr.mxu0 0.0
    %2329 = vmatpush2.msra.mxu0 0.0
    %2330 = vmatprep.subr.mxu0 0.0
    %2331 = vmatpush2.msra.mxu0 0.0
    %2332 = vmatprep.subr.mxu0 0.0
    %2333 = vmatpush2.msra.mxu0 0.0
    %2334 = vmatprep.subr.mxu0 0.0
    %2335 = vmatpush2.msra.mxu0 0.0
    %2336 = vmatprep.subr.mxu0 0.0
    %2337 = vmatpush2.msra.mxu0 0.0
    %2338 = vmatprep.subr.mxu0 0.0
    %2339 = vmatpush2.msra.mxu0 0.0
    %2340 = vmatprep.subr.mxu0 0.0
    %2341 = vmatpush2.msra.mxu0 0.0
    %2342 = vmatprep.subr.mxu0 0.0
    %2343 = vmatpush2.msra.mxu0 0.0
    %2344 = vmatprep.subr.mxu0 0.0
    %2345 = vmatpush2.msra.mxu0 0.0
    %2346 = vmatprep.subr.mxu0 0.0
    %2347 = vmatpush2.msra.mxu0 0.0
    %2348 = vmatprep.subr.mxu0 0.0
    %2349 = vmatpush2.msra.mxu0 0.0
    %2350 = vmatprep.subr.mxu0 0.0
    %2351 = vmatpush2.msra.mxu0 0.0
    %2352 = vmatprep.subr.mxu0 0.0
    %2353 = vmatpush2.msra.mxu0 0.0
    %2354 = vmatprep.subr.mxu0 0.0
    %2355 = vmatpush2.msra.mxu0 0.0
    %2356 = vmatprep.subr.mxu0 0.0
    %2357 = vmatpush2.msra.mxu0 0.0
    %2358 = vmatprep.mubr.f32.mxu0 0.0
    %2359 = vmatmul.mubr.f32.gmra.mxu0 %v2292
    %v2360 = vpop.f32.mrf.mxu0
    %v2361 = vadd.f32 0.0, %v2360
    %v2362 = vpop.f32.mrf.mxu0
    %2363 = vdwg.mxu0
    %v2372 = vrot.slane %v2283, 7
    %v2373 = vrot.slane %v2284, 6
    %v2374 = vsel %vm469, %v2373, %v2372
    %v2375 = vrot.slane %v2285, 5
    %v2376 = vsel %vm472, %v2375, %v2374
    %v2377 = vrot.slane %v2286, 4
    %v2378 = vsel %vm475, %v2377, %v2376
    %v2379 = vrot.slane %v2287, 3
    %v2380 = vsel %vm478, %v2379, %v2378
    %v2381 = vrot.slane %v2288, 2
    %v2382 = vsel %vm481, %v2381, %v2380
    %v2383 = vrot.slane %v2289, 1
    %v2384 = vsel %vm484, %v2383, %v2382
    %v2385 = vsel %vm487, %v2290, %v2384
    %v2386 = vsel %vm281, %v2385, 0
    %2388 = vmatprep.subr.mxu0 0.0
    %2389 = vmatpush1.msra.mxu0 0.0
    %2390 = vmatprep.subr.mxu0 0.0
    %2391 = vmatpush1.msra.mxu0 0.0
    %2392 = vmatprep.subr.mxu0 0.0
    %2393 = vmatpush1.msra.mxu0 0.0
    %2394 = vmatprep.subr.mxu0 0.0
    %2395 = vmatpush1.msra.mxu0 0.0
    %2396 = vmatprep.subr.mxu0 0.0
    %2397 = vmatpush1.msra.mxu0 0.0
    %2398 = vmatprep.subr.mxu0 0.0
    %2399 = vmatpush1.msra.mxu0 0.0
    %2400 = vmatprep.subr.mxu0 0.0
    %2401 = vmatpush1.msra.mxu0 0.0
    %2402 = vmatprep.subr.mxu0 0.0
    %2403 = vmatpush1.msra.mxu0 0.0
    %2404 = vmatprep.subr.mxu0 0.0
    %2405 = vmatpush1.msra.mxu0 0.0
    %2406 = vmatprep.subr.mxu0 0.0
    %2407 = vmatpush1.msra.mxu0 0.0
    %2408 = vmatprep.subr.mxu0 0.0
    %2409 = vmatpush1.msra.mxu0 0.0
    %2410 = vmatprep.subr.mxu0 0.0
    %2411 = vmatpush1.msra.mxu0 0.0
    %2412 = vmatprep.subr.mxu0 0.0
    %2413 = vmatpush1.msra.mxu0 %v117
    %2414 = vmatprep.subr.mxu0 0.0
    %2415 = vmatpush1.msra.mxu0 %v116
    %2416 = vmatprep.subr.mxu0 0.0
    %2417 = vmatpush1.msra.mxu0 %v115
    %2418 = vmatprep.subr.mxu0 0.0
    %2419 = vmatpush1.msra.mxu0 %v114
    %2420 = vmatprep.subr.mxu0 0.0
    %2421 = vmatpush2.msra.mxu0 0.0
    %2422 = vmatprep.subr.mxu0 0.0
    %2423 = vmatpush2.msra.mxu0 0.0
    %2424 = vmatprep.subr.mxu0 0.0
    %2425 = vmatpush2.msra.mxu0 0.0
    %2426 = vmatprep.subr.mxu0 0.0
    %2427 = vmatpush2.msra.mxu0 0.0
    %2428 = vmatprep.subr.mxu0 0.0
    %2429 = vmatpush2.msra.mxu0 0.0
    %2430 = vmatprep.subr.mxu0 0.0
    %2431 = vmatpush2.msra.mxu0 0.0
    %2432 = vmatprep.subr.mxu0 0.0
    %2433 = vmatpush2.msra.mxu0 0.0
    %2434 = vmatprep.subr.mxu0 0.0
    %2435 = vmatpush2.msra.mxu0 0.0
    %2436 = vmatprep.subr.mxu0 0.0
    %2437 = vmatpush2.msra.mxu0 0.0
    %2438 = vmatprep.subr.mxu0 0.0
    %2439 = vmatpush2.msra.mxu0 0.0
    %2440 = vmatprep.subr.mxu0 0.0
    %2441 = vmatpush2.msra.mxu0 0.0
    %2442 = vmatprep.subr.mxu0 0.0
    %2443 = vmatpush2.msra.mxu0 0.0
    %2444 = vmatprep.subr.mxu0 0.0
    %2445 = vmatpush2.msra.mxu0 0.0
    %2446 = vmatprep.subr.mxu0 0.0
    %2447 = vmatpush2.msra.mxu0 0.0
    %2448 = vmatprep.subr.mxu0 0.0
    %2449 = vmatpush2.msra.mxu0 0.0
    %2450 = vmatprep.subr.mxu0 0.0
    %2451 = vmatpush2.msra.mxu0 0.0
    %2452 = vmatprep.mubr.f32.mxu0 0.0
    %2453 = vmatmul.mubr.f32.gmra.mxu0 %v2386
    %v2454 = vpop.f32.mrf.mxu0
    %v2455 = vadd.f32 %v2361, %v2454
    %v2456 = vpop.f32.mrf.mxu0
    %2457 = vdwg.mxu0
    %v2458 = vadd.f32 %v2455, %v276
    %v2459 = vtanh.pop %v2458
    %v2460 = vcombine.high %v562, %v562
    %v2462 = vunpack.c.l.s4 1966171168
    %v2463 = vunpack.c.0.s8 %v2462
    %v2464 = vlaneseq
    %v2465 = vshrl.u32 %v2464, 7
    %v2466 = vsub.s32 %v2463, %v2465
    %v2467 = vrot.slane %v562, %v2466
    %v2469 = vunpack.c.l.s4 1966171168
    %v2470 = vunpack.c.0.s8 %v2469
    %v2471 = vlaneseq
    %v2472 = vshrl.u32 %v2471, 7
    %v2473 = vsub.s32 %v2470, %v2472
    %v2474 = vrot.slane %v2460, %v2473
    %v2475 = vcombine.high %v2467, %v2467
    %v2476 = vcombine.high %v2474, %v2474
    %v2478 = vunpack.c.l.s4 1966171168
    %v2479 = vunpack.c.0.s8 %v2478
    %v2480 = vlaneseq
    %v2481 = vshrl.u32 %v2480, 7
    %v2482 = vsub.s32 %v2479, %v2481
    %v2483 = vrot.slane %v2467, %v2482
    %v2485 = vunpack.c.l.s4 1966171168
    %v2486 = vunpack.c.0.s8 %v2485
    %v2487 = vlaneseq
    %v2488 = vshrl.u32 %v2487, 7
    %v2489 = vsub.s32 %v2486, %v2488
    %v2490 = vrot.slane %v2474, %v2489
    %v2492 = vunpack.c.l.s4 1966171168
    %v2493 = vunpack.c.0.s8 %v2492
    %v2494 = vlaneseq
    %v2495 = vshrl.u32 %v2494, 7
    %v2496 = vsub.s32 %v2493, %v2495
    %v2497 = vrot.slane %v2475, %v2496
    %v2499 = vunpack.c.l.s4 1966171168
    %v2500 = vunpack.c.0.s8 %v2499
    %v2501 = vlaneseq
    %v2502 = vshrl.u32 %v2501, 7
    %v2503 = vsub.s32 %v2500, %v2502
    %v2504 = vrot.slane %v2476, %v2503
    %v2505 = vcombine.high %v2483, %v2483
    %v2506 = vcombine.high %v2490, %v2490
    %v2507 = vcombine.high %v2497, %v2497
    %v2508 = vcombine.high %v2504, %v2504
    %v2517 = vcombine.high %v833, %v833
    %v2519 = vunpack.c.l.s4 1966171168
    %v2520 = vunpack.c.0.s8 %v2519
    %v2521 = vlaneseq
    %v2522 = vshrl.u32 %v2521, 7
    %v2523 = vsub.s32 %v2520, %v2522
    %v2524 = vrot.slane %v833, %v2523
    %v2526 = vunpack.c.l.s4 1966171168
    %v2527 = vunpack.c.0.s8 %v2526
    %v2528 = vlaneseq
    %v2529 = vshrl.u32 %v2528, 7
    %v2530 = vsub.s32 %v2527, %v2529
    %v2531 = vrot.slane %v2517, %v2530
    %v2532 = vcombine.high %v2524, %v2524
    %v2533 = vcombine.high %v2531, %v2531
    %v2535 = vunpack.c.l.s4 1966171168
    %v2536 = vunpack.c.0.s8 %v2535
    %v2537 = vlaneseq
    %v2538 = vshrl.u32 %v2537, 7
    %v2539 = vsub.s32 %v2536, %v2538
    %v2540 = vrot.slane %v2524, %v2539
    %v2542 = vunpack.c.l.s4 1966171168
    %v2543 = vunpack.c.0.s8 %v2542
    %v2544 = vlaneseq
    %v2545 = vshrl.u32 %v2544, 7
    %v2546 = vsub.s32 %v2543, %v2545
    %v2547 = vrot.slane %v2531, %v2546
    %v2549 = vunpack.c.l.s4 1966171168
    %v2550 = vunpack.c.0.s8 %v2549
    %v2551 = vlaneseq
    %v2552 = vshrl.u32 %v2551, 7
    %v2553 = vsub.s32 %v2550, %v2552
    %v2554 = vrot.slane %v2532, %v2553
    %v2556 = vunpack.c.l.s4 1966171168
    %v2557 = vunpack.c.0.s8 %v2556
    %v2558 = vlaneseq
    %v2559 = vshrl.u32 %v2558, 7
    %v2560 = vsub.s32 %v2557, %v2559
    %v2561 = vrot.slane %v2533, %v2560
    %v2562 = vcombine.high %v2540, %v2540
    %v2563 = vcombine.high %v2547, %v2547
    %v2564 = vcombine.high %v2554, %v2554
    %v2565 = vcombine.high %v2561, %v2561
    %v2566 = vcombine.high %v1104, %v1104
    %v2568 = vunpack.c.l.s4 1966171168
    %v2569 = vunpack.c.0.s8 %v2568
    %v2570 = vlaneseq
    %v2571 = vshrl.u32 %v2570, 7
    %v2572 = vsub.s32 %v2569, %v2571
    %v2573 = vrot.slane %v1104, %v2572
    %v2575 = vunpack.c.l.s4 1966171168
    %v2576 = vunpack.c.0.s8 %v2575
    %v2577 = vlaneseq
    %v2578 = vshrl.u32 %v2577, 7
    %v2579 = vsub.s32 %v2576, %v2578
    %v2580 = vrot.slane %v2566, %v2579
    %v2581 = vcombine.high %v2573, %v2573
    %v2582 = vcombine.high %v2580, %v2580
    %v2584 = vunpack.c.l.s4 1966171168
    %v2585 = vunpack.c.0.s8 %v2584
    %v2586 = vlaneseq
    %v2587 = vshrl.u32 %v2586, 7
    %v2588 = vsub.s32 %v2585, %v2587
    %v2589 = vrot.slane %v2573, %v2588
    %v2591 = vunpack.c.l.s4 1966171168
    %v2592 = vunpack.c.0.s8 %v2591
    %v2593 = vlaneseq
    %v2594 = vshrl.u32 %v2593, 7
    %v2595 = vsub.s32 %v2592, %v2594
    %v2596 = vrot.slane %v2580, %v2595
    %v2598 = vunpack.c.l.s4 1966171168
    %v2599 = vunpack.c.0.s8 %v2598
    %v2600 = vlaneseq
    %v2601 = vshrl.u32 %v2600, 7
    %v2602 = vsub.s32 %v2599, %v2601
    %v2603 = vrot.slane %v2581, %v2602
    %v2605 = vunpack.c.l.s4 1966171168
    %v2606 = vunpack.c.0.s8 %v2605
    %v2607 = vlaneseq
    %v2608 = vshrl.u32 %v2607, 7
    %v2609 = vsub.s32 %v2606, %v2608
    %v2610 = vrot.slane %v2582, %v2609
    %v2611 = vcombine.high %v2589, %v2589
    %v2612 = vcombine.high %v2596, %v2596
    %v2613 = vcombine.high %v2603, %v2603
    %v2614 = vcombine.high %v2610, %v2610
    %v2615 = vcombine.high %v1375, %v1375
    %v2617 = vunpack.c.l.s4 1966171168
    %v2618 = vunpack.c.0.s8 %v2617
    %v2619 = vlaneseq
    %v2620 = vshrl.u32 %v2619, 7
    %v2621 = vsub.s32 %v2618, %v2620
    %v2622 = vrot.slane %v1375, %v2621
    %v2624 = vunpack.c.l.s4 1966171168
    %v2625 = vunpack.c.0.s8 %v2624
    %v2626 = vlaneseq
    %v2627 = vshrl.u32 %v2626, 7
    %v2628 = vsub.s32 %v2625, %v2627
    %v2629 = vrot.slane %v2615, %v2628
    %v2630 = vcombine.high %v2622, %v2622
    %v2631 = vcombine.high %v2629, %v2629
    %v2633 = vunpack.c.l.s4 1966171168
    %v2634 = vunpack.c.0.s8 %v2633
    %v2635 = vlaneseq
    %v2636 = vshrl.u32 %v2635, 7
    %v2637 = vsub.s32 %v2634, %v2636
    %v2638 = vrot.slane %v2622, %v2637
    %v2640 = vunpack.c.l.s4 1966171168
    %v2641 = vunpack.c.0.s8 %v2640
    %v2642 = vlaneseq
    %v2643 = vshrl.u32 %v2642, 7
    %v2644 = vsub.s32 %v2641, %v2643
    %v2645 = vrot.slane %v2629, %v2644
    %v2647 = vunpack.c.l.s4 1966171168
    %v2648 = vunpack.c.0.s8 %v2647
    %v2649 = vlaneseq
    %v2650 = vshrl.u32 %v2649, 7
    %v2651 = vsub.s32 %v2648, %v2650
    %v2652 = vrot.slane %v2630, %v2651
    %v2654 = vunpack.c.l.s4 1966171168
    %v2655 = vunpack.c.0.s8 %v2654
    %v2656 = vlaneseq
    %v2657 = vshrl.u32 %v2656, 7
    %v2658 = vsub.s32 %v2655, %v2657
    %v2659 = vrot.slane %v2631, %v2658
    %v2660 = vcombine.high %v2638, %v2638
    %v2661 = vcombine.high %v2645, %v2645
    %v2662 = vcombine.high %v2652, %v2652
    %v2663 = vcombine.high %v2659, %v2659
    %v2664 = vcombine.high %v1646, %v1646
    %v2666 = vunpack.c.l.s4 1966171168
    %v2667 = vunpack.c.0.s8 %v2666
    %v2668 = vlaneseq
    %v2669 = vshrl.u32 %v2668, 7
    %v2670 = vsub.s32 %v2667, %v2669
    %v2671 = vrot.slane %v1646, %v2670
    %v2673 = vunpack.c.l.s4 1966171168
    %v2674 = vunpack.c.0.s8 %v2673
    %v2675 = vlaneseq
    %v2676 = vshrl.u32 %v2675, 7
    %v2677 = vsub.s32 %v2674, %v2676
    %v2678 = vrot.slane %v2664, %v2677
    %v2679 = vcombine.high %v2671, %v2671
    %v2680 = vcombine.high %v2678, %v2678
    %v2682 = vunpack.c.l.s4 1966171168
    %v2683 = vunpack.c.0.s8 %v2682
    %v2684 = vlaneseq
    %v2685 = vshrl.u32 %v2684, 7
    %v2686 = vsub.s32 %v2683, %v2685
    %v2687 = vrot.slane %v2671, %v2686
    %v2689 = vunpack.c.l.s4 1966171168
    %v2690 = vunpack.c.0.s8 %v2689
    %v2691 = vlaneseq
    %v2692 = vshrl.u32 %v2691, 7
    %v2693 = vsub.s32 %v2690, %v2692
    %v2694 = vrot.slane %v2678, %v2693
    %v2696 = vunpack.c.l.s4 1966171168
    %v2697 = vunpack.c.0.s8 %v2696
    %v2698 = vlaneseq
    %v2699 = vshrl.u32 %v2698, 7
    %v2700 = vsub.s32 %v2697, %v2699
    %v2701 = vrot.slane %v2679, %v2700
    %v2703 = vunpack.c.l.s4 1966171168
    %v2704 = vunpack.c.0.s8 %v2703
    %v2705 = vlaneseq
    %v2706 = vshrl.u32 %v2705, 7
    %v2707 = vsub.s32 %v2704, %v2706
    %v2708 = vrot.slane %v2680, %v2707
    %v2709 = vcombine.high %v2687, %v2687
    %v2710 = vcombine.high %v2694, %v2694
    %v2711 = vcombine.high %v2701, %v2701
    %v2712 = vcombine.high %v2708, %v2708
    %v2713 = vcombine.high %v1917, %v1917
    %v2715 = vunpack.c.l.s4 1966171168
    %v2716 = vunpack.c.0.s8 %v2715
    %v2717 = vlaneseq
    %v2718 = vshrl.u32 %v2717, 7
    %v2719 = vsub.s32 %v2716, %v2718
    %v2720 = vrot.slane %v1917, %v2719
    %v2722 = vunpack.c.l.s4 1966171168
    %v2723 = vunpack.c.0.s8 %v2722
    %v2724 = vlaneseq
    %v2725 = vshrl.u32 %v2724, 7
    %v2726 = vsub.s32 %v2723, %v2725
    %v2727 = vrot.slane %v2713, %v2726
    %v2728 = vcombine.high %v2720, %v2720
    %v2729 = vcombine.high %v2727, %v2727
    %v2731 = vunpack.c.l.s4 1966171168
    %v2732 = vunpack.c.0.s8 %v2731
    %v2733 = vlaneseq
    %v2734 = vshrl.u32 %v2733, 7
    %v2735 = vsub.s32 %v2732, %v2734
    %v2736 = vrot.slane %v2720, %v2735
    %v2738 = vunpack.c.l.s4 1966171168
    %v2739 = vunpack.c.0.s8 %v2738
    %v2740 = vlaneseq
    %v2741 = vshrl.u32 %v2740, 7
    %v2742 = vsub.s32 %v2739, %v2741
    %v2743 = vrot.slane %v2727, %v2742
    %v2745 = vunpack.c.l.s4 1966171168
    %v2746 = vunpack.c.0.s8 %v2745
    %v2747 = vlaneseq
    %v2748 = vshrl.u32 %v2747, 7
    %v2749 = vsub.s32 %v2746, %v2748
    %v2750 = vrot.slane %v2728, %v2749
    %v2752 = vunpack.c.l.s4 1966171168
    %v2753 = vunpack.c.0.s8 %v2752
    %v2754 = vlaneseq
    %v2755 = vshrl.u32 %v2754, 7
    %v2756 = vsub.s32 %v2753, %v2755
    %v2757 = vrot.slane %v2729, %v2756
    %v2758 = vcombine.high %v2736, %v2736
    %v2759 = vcombine.high %v2743, %v2743
    %v2760 = vcombine.high %v2750, %v2750
    %v2761 = vcombine.high %v2757, %v2757
    %v2762 = vcombine.high %v2188, %v2188
    %v2764 = vunpack.c.l.s4 1966171168
    %v2765 = vunpack.c.0.s8 %v2764
    %v2766 = vlaneseq
    %v2767 = vshrl.u32 %v2766, 7
    %v2768 = vsub.s32 %v2765, %v2767
    %v2769 = vrot.slane %v2188, %v2768
    %v2771 = vunpack.c.l.s4 1966171168
    %v2772 = vunpack.c.0.s8 %v2771
    %v2773 = vlaneseq
    %v2774 = vshrl.u32 %v2773, 7
    %v2775 = vsub.s32 %v2772, %v2774
    %v2776 = vrot.slane %v2762, %v2775
    %v2777 = vcombine.high %v2769, %v2769
    %v2778 = vcombine.high %v2776, %v2776
    %v2780 = vunpack.c.l.s4 1966171168
    %v2781 = vunpack.c.0.s8 %v2780
    %v2782 = vlaneseq
    %v2783 = vshrl.u32 %v2782, 7
    %v2784 = vsub.s32 %v2781, %v2783
    %v2785 = vrot.slane %v2769, %v2784
    %v2787 = vunpack.c.l.s4 1966171168
    %v2788 = vunpack.c.0.s8 %v2787
    %v2789 = vlaneseq
    %v2790 = vshrl.u32 %v2789, 7
    %v2791 = vsub.s32 %v2788, %v2790
    %v2792 = vrot.slane %v2776, %v2791
    %v2794 = vunpack.c.l.s4 1966171168
    %v2795 = vunpack.c.0.s8 %v2794
    %v2796 = vlaneseq
    %v2797 = vshrl.u32 %v2796, 7
    %v2798 = vsub.s32 %v2795, %v2797
    %v2799 = vrot.slane %v2777, %v2798
    %v2801 = vunpack.c.l.s4 1966171168
    %v2802 = vunpack.c.0.s8 %v2801
    %v2803 = vlaneseq
    %v2804 = vshrl.u32 %v2803, 7
    %v2805 = vsub.s32 %v2802, %v2804
    %v2806 = vrot.slane %v2778, %v2805
    %v2807 = vcombine.high %v2785, %v2785
    %v2808 = vcombine.high %v2792, %v2792
    %v2809 = vcombine.high %v2799, %v2799
    %v2810 = vcombine.high %v2806, %v2806
    %v2812 = vcombine.high %v2459, %v2459
    %v2814 = vunpack.c.l.s4 1966171168
    %v2815 = vunpack.c.0.s8 %v2814
    %v2816 = vlaneseq
    %v2817 = vshrl.u32 %v2816, 7
    %v2818 = vsub.s32 %v2815, %v2817
    %v2819 = vrot.slane %v2459, %v2818
    %v2821 = vunpack.c.l.s4 1966171168
    %v2822 = vunpack.c.0.s8 %v2821
    %v2823 = vlaneseq
    %v2824 = vshrl.u32 %v2823, 7
    %v2825 = vsub.s32 %v2822, %v2824
    %v2826 = vrot.slane %v2812, %v2825
    %v2827 = vcombine.high %v2819, %v2819
    %v2828 = vcombine.high %v2826, %v2826
    %v2830 = vunpack.c.l.s4 1966171168
    %v2831 = vunpack.c.0.s8 %v2830
    %v2832 = vlaneseq
    %v2833 = vshrl.u32 %v2832, 7
    %v2834 = vsub.s32 %v2831, %v2833
    %v2835 = vrot.slane %v2819, %v2834
    %v2837 = vunpack.c.l.s4 1966171168
    %v2838 = vunpack.c.0.s8 %v2837
    %v2839 = vlaneseq
    %v2840 = vshrl.u32 %v2839, 7
    %v2841 = vsub.s32 %v2838, %v2840
    %v2842 = vrot.slane %v2826, %v2841
    %v2844 = vunpack.c.l.s4 1966171168
    %v2845 = vunpack.c.0.s8 %v2844
    %v2846 = vlaneseq
    %v2847 = vshrl.u32 %v2846, 7
    %v2848 = vsub.s32 %v2845, %v2847
    %v2849 = vrot.slane %v2827, %v2848
    %v2851 = vunpack.c.l.s4 1966171168
    %v2852 = vunpack.c.0.s8 %v2851
    %v2853 = vlaneseq
    %v2854 = vshrl.u32 %v2853, 7
    %v2855 = vsub.s32 %v2852, %v2854
    %v2856 = vrot.slane %v2828, %v2855
    %v2857 = vcombine.high %v2835, %v2835
    %v2858 = vcombine.high %v2842, %v2842
    %v2859 = vcombine.high %v2849, %v2849
    %v2860 = vcombine.high %v2856, %v2856
    %v2861 = vlaneseq
    %v2862 = vshrl.u32 %v2861, 7
    %v2863 = vsub.s32 0, %v2862
    %v2864 = vrot.slane %v2540, %v2863
    %v2865 = vlaneseq
    %v2866 = vshrl.u32 %v2865, 7
    %v2867 = vsub.s32 0, %v2866
    %v2868 = vrot.slane %v2554, %v2867
    %v2869 = vlaneseq
    %v2870 = vshrl.u32 %v2869, 7
    %v2871 = vsub.s32 0, %v2870
    %v2872 = vrot.slane %v2562, %v2871
    %v2873 = vlaneseq
    %v2874 = vshrl.u32 %v2873, 7
    %v2875 = vsub.s32 0, %v2874
    %v2876 = vrot.slane %v2564, %v2875
    %v2877 = vlaneseq
    %v2878 = vshrl.u32 %v2877, 7
    %v2879 = vsub.s32 0, %v2878
    %v2880 = vrot.slane %v2547, %v2879
    %v2881 = vlaneseq
    %v2882 = vshrl.u32 %v2881, 7
    %v2883 = vsub.s32 0, %v2882
    %v2884 = vrot.slane %v2561, %v2883
    %v2885 = vlaneseq
    %v2886 = vshrl.u32 %v2885, 7
    %v2887 = vsub.s32 0, %v2886
    %v2888 = vrot.slane %v2563, %v2887
    %v2889 = vlaneseq
    %v2890 = vshrl.u32 %v2889, 7
    %v2891 = vsub.s32 0, %v2890
    %v2892 = vrot.slane %v2565, %v2891
    %v2901 = vlaneseq
    %v2902 = vshrl.u32 %v2901, 7
    %v2903 = vsub.s32 0, %v2902
    %v2904 = vrot.slane %v2589, %v2903
    %v2905 = vlaneseq
    %v2906 = vshrl.u32 %v2905, 7
    %v2907 = vsub.s32 0, %v2906
    %v2908 = vrot.slane %v2603, %v2907
    %v2909 = vlaneseq
    %v2910 = vshrl.u32 %v2909, 7
    %v2911 = vsub.s32 0, %v2910
    %v2912 = vrot.slane %v2611, %v2911
    %v2913 = vlaneseq
    %v2914 = vshrl.u32 %v2913, 7
    %v2915 = vsub.s32 0, %v2914
    %v2916 = vrot.slane %v2613, %v2915
    %v2917 = vlaneseq
    %v2918 = vshrl.u32 %v2917, 7
    %v2919 = vsub.s32 0, %v2918
    %v2920 = vrot.slane %v2596, %v2919
    %v2921 = vlaneseq
    %v2922 = vshrl.u32 %v2921, 7
    %v2923 = vsub.s32 0, %v2922
    %v2924 = vrot.slane %v2610, %v2923
    %v2925 = vlaneseq
    %v2926 = vshrl.u32 %v2925, 7
    %v2927 = vsub.s32 0, %v2926
    %v2928 = vrot.slane %v2612, %v2927
    %v2929 = vlaneseq
    %v2930 = vshrl.u32 %v2929, 7
    %v2931 = vsub.s32 0, %v2930
    %v2932 = vrot.slane %v2614, %v2931
    %v2941 = vlaneseq
    %v2942 = vshrl.u32 %v2941, 7
    %v2943 = vsub.s32 0, %v2942
    %v2944 = vrot.slane %v2638, %v2943
    %v2945 = vlaneseq
    %v2946 = vshrl.u32 %v2945, 7
    %v2947 = vsub.s32 0, %v2946
    %v2948 = vrot.slane %v2652, %v2947
    %v2949 = vlaneseq
    %v2950 = vshrl.u32 %v2949, 7
    %v2951 = vsub.s32 0, %v2950
    %v2952 = vrot.slane %v2660, %v2951
    %v2953 = vlaneseq
    %v2954 = vshrl.u32 %v2953, 7
    %v2955 = vsub.s32 0, %v2954
    %v2956 = vrot.slane %v2662, %v2955
    %v2957 = vlaneseq
    %v2958 = vshrl.u32 %v2957, 7
    %v2959 = vsub.s32 0, %v2958
    %v2960 = vrot.slane %v2645, %v2959
    %v2961 = vlaneseq
    %v2962 = vshrl.u32 %v2961, 7
    %v2963 = vsub.s32 0, %v2962
    %v2964 = vrot.slane %v2659, %v2963
    %v2965 = vlaneseq
    %v2966 = vshrl.u32 %v2965, 7
    %v2967 = vsub.s32 0, %v2966
    %v2968 = vrot.slane %v2661, %v2967
    %v2969 = vlaneseq
    %v2970 = vshrl.u32 %v2969, 7
    %v2971 = vsub.s32 0, %v2970
    %v2972 = vrot.slane %v2663, %v2971
    %v2981 = vlaneseq
    %v2982 = vshrl.u32 %v2981, 7
    %v2983 = vsub.s32 0, %v2982
    %v2984 = vrot.slane %v2687, %v2983
    %v2985 = vlaneseq
    %v2986 = vshrl.u32 %v2985, 7
    %v2987 = vsub.s32 0, %v2986
    %v2988 = vrot.slane %v2701, %v2987
    %v2989 = vlaneseq
    %v2990 = vshrl.u32 %v2989, 7
    %v2991 = vsub.s32 0, %v2990
    %v2992 = vrot.slane %v2709, %v2991
    %v2993 = vlaneseq
    %v2994 = vshrl.u32 %v2993, 7
    %v2995 = vsub.s32 0, %v2994
    %v2996 = vrot.slane %v2711, %v2995
    %v2997 = vlaneseq
    %v2998 = vshrl.u32 %v2997, 7
    %v2999 = vsub.s32 0, %v2998
    %v3000 = vrot.slane %v2694, %v2999
    %v3001 = vlaneseq
    %v3002 = vshrl.u32 %v3001, 7
    %v3003 = vsub.s32 0, %v3002
    %v3004 = vrot.slane %v2708, %v3003
    %v3005 = vlaneseq
    %v3006 = vshrl.u32 %v3005, 7
    %v3007 = vsub.s32 0, %v3006
    %v3008 = vrot.slane %v2710, %v3007
    %v3009 = vlaneseq
    %v3010 = vshrl.u32 %v3009, 7
    %v3011 = vsub.s32 0, %v3010
    %v3012 = vrot.slane %v2712, %v3011
    %v3021 = vlaneseq
    %v3022 = vshrl.u32 %v3021, 7
    %v3023 = vsub.s32 0, %v3022
    %v3024 = vrot.slane %v2736, %v3023
    %v3025 = vlaneseq
    %v3026 = vshrl.u32 %v3025, 7
    %v3027 = vsub.s32 0, %v3026
    %v3028 = vrot.slane %v2750, %v3027
    %v3029 = vlaneseq
    %v3030 = vshrl.u32 %v3029, 7
    %v3031 = vsub.s32 0, %v3030
    %v3032 = vrot.slane %v2758, %v3031
    %v3033 = vlaneseq
    %v3034 = vshrl.u32 %v3033, 7
    %v3035 = vsub.s32 0, %v3034
    %v3036 = vrot.slane %v2760, %v3035
    %v3037 = vlaneseq
    %v3038 = vshrl.u32 %v3037, 7
    %v3039 = vsub.s32 0, %v3038
    %v3040 = vrot.slane %v2743, %v3039
    %v3041 = vlaneseq
    %v3042 = vshrl.u32 %v3041, 7
    %v3043 = vsub.s32 0, %v3042
    %v3044 = vrot.slane %v2757, %v3043
    %v3045 = vlaneseq
    %v3046 = vshrl.u32 %v3045, 7
    %v3047 = vsub.s32 0, %v3046
    %v3048 = vrot.slane %v2759, %v3047
    %v3049 = vlaneseq
    %v3050 = vshrl.u32 %v3049, 7
    %v3051 = vsub.s32 0, %v3050
    %v3052 = vrot.slane %v2761, %v3051
    %v3061 = vlaneseq
    %v3062 = vshrl.u32 %v3061, 7
    %v3063 = vsub.s32 0, %v3062
    %v3064 = vrot.slane %v2785, %v3063
    %v3065 = vlaneseq
    %v3066 = vshrl.u32 %v3065, 7
    %v3067 = vsub.s32 0, %v3066
    %v3068 = vrot.slane %v2799, %v3067
    %v3069 = vlaneseq
    %v3070 = vshrl.u32 %v3069, 7
    %v3071 = vsub.s32 0, %v3070
    %v3072 = vrot.slane %v2807, %v3071
    %v3073 = vlaneseq
    %v3074 = vshrl.u32 %v3073, 7
    %v3075 = vsub.s32 0, %v3074
    %v3076 = vrot.slane %v2809, %v3075
    %v3077 = vlaneseq
    %v3078 = vshrl.u32 %v3077, 7
    %v3079 = vsub.s32 0, %v3078
    %v3080 = vrot.slane %v2792, %v3079
    %v3081 = vlaneseq
    %v3082 = vshrl.u32 %v3081, 7
    %v3083 = vsub.s32 0, %v3082
    %v3084 = vrot.slane %v2806, %v3083
    %v3085 = vlaneseq
    %v3086 = vshrl.u32 %v3085, 7
    %v3087 = vsub.s32 0, %v3086
    %v3088 = vrot.slane %v2808, %v3087
    %v3089 = vlaneseq
    %v3090 = vshrl.u32 %v3089, 7
    %v3091 = vsub.s32 0, %v3090
    %v3092 = vrot.slane %v2810, %v3091
    %v3101 = vlaneseq
    %v3102 = vshrl.u32 %v3101, 7
    %v3103 = vsub.s32 0, %v3102
    %v3104 = vrot.slane %v2835, %v3103
    %v3105 = vlaneseq
    %v3106 = vshrl.u32 %v3105, 7
    %v3107 = vsub.s32 0, %v3106
    %v3108 = vrot.slane %v2849, %v3107
    %v3109 = vlaneseq
    %v3110 = vshrl.u32 %v3109, 7
    %v3111 = vsub.s32 0, %v3110
    %v3112 = vrot.slane %v2857, %v3111
    %v3113 = vlaneseq
    %v3114 = vshrl.u32 %v3113, 7
    %v3115 = vsub.s32 0, %v3114
    %v3116 = vrot.slane %v2859, %v3115
    %v3117 = vlaneseq
    %v3118 = vshrl.u32 %v3117, 7
    %v3119 = vsub.s32 0, %v3118
    %v3120 = vrot.slane %v2842, %v3119
    %v3121 = vlaneseq
    %v3122 = vshrl.u32 %v3121, 7
    %v3123 = vsub.s32 0, %v3122
    %v3124 = vrot.slane %v2856, %v3123
    %v3125 = vlaneseq
    %v3126 = vshrl.u32 %v3125, 7
    %v3127 = vsub.s32 0, %v3126
    %v3128 = vrot.slane %v2858, %v3127
    %v3129 = vlaneseq
    %v3130 = vshrl.u32 %v3129, 7
    %v3131 = vsub.s32 0, %v3130
    %v3132 = vrot.slane %v2860, %v3131
    %vm3141 = vcmask 1040384
    %v3142 = vsel %vm3141, %v2483, %v2864
    %v3143 = vsel %vm3141, %v2497, %v2868
    %v3144 = vsel %vm3141, %v2505, %v2872
    %v3145 = vsel %vm3141, %v2507, %v2876
    %v3146 = vsel %vm3141, %v2490, %v2880
    %v3147 = vsel %vm3141, %v2504, %v2884
    %v3148 = vsel %vm3141, %v2506, %v2888
    %v3149 = vsel %vm3141, %v2508, %v2892
    %vm3150 = vcmask 1041408
    %v3151 = vsel %vm3150, %v3142, %v2904
    %v3152 = vsel %vm3150, %v3143, %v2908
    %v3153 = vsel %vm3150, %v3144, %v2912
    %v3154 = vsel %vm3150, %v3145, %v2916
    %v3155 = vsel %vm3150, %v3146, %v2920
    %v3156 = vsel %vm3150, %v3147, %v2924
    %v3157 = vsel %vm3150, %v3148, %v2928
    %v3158 = vsel %vm3150, %v3149, %v2932
    %vm3159 = vcmask 1042432
    %v3160 = vsel %vm3159, %v3151, %v2944
    %v3161 = vsel %vm3159, %v3152, %v2948
    %v3162 = vsel %vm3159, %v3153, %v2952
    %v3163 = vsel %vm3159, %v3154, %v2956
    %v3164 = vsel %vm3159, %v3155, %v2960
    %v3165 = vsel %vm3159, %v3156, %v2964
    %v3166 = vsel %vm3159, %v3157, %v2968
    %v3167 = vsel %vm3159, %v3158, %v2972
    %vm3168 = vcmask 1043456
    %v3169 = vsel %vm3168, %v3160, %v2984
    %v3170 = vsel %vm3168, %v3161, %v2988
    %v3171 = vsel %vm3168, %v3162, %v2992
    %v3172 = vsel %vm3168, %v3163, %v2996
    %v3173 = vsel %vm3168, %v3164, %v3000
    %v3174 = vsel %vm3168, %v3165, %v3004
    %v3175 = vsel %vm3168, %v3166, %v3008
    %v3176 = vsel %vm3168, %v3167, %v3012
    %vm3177 = vcmask 1044480
    %v3178 = vsel %vm3177, %v3169, %v3024
    %v3179 = vsel %vm3177, %v3170, %v3028
    %v3180 = vsel %vm3177, %v3171, %v3032
    %v3181 = vsel %vm3177, %v3172, %v3036
    %v3182 = vsel %vm3177, %v3173, %v3040
    %v3183 = vsel %vm3177, %v3174, %v3044
    %v3184 = vsel %vm3177, %v3175, %v3048
    %v3185 = vsel %vm3177, %v3176, %v3052
    %vm3186 = vcmask 1045504
    %v3187 = vsel %vm3186, %v3178, %v3064
    %v3188 = vsel %vm3186, %v3179, %v3068
    %v3189 = vsel %vm3186, %v3180, %v3072
    %v3190 = vsel %vm3186, %v3181, %v3076
    %v3191 = vsel %vm3186, %v3182, %v3080
    %v3192 = vsel %vm3186, %v3183, %v3084
    %v3193 = vsel %vm3186, %v3184, %v3088
    %v3194 = vsel %vm3186, %v3185, %v3092
    %vm3195 = vcmask 1046528
    %v3196 = vsel %vm3195, %v3187, %v3104
    %v3197 = vsel %vm3195, %v3188, %v3108
    %v3198 = vsel %vm3195, %v3189, %v3112
    %v3199 = vsel %vm3195, %v3190, %v3116
    %v3200 = vsel %vm3195, %v3191, %v3120
    %v3201 = vsel %vm3195, %v3192, %v3124
    %v3202 = vsel %vm3195, %v3193, %v3128
    %v3203 = vsel %vm3195, %v3194, %v3132
    %v3205 = vlaneseq
    %v3206 = vshrl.u32 %v3205, 7
    %v3207 = vsub.s32 0, %v3206
    %v3208 = vrot.slane %v127, %v3207
    %v3211 = vsel %vm281, %v3196, 0
    %v3214 = vsel %vm281, %v3197, 0
    %v3217 = vsel %vm281, %v3198, 0
    %v3220 = vsel %vm281, %v3199, 0
    %v3223 = vsel %vm281, %v3200, 0
    %v3226 = vsel %vm281, %v3201, 0
    %v3229 = vsel %vm281, %v3202, 0
    %v3232 = vsel %vm281, %v3203, 0
    %3234 = vmatprep.subr.mxu0 0.0
    %3235 = vmatpush1.msra.mxu0 0.0
    %3236 = vmatprep.subr.mxu0 0.0
    %3237 = vmatpush1.msra.mxu0 0.0
    %3238 = vmatprep.subr.mxu0 0.0
    %3239 = vmatpush1.msra.mxu0 0.0
    %3240 = vmatprep.subr.mxu0 0.0
    %3241 = vmatpush1.msra.mxu0 0.0
    %3242 = vmatprep.subr.mxu0 0.0
    %3243 = vmatpush1.msra.mxu0 0.0
    %3244 = vmatprep.subr.mxu0 0.0
    %3245 = vmatpush1.msra.mxu0 0.0
    %3246 = vmatprep.subr.mxu0 0.0
    %3247 = vmatpush1.msra.mxu0 0.0
    %3248 = vmatprep.subr.mxu0 0.0
    %3249 = vmatpush1.msra.mxu0 0.0
    %3250 = vmatprep.subr.mxu0 0.0
    %3251 = vmatpush1.msra.mxu0 0.0
    %3252 = vmatprep.subr.mxu0 0.0
    %3253 = vmatpush1.msra.mxu0 0.0
    %3254 = vmatprep.subr.mxu0 0.0
    %3255 = vmatpush1.msra.mxu0 0.0
    %3256 = vmatprep.subr.mxu0 0.0
    %3257 = vmatpush1.msra.mxu0 0.0
    %3258 = vmatprep.subr.mxu0 0.0
    %3259 = vmatpush1.msra.mxu0 %v126
    %3260 = vmatprep.subr.mxu0 0.0
    %3261 = vmatpush1.msra.mxu0 %v125
    %3262 = vmatprep.subr.mxu0 0.0
    %3263 = vmatpush1.msra.mxu0 %v124
    %3264 = vmatprep.subr.mxu0 0.0
    %3265 = vmatpush1.msra.mxu0 %v123
    %3266 = vmatprep.subr.mxu0 0.0
    %3267 = vmatpush2.msra.mxu0 0.0
    %3268 = vmatprep.subr.mxu0 0.0
    %3269 = vmatpush2.msra.mxu0 0.0
    %3270 = vmatprep.subr.mxu0 0.0
    %3271 = vmatpush2.msra.mxu0 0.0
    %3272 = vmatprep.subr.mxu0 0.0
    %3273 = vmatpush2.msra.mxu0 0.0
    %3274 = vmatprep.subr.mxu0 0.0
    %3275 = vmatpush2.msra.mxu0 0.0
    %3276 = vmatprep.subr.mxu0 0.0
    %3277 = vmatpush2.msra.mxu0 0.0
    %3278 = vmatprep.subr.mxu0 0.0
    %3279 = vmatpush2.msra.mxu0 0.0
    %3280 = vmatprep.subr.mxu0 0.0
    %3281 = vmatpush2.msra.mxu0 0.0
    %3282 = vmatprep.subr.mxu0 0.0
    %3283 = vmatpush2.msra.mxu0 0.0
    %3284 = vmatprep.subr.mxu0 0.0
    %3285 = vmatpush2.msra.mxu0 0.0
    %3286 = vmatprep.subr.mxu0 0.0
    %3287 = vmatpush2.msra.mxu0 0.0
    %3288 = vmatprep.subr.mxu0 0.0
    %3289 = vmatpush2.msra.mxu0 0.0
    %3290 = vmatprep.subr.mxu0 0.0
    %3291 = vmatpush2.msra.mxu0 0.0
    %3292 = vmatprep.subr.mxu0 0.0
    %3293 = vmatpush2.msra.mxu0 0.0
    %3294 = vmatprep.subr.mxu0 0.0
    %3295 = vmatpush2.msra.mxu0 0.0
    %3296 = vmatprep.subr.mxu0 0.0
    %3297 = vmatpush2.msra.mxu0 0.0
    %3298 = vmatprep.mubr.f32.mxu0 0.0
    %3299 = vmatmul.mubr.f32.gmra.mxu0 %v3211
    %v3300 = vpop.f32.mrf.mxu0
    %v3301 = vadd.f32 %v3208, %v3300
    %v3302 = vpop.f32.mrf.mxu0
    %3303 = vmatprep.mubr.f32.mxu0 0.0
    %3304 = vmatmul.mubr.f32.gmra.mxu0 %v3214
    %v3305 = vpop.f32.mrf.mxu0
    %v3306 = vadd.f32 %v3208, %v3305
    %v3307 = vpop.f32.mrf.mxu0
    %3308 = vmatprep.mubr.f32.mxu0 0.0
    %3309 = vmatmul.mubr.f32.gmra.mxu0 %v3217
    %v3310 = vpop.f32.mrf.mxu0
    %v3311 = vadd.f32 %v3208, %v3310
    %v3312 = vpop.f32.mrf.mxu0
    %3313 = vmatprep.mubr.f32.mxu0 0.0
    %3314 = vmatmul.mubr.f32.gmra.mxu0 %v3220
    %v3315 = vpop.f32.mrf.mxu0
    %v3316 = vadd.f32 %v3208, %v3315
    %v3317 = vpop.f32.mrf.mxu0
    %3318 = vmatprep.mubr.f32.mxu0 0.0
    %3319 = vmatmul.mubr.f32.gmra.mxu0 %v3223
    %v3320 = vpop.f32.mrf.mxu0
    %v3321 = vadd.f32 %v3208, %v3320
    %v3322 = vpop.f32.mrf.mxu0
    %3323 = vmatprep.mubr.f32.mxu0 0.0
    %3324 = vmatmul.mubr.f32.gmra.mxu0 %v3226
    %v3325 = vpop.f32.mrf.mxu0
    %v3326 = vadd.f32 %v3208, %v3325
    %v3327 = vpop.f32.mrf.mxu0
    %3328 = vmatprep.mubr.f32.mxu0 0.0
    %3329 = vmatmul.mubr.f32.gmra.mxu0 %v3229
    %v3330 = vpop.f32.mrf.mxu0
    %v3331 = vadd.f32 %v3208, %v3330
    %v3332 = vpop.f32.mrf.mxu0
    %3333 = vmatprep.mubr.f32.mxu0 0.0
    %3334 = vmatmul.mubr.f32.gmra.mxu0 %v3232
    %v3335 = vpop.f32.mrf.mxu0
    %v3336 = vadd.f32 %v3208, %v3335
    %v3337 = vpop.f32.mrf.mxu0
    %3338 = vdwg.mxu0
    %vm3339 = vcmask 64512
    %3340 = vst.msk [vmem:[#allocation11] sm:$0xff] %vm3339, %v3301
    %3341 = vst.msk [vmem:[#allocation11 + $0x8] sm:$0xff] %vm3339, %v3306
    %3342 = vst.msk [vmem:[#allocation11 + $0x10] sm:$0xff] %vm3339, %v3311
    %3343 = vst.msk [vmem:[#allocation11 + $0x18] sm:$0xff] %vm3339, %v3316
    %3344 = vst.msk [vmem:[#allocation11 + $0x20] sm:$0xff] %vm3339, %v3321
    %3345 = vst.msk [vmem:[#allocation11 + $0x28] sm:$0xff] %vm3339, %v3326
    %3346 = vst.msk [vmem:[#allocation11 + $0x30] sm:$0xff] %vm3339, %v3331
    %3347 = vst.msk [vmem:[#allocation11 + $0x38] sm:$0xff] %vm3339, %v3336
    %v3348 = vrot.slane %v2284, 7
    %v3349 = vrot.slane %v2285, 6
    %v3350 = vsel %vm469, %v3349, %v3348
    %v3351 = vrot.slane %v2286, 5
    %v3352 = vsel %vm472, %v3351, %v3350
    %v3353 = vrot.slane %v2287, 4
    %v3354 = vsel %vm475, %v3353, %v3352
    %v3355 = vrot.slane %v2288, 3
    %v3356 = vsel %vm478, %v3355, %v3354
    %v3357 = vrot.slane %v2289, 2
    %v3358 = vsel %vm481, %v3357, %v3356
    %v3359 = vrot.slane %v2290, 1
    %v3360 = vsel %vm484, %v3359, %v3358
    %vm3363 = vcmask 261127
    %3364 = vst.msk [vmem:[#allocation12 - $0x7] sm:$0x80] %vm3363, %v2283
    %vm3365 = vcmask 260096
    %3366 = vst.msk [vmem:[#allocation12 + $0x1] sm:$0x7f] %vm3365, %v3360
    %s3367 = scalar_lea.vmem [#allocation12], 8
    %3368 = vst.msk [vmem:[%s3367] sm:$0xff] %vm281, %v2459
    // Predicated region
    $region62: #{rnn_forward.1} parent=1 // pred_check
      _
    $region63: #{rnn_forward.1} parent=1 // pred_check_branch
      %3370 = sbr.rel (0) target = $region65
    $region64: #{rnn_forward.1} parent=1 // pred_region
      %s3372 = ssub.s32 1024, 1024
      %3373 = vsyncadd [#allocation4], %s3372
      %s3374 = sshll.u32 [#allocation11], 4
      %s3375 = int_to_ptr.vmem [resolvable:$true] %s3374
      %3380 = dma.vmem_to_hbm [thread:$0]  %s3375, 1024, %s10, [#allocation4], 128, 128, 8
    $region65: #{rnn_forward.1} parent=1 // pred_fallthru
      _
    // Predicated region
    $region66: #{rnn_forward.1} parent=1 // pred_check
      _
    $region67: #{rnn_forward.1} parent=1 // pred_check_branch
      %3382 = sbr.rel (0) target = $region69
    $region68: #{rnn_forward.1} parent=1 // pred_region
      %s3384 = ssub.s32 256, 256
      %3385 = vsyncadd [#allocation13], %s3384
      %s3386 = sshll.u32 [#allocation12], 4
      %s3387 = int_to_ptr.vmem [resolvable:$true] %s3386
      %3392 = dma.vmem_to_hbm [thread:$0]  %s3387, 256, %s11, [#allocation13], 128, 128, 8
    $region69: #{rnn_forward.1} parent=1 // pred_fallthru
      _
    // Predicated region
    $region70: #{rnn_forward.1} parent=1 // pred_check
      _
    $region71: #{rnn_forward.1} parent=1 // pred_check_branch
      %3394 = sbr.rel (0) target = $region73
    $region72: #{rnn_forward.1} parent=1 // pred_region
      %3395 = dma.done [#allocation4], 1024
    $region73: #{rnn_forward.1} parent=1 // pred_fallthru
      _
    // Predicated region
    $region74: #{rnn_forward.1} parent=1 // pred_check
      _
    $region75: #{rnn_forward.1} parent=1 // pred_check_branch
      %3397 = sbr.rel (0) target = $region77
    $region76: #{rnn_forward.1} parent=1 // pred_region
      %3398 = dma.done [#allocation13], 256
    $region77: #{rnn_forward.1} parent=1 // pred_fallthru
      _
    %3399 = vsyncpa [#allocation3], 1
    %3400 = vsyncpa [#allocation6], 1
    %3401 = vsyncpa [#allocation9], 1
    %3402 = vsyncpa [#allocation4], 1
    %3403 = vsyncpa [#allocation13], 1

</llo_original>
